<compile_context>
chip_gen: v6e
topology: v6e:2x2x1
jax: 0.10.0
libtpu: 0.0.40
codegen_flags: <defaults>
</compile_context>

<pallas_src>
import functools

import jax
import jax.numpy as jnp
from jax.experimental import pallas as pl
from jax.experimental.pallas import tpu as pltpu

BN_EPS = 1e-5
LRELU_SLOPE = 0.2
LANE = 128
SUBLANE = 8
MAX_TILE_M = 512


def _round_up(x, m):
    return (x + m - 1) // m * m


# -----------------------------------------------------------------------------
# Pallas kernels
# -----------------------------------------------------------------------------
def _mm_act_kernel(p_ref, w_ref, o_ref, *, act):
    """(TM, K) bf16 @ (K, C) bf16 -> f32 accumulate, fused activation (no BN)."""
    y = jnp.dot(p_ref[...], w_ref[...], preferred_element_type=jnp.float32)
    if act == "leaky":
        y = jnp.where(y > 0, y, LRELU_SLOPE * y)
    elif act == "sigmoid":
        # Numerically stable, exact sigmoid (result guaranteed within [0, 1]).
        z = jnp.exp(-jnp.abs(y))
        y = jnp.where(y >= 0, 1.0 / (1.0 + z), z / (1.0 + z))
    o_ref[...] = y.astype(o_ref.dtype)


def _mm_stats_kernel(p_ref, w_ref, y_ref, s_ref, q_ref):
    """BN pass 1: matmul tile; emit y plus per-tile partial sum / sum-of-sq."""
    y = jnp.dot(p_ref[...], w_ref[...], preferred_element_type=jnp.float32)
    tm, c = y.shape
    # Sublane-partial reduction (layout-preserving split of the second-minor
    # dim into 8-row slabs, cheap VPU adds); the final (num_tiles, 8) -> scalar
    # per-channel reduction happens in tiny JAX glue.  Stats are taken from the
    # f32 accumulator, before any downcast of y.
    yr = y.reshape(tm // SUBLANE, SUBLANE, c)
    s_ref[0] = jnp.sum(yr, axis=0)
    q_ref[0] = jnp.sum(yr * yr, axis=0)
    y_ref[...] = y.astype(y_ref.dtype)


def _bn_act_kernel(y_ref, scale_ref, shift_ref, o_ref):
    """BN pass 2: per-channel affine (precomputed f32 scale/shift) + LeakyReLU."""
    y = y_ref[...].astype(jnp.float32) * scale_ref[...] + shift_ref[...]
    o_ref[...] = jnp.where(y > 0, y, LRELU_SLOPE * y).astype(o_ref.dtype)


# -----------------------------------------------------------------------------
# JAX glue: channels-last im2col + per-layer driver
# -----------------------------------------------------------------------------
def _im2col_nhwc(x, kh, kw, stride, pad):
    """x: (N, H, W, C) -> patches (N*OH*OW, KH*KW*C); feature order (kh, kw, c)."""
    if pad > 0:
        x = jnp.pad(x, ((0, 0), (pad, pad), (pad, pad), (0, 0)))
    n, h, w, c = x.shape
    oh = (h - kh) // stride + 1
    ow = (w - kw) // stride + 1
    taps = []
    for i in range(kh):
        for j in range(kw):
            taps.append(x[:, i:i + stride * oh:stride, j:j + stride * ow:stride, :])
    p = jnp.stack(taps, axis=3)                      # (N, OH, OW, KH*KW, C)
    return p.reshape(n * oh * ow, kh * kw * c), oh, ow


def conv_block(x, w, *, stride, pad, bn=None, act="leaky", out_dtype=jnp.bfloat16):
    """x: (N, H, W, IC) NHWC; w: (OC, IC, KH, KW) PyTorch layout -> (N, OH, OW, OC)."""
    n = x.shape[0]
    oc, ic, kh, kw = w.shape
    patches, oh, ow = _im2col_nhwc(x, kh, kw, stride, pad)
    m, k = patches.shape

    kp = _round_up(k, LANE)                          # lane-dense contraction dim
    cp = _round_up(oc, LANE)                         # lane-dense output dim
    tm = min(MAX_TILE_M, _round_up(m, SUBLANE))      # M tile (VMEM-safe on v7x too)
    mp = _round_up(m, tm)
    num_t = mp // tm

    # bf16 matmul inputs, zero-padded (numerical no-op for matmul and stats).
    patches = jnp.pad(patches, ((0, mp - m), (0, kp - k))).astype(jnp.bfloat16)
    w2d = w.transpose(2, 3, 1, 0).reshape(k, oc)     # (KH*KW*IC, OC) matches patches
    w2d = jnp.pad(w2d, ((0, kp - k), (0, cp - oc))).astype(jnp.bfloat16)

    cparams = pltpu.CompilerParams(dimension_semantics=("parallel",))
    out_bytes = jnp.dtype(out_dtype).itemsize
    cost = pl.CostEstimate(
        flops=2 * mp * kp * cp,
        transcendentals=mp * cp if act == "sigmoid" else 0,
        bytes_accessed=mp * kp * 2 + kp * cp * 2 + mp * cp * out_bytes,
    )
    p_spec = pl.BlockSpec((tm, kp), lambda i: (i, 0))
    w_spec = pl.BlockSpec((kp, cp), lambda i: (0, 0))     # resident weights
    y_spec = pl.BlockSpec((tm, cp), lambda i: (i, 0))

    if bn is None:
        y = pl.pallas_call(
            functools.partial(_mm_act_kernel, act=act),
            out_shape=jax.ShapeDtypeStruct((mp, cp), out_dtype),
            grid=(num_t,),
            in_specs=[p_spec, w_spec],
            out_specs=y_spec,
            compiler_params=cparams,
            cost_estimate=cost,
        )(patches, w2d)
    else:
        gamma, beta = bn
        stat_spec = pl.BlockSpec((1, SUBLANE, cp), lambda i: (i, 0, 0))
        # Pre-BN conv output is kept in f32 for the short pass1->pass2 round
        # trip so normalization sees the unrounded accumulator values.
        y, psum, psq = pl.pallas_call(
            _mm_stats_kernel,
            out_shape=(
                jax.ShapeDtypeStruct((mp, cp), jnp.float32),
                jax.ShapeDtypeStruct((num_t, SUBLANE, cp), jnp.float32),
                jax.ShapeDtypeStruct((num_t, SUBLANE, cp), jnp.float32),
            ),
            grid=(num_t,),
            in_specs=[p_spec, w_spec],
            out_specs=(y_spec, stat_spec, stat_spec),
            compiler_params=cparams,
            cost_estimate=cost,
        )(patches, w2d)

        # Per-channel batch statistics over the true M rows (padded rows are
        # exactly zero and contribute nothing to either sum).  Biased variance,
        # eps = 1e-5 -> matches PyTorch training-mode BatchNorm2d.  All f32.
        s = jnp.sum(psum, axis=(0, 1))
        q = jnp.sum(psq, axis=(0, 1))
        mean = s / m
        var = jnp.maximum(q / m - mean * mean, 0.0)
        gamma_p = jnp.pad(gamma, (0, cp - oc))
        beta_p = jnp.pad(beta, (0, cp - oc))
        inv = jax.lax.rsqrt(var + BN_EPS)
        scale = (gamma_p * inv).reshape(1, cp).astype(jnp.float32)
        shift = (beta_p - mean * gamma_p * inv).reshape(1, cp).astype(jnp.float32)

        a_spec = pl.BlockSpec((1, cp), lambda i: (0, 0))
        y = pl.pallas_call(
            _bn_act_kernel,
            out_shape=jax.ShapeDtypeStruct((mp, cp), out_dtype),
            grid=(num_t,),
            in_specs=[y_spec, a_spec, a_spec],
            out_specs=pl.BlockSpec((tm, cp), lambda i: (i, 0)),
            compiler_params=cparams,
        )(y, scale, shift)

    return y[:m, :oc].reshape(n, oh, ow, oc)


# -----------------------------------------------------------------------------
# Model
# -----------------------------------------------------------------------------
def init_params(key, nc, ndf):
    ks = jax.random.split(key, 8)

    def conv_w(k, oc, ic):
        return 0.02 * jax.random.normal(k, (oc, ic, 4, 4), jnp.float32)

    def bn(k, c):
        kg, kb = jax.random.split(k)
        return (1.0 + 0.1 * jax.random.normal(kg, (c,), jnp.float32),
                0.1 * jax.random.normal(kb, (c,), jnp.float32))

    p = {
        "w1": conv_w(ks[0], ndf, nc),
        "w2": conv_w(ks[1], ndf * 2, ndf),
        "w3": conv_w(ks[2], ndf * 4, ndf * 2),
        "w4": conv_w(ks[3], ndf * 8, ndf * 4),
        "w5": conv_w(ks[4], 1, ndf * 8),
    }
    p["g2"], p["b2"] = bn(ks[5], ndf * 2)
    p["g3"], p["b3"] = bn(ks[6], ndf * 4)
    p["g4"], p["b4"] = bn(ks[7], ndf * 8)
    return p


def discriminator_forward(x_nchw, params):
    x = jnp.transpose(x_nchw, (0, 2, 3, 1))                        # NCHW -> NHWC once
    h = conv_block(x, params["w1"], stride=2, pad=1, act="leaky")
    h = conv_block(h, params["w2"], stride=2, pad=1,
                   bn=(params["g2"], params["b2"]), act="leaky")
    h = conv_block(h, params["w3"], stride=2, pad=1,
                   bn=(params["g3"], params["b3"]), act="leaky")
    h = conv_block(h, params["w4"], stride=2, pad=1,
                   bn=(params["g4"], params["b4"]), act="leaky")
    h = conv_block(h, params["w5"], stride=1, pad=0, act="sigmoid",
                   out_dtype=jnp.float32)
    return jnp.transpose(h, (0, 3, 1, 2))                          # (N, 1, 1, 1)


if __name__ == "__main__":
    # DCGAN discriminator requires 64x64 spatial input (final 4x4 valid conv
    # acts on a 4x4 feature map).  Small everywhere else: batch=2, nc=3, ndf=8.
    key = jax.random.PRNGKey(0)
    k_x, k_p = jax.random.split(key)
    N, NC, NDF = 2, 3, 8
    x = jax.random.normal(k_x, (N, NC, 64, 64), jnp.float32)
    params = init_params(k_p, NC, NDF)

    out = jax.block_until_ready(jax.jit(discriminator_forward)(x, params))
    assert out.shape == (N, 1, 1, 1), out.shape
    assert bool(jnp.all((out >= 0.0) & (out <= 1.0)))
    assert bool(jnp.all(jnp.isfinite(out)))
    print("KERNEL_OK")
</pallas_src>

<mosaic_0001>
module attributes {stable_mosaic.version = 11 : i64} {
  func.func @_mm_act_kernel(%arg0: i32, %arg1: memref<512x128xbf16, #tpu.memory_space<vmem>>, %arg2: memref<128x128xbf16, #tpu.memory_space<vmem>>, %arg3: memref<512x128xbf16, #tpu.memory_space<vmem>>) attributes {dimension_semantics = [#tpu.dimension_semantics<parallel>], iteration_bounds = array<i64: 4>, scalar_prefetch = 0 : i64, scratch_operands = 0 : i64, tpu.core_type = #tpu.core_type<tc>, window_params = [{transform_indices = @transform_0, window_bounds = array<i64: 512, 128>}, {pipeline_mode = #tpu.pipeline_mode<synchronous>, transform_indices = @transform_1, window_bounds = array<i64: 128, 128>}, {transform_indices = @transform_2, window_bounds = array<i64: 512, 128>}]} {
    %c0 = arith.constant 0 : index
    %c0_0 = arith.constant 0 : index
    %0 = vector.load %arg1[%c0, %c0_0] : memref<512x128xbf16, #tpu.memory_space<vmem>>, vector<512x128xbf16>
    %c0_1 = arith.constant 0 : index
    %c0_2 = arith.constant 0 : index
    %1 = vector.load %arg2[%c0_1, %c0_2] : memref<128x128xbf16, #tpu.memory_space<vmem>>, vector<128x128xbf16>
    %cst = arith.constant dense<0.000000e+00> : vector<512x128xf32>
    %2 = tpu.matmul %0, %1, %cst {dimension_numbers = #tpu.dot_dimension_numbers<[1], [0], [0], [1], [0, 0, 1, 1], [], []>} : vector<512x128xbf16>, vector<128x128xbf16>, vector<512x128xf32> -> vector<512x128xf32>
    %cst_3 = arith.constant 0.000000e+00 : f32
    %3 = vector.broadcast %cst_3 : f32 to vector<512x128xf32>
    %4 = arith.cmpf ogt, %2, %3 : vector<512x128xf32>
    %cst_4 = arith.constant 2.000000e-01 : f32
    %5 = vector.broadcast %cst_4 : f32 to vector<512x128xf32>
    %6 = arith.mulf %5, %2 : vector<512x128xf32>
    %7 = arith.select %4, %2, %6 : vector<512x128xi1>, vector<512x128xf32>
    %8 = arith.truncf %7 : vector<512x128xf32> to vector<512x128xbf16>
    %c0_5 = arith.constant 0 : index
    %c0_6 = arith.constant 0 : index
    %9 = vector.load %arg3[%c0_5, %c0_6] : memref<512x128xbf16, #tpu.memory_space<vmem>>, vector<512x128xbf16>
    tpu.vector_store %arg3[%c0_5, %c0_6], %8 {strides = array<i32>} : memref<512x128xbf16, #tpu.memory_space<vmem>>, vector<512x128xbf16>,
    return
  }
  func.func @transform_0(%arg0: i32) -> (i32, i32) {
    %c0_i32 = arith.constant 0 : i32
    %c0_i32_0 = arith.constant 0 : i32
    return %arg0, %c0_i32 : i32, i32
  }
  func.func @transform_1(%arg0: i32) -> (i32, i32) {
    %c0_i32 = arith.constant 0 : i32
    %c0_i32_0 = arith.constant 0 : i32
    %c0_i32_1 = arith.constant 0 : i32
    return %c0_i32, %c0_i32_0 : i32, i32
  }
  func.func @transform_2(%arg0: i32) -> (i32, i32) {
    %c0_i32 = arith.constant 0 : i32
    %c0_i32_0 = arith.constant 0 : i32
    return %arg0, %c0_i32 : i32, i32
  }
}

module attributes {stable_mosaic.version = 11 : i64} {
  func.func @_mm_stats_kernel(%arg0: i32, %arg1: memref<512x128xbf16, #tpu.memory_space<vmem>>, %arg2: memref<128x128xbf16, #tpu.memory_space<vmem>>, %arg3: memref<512x128xf32, #tpu.memory_space<vmem>>, %arg4: memref<1x8x128xf32, #tpu.memory_space<vmem>>, %arg5: memref<1x8x128xf32, #tpu.memory_space<vmem>>) attributes {dimension_semantics = [#tpu.dimension_semantics<parallel>], iteration_bounds = array<i64: 1>, scalar_prefetch = 0 : i64, scratch_operands = 0 : i64, tpu.core_type = #tpu.core_type<tc>, window_params = [{transform_indices = @transform_0, window_bounds = array<i64: 512, 128>}, {pipeline_mode = #tpu.pipeline_mode<synchronous>, transform_indices = @transform_1, window_bounds = array<i64: 128, 128>}, {transform_indices = @transform_2, window_bounds = array<i64: 512, 128>}, {transform_indices = @transform_3, window_bounds = array<i64: 1, 8, 128>}, {transform_indices = @transform_4, window_bounds = array<i64: 1, 8, 128>}]} {
    %c0 = arith.constant 0 : index
    %c0_0 = arith.constant 0 : index
    %0 = vector.load %arg1[%c0, %c0_0] : memref<512x128xbf16, #tpu.memory_space<vmem>>, vector<512x128xbf16>
    %c0_1 = arith.constant 0 : index
    %c0_2 = arith.constant 0 : index
    %1 = vector.load %arg2[%c0_1, %c0_2] : memref<128x128xbf16, #tpu.memory_space<vmem>>, vector<128x128xbf16>
    %cst = arith.constant dense<0.000000e+00> : vector<512x128xf32>
    %2 = tpu.matmul %0, %1, %cst {dimension_numbers = #tpu.dot_dimension_numbers<[1], [0], [0], [1], [0, 0, 1, 1], [], []>} : vector<512x128xbf16>, vector<128x128xbf16>, vector<512x128xf32> -> vector<512x128xf32>
    %3 = vector.shape_cast %2 : vector<512x128xf32> to vector<64x8x128xf32>
    %cst_3 = arith.constant dense<0.000000e+00> : vector<8x128xf32>
    %4 = vector.multi_reduction <add>, %3, %cst_3 [0] : vector<64x8x128xf32> to vector<8x128xf32>
    %c0_4 = arith.constant 0 : index
    %c0_5 = arith.constant 0 : index
    %c0_6 = arith.constant 0 : index
    %5 = vector.load %arg4[%c0_4, %c0_5, %c0_6] : memref<1x8x128xf32, #tpu.memory_space<vmem>>, vector<1x8x128xf32>
    %6 = vector.shape_cast %5 : vector<1x8x128xf32> to vector<8x128xf32>
    %7 = vector.shape_cast %4 : vector<8x128xf32> to vector<1x8x128xf32>
    tpu.vector_store %arg4[%c0_4, %c0_5, %c0_6], %7 {strides = array<i32>} : memref<1x8x128xf32, #tpu.memory_space<vmem>>, vector<1x8x128xf32>,
    %8 = arith.mulf %3, %3 : vector<64x8x128xf32>
    %cst_7 = arith.constant dense<0.000000e+00> : vector<8x128xf32>
    %9 = vector.multi_reduction <add>, %8, %cst_7 [0] : vector<64x8x128xf32> to vector<8x128xf32>
    %c0_8 = arith.constant 0 : index
    %c0_9 = arith.constant 0 : index
    %c0_10 = arith.constant 0 : index
    %10 = vector.load %arg5[%c0_8, %c0_9, %c0_10] : memref<1x8x128xf32, #tpu.memory_space<vmem>>, vector<1x8x128xf32>
    %11 = vector.shape_cast %10 : vector<1x8x128xf32> to vector<8x128xf32>
    %12 = vector.shape_cast %9 : vector<8x128xf32> to vector<1x8x128xf32>
    tpu.vector_store %arg5[%c0_8, %c0_9, %c0_10], %12 {strides = array<i32>} : memref<1x8x128xf32, #tpu.memory_space<vmem>>, vector<1x8x128xf32>,
    %c0_11 = arith.constant 0 : index
    %c0_12 = arith.constant 0 : index
    %13 = vector.load %arg3[%c0_11, %c0_12] : memref<512x128xf32, #tpu.memory_space<vmem>>, vector<512x128xf32>
    tpu.vector_store %arg3[%c0_11, %c0_12], %2 {strides = array<i32>} : memref<512x128xf32, #tpu.memory_space<vmem>>, vector<512x128xf32>,
    return
  }
  func.func @transform_0(%arg0: i32) -> (i32, i32) {
    %c0_i32 = arith.constant 0 : i32
    %c0_i32_0 = arith.constant 0 : i32
    return %arg0, %c0_i32 : i32, i32
  }
  func.func @transform_1(%arg0: i32) -> (i32, i32) {
    %c0_i32 = arith.constant 0 : i32
    %c0_i32_0 = arith.constant 0 : i32
    %c0_i32_1 = arith.constant 0 : i32
    return %c0_i32, %c0_i32_0 : i32, i32
  }
  func.func @transform_2(%arg0: i32) -> (i32, i32) {
    %c0_i32 = arith.constant 0 : i32
    %c0_i32_0 = arith.constant 0 : i32
    return %arg0, %c0_i32 : i32, i32
  }
  func.func @transform_3(%arg0: i32) -> (i32, i32, i32) {
    %c0_i32 = arith.constant 0 : i32
    %c0_i32_0 = arith.constant 0 : i32
    %c0_i32_1 = arith.constant 0 : i32
    return %arg0, %c0_i32, %c0_i32_0 : i32, i32, i32
  }
  func.func @transform_4(%arg0: i32) -> (i32, i32, i32) {
    %c0_i32 = arith.constant 0 : i32
    %c0_i32_0 = arith.constant 0 : i32
    %c0_i32_1 = arith.constant 0 : i32
    return %arg0, %c0_i32, %c0_i32_0 : i32, i32, i32
  }
}

module attributes {stable_mosaic.version = 11 : i64} {
  func.func @_bn_act_kernel(%arg0: i32, %arg1: memref<512x128xf32, #tpu.memory_space<vmem>>, %arg2: memref<1x128xf32, #tpu.memory_space<vmem>>, %arg3: memref<1x128xf32, #tpu.memory_space<vmem>>, %arg4: memref<512x128xbf16, #tpu.memory_space<vmem>>) attributes {dimension_semantics = [#tpu.dimension_semantics<parallel>], iteration_bounds = array<i64: 1>, scalar_prefetch = 0 : i64, scratch_operands = 0 : i64, tpu.core_type = #tpu.core_type<tc>, window_params = [{transform_indices = @transform_0, window_bounds = array<i64: 512, 128>}, {pipeline_mode = #tpu.pipeline_mode<synchronous>, transform_indices = @transform_1, window_bounds = array<i64: 1, 128>}, {pipeline_mode = #tpu.pipeline_mode<synchronous>, transform_indices = @transform_2, window_bounds = array<i64: 1, 128>}, {transform_indices = @transform_3, window_bounds = array<i64: 512, 128>}]} {
    %c0 = arith.constant 0 : index
    %c0_0 = arith.constant 0 : index
    %0 = vector.load %arg1[%c0, %c0_0] : memref<512x128xf32, #tpu.memory_space<vmem>>, vector<512x128xf32>
    %c0_1 = arith.constant 0 : index
    %c0_2 = arith.constant 0 : index
    %1 = vector.load %arg2[%c0_1, %c0_2] : memref<1x128xf32, #tpu.memory_space<vmem>>, vector<1x128xf32>
    %2 = vector.broadcast %1 : vector<1x128xf32> to vector<512x128xf32>
    %3 = arith.mulf %0, %2 : vector<512x128xf32>
    %c0_3 = arith.constant 0 : index
    %c0_4 = arith.constant 0 : index
    %4 = vector.load %arg3[%c0_3, %c0_4] : memref<1x128xf32, #tpu.memory_space<vmem>>, vector<1x128xf32>
    %5 = vector.broadcast %4 : vector<1x128xf32> to vector<512x128xf32>
    %6 = arith.addf %3, %5 : vector<512x128xf32>
    %cst = arith.constant 0.000000e+00 : f32
    %7 = vector.broadcast %cst : f32 to vector<512x128xf32>
    %8 = arith.cmpf ogt, %6, %7 : vector<512x128xf32>
    %cst_5 = arith.constant 2.000000e-01 : f32
    %9 = vector.broadcast %cst_5 : f32 to vector<512x128xf32>
    %10 = arith.mulf %9, %6 : vector<512x128xf32>
    %11 = arith.select %8, %6, %10 : vector<512x128xi1>, vector<512x128xf32>
    %12 = arith.truncf %11 : vector<512x128xf32> to vector<512x128xbf16>
    %c0_6 = arith.constant 0 : index
    %c0_7 = arith.constant 0 : index
    %13 = vector.load %arg4[%c0_6, %c0_7] : memref<512x128xbf16, #tpu.memory_space<vmem>>, vector<512x128xbf16>
    tpu.vector_store %arg4[%c0_6, %c0_7], %12 {strides = array<i32>} : memref<512x128xbf16, #tpu.memory_space<vmem>>, vector<512x128xbf16>,
    return
  }
  func.func @transform_0(%arg0: i32) -> (i32, i32) {
    %c0_i32 = arith.constant 0 : i32
    %c0_i32_0 = arith.constant 0 : i32
    return %arg0, %c0_i32 : i32, i32
  }
  func.func @transform_1(%arg0: i32) -> (i32, i32) {
    %c0_i32 = arith.constant 0 : i32
    %c0_i32_0 = arith.constant 0 : i32
    %c0_i32_1 = arith.constant 0 : i32
    return %c0_i32, %c0_i32_0 : i32, i32
  }
  func.func @transform_2(%arg0: i32) -> (i32, i32) {
    %c0_i32 = arith.constant 0 : i32
    %c0_i32_0 = arith.constant 0 : i32
    %c0_i32_1 = arith.constant 0 : i32
    return %c0_i32, %c0_i32_0 : i32, i32
  }
  func.func @transform_3(%arg0: i32) -> (i32, i32) {
    %c0_i32 = arith.constant 0 : i32
    %c0_i32_0 = arith.constant 0 : i32
    return %arg0, %c0_i32 : i32, i32
  }
}

module attributes {stable_mosaic.version = 11 : i64} {
  func.func @_mm_stats_kernel(%arg0: i32, %arg1: memref<128x256xbf16, #tpu.memory_space<vmem>>, %arg2: memref<256x128xbf16, #tpu.memory_space<vmem>>, %arg3: memref<128x128xf32, #tpu.memory_space<vmem>>, %arg4: memref<1x8x128xf32, #tpu.memory_space<vmem>>, %arg5: memref<1x8x128xf32, #tpu.memory_space<vmem>>) attributes {dimension_semantics = [#tpu.dimension_semantics<parallel>], iteration_bounds = array<i64: 1>, scalar_prefetch = 0 : i64, scratch_operands = 0 : i64, tpu.core_type = #tpu.core_type<tc>, window_params = [{transform_indices = @transform_0, window_bounds = array<i64: 128, 256>}, {pipeline_mode = #tpu.pipeline_mode<synchronous>, transform_indices = @transform_1, window_bounds = array<i64: 256, 128>}, {transform_indices = @transform_2, window_bounds = array<i64: 128, 128>}, {transform_indices = @transform_3, window_bounds = array<i64: 1, 8, 128>}, {transform_indices = @transform_4, window_bounds = array<i64: 1, 8, 128>}]} {
    %c0 = arith.constant 0 : index
    %c0_0 = arith.constant 0 : index
    %0 = vector.load %arg1[%c0, %c0_0] : memref<128x256xbf16, #tpu.memory_space<vmem>>, vector<128x256xbf16>
    %c0_1 = arith.constant 0 : index
    %c0_2 = arith.constant 0 : index
    %1 = vector.load %arg2[%c0_1, %c0_2] : memref<256x128xbf16, #tpu.memory_space<vmem>>, vector<256x128xbf16>
    %cst = arith.constant dense<0.000000e+00> : vector<128x128xf32>
    %2 = tpu.matmul %0, %1, %cst {dimension_numbers = #tpu.dot_dimension_numbers<[1], [0], [0], [1], [0, 0, 1, 1], [], []>} : vector<128x256xbf16>, vector<256x128xbf16>, vector<128x128xf32> -> vector<128x128xf32>
    %3 = vector.shape_cast %2 : vector<128x128xf32> to vector<16x8x128xf32>
    %cst_3 = arith.constant dense<0.000000e+00> : vector<8x128xf32>
    %4 = vector.multi_reduction <add>, %3, %cst_3 [0] : vector<16x8x128xf32> to vector<8x128xf32>
    %c0_4 = arith.constant 0 : index
    %c0_5 = arith.constant 0 : index
    %c0_6 = arith.constant 0 : index
    %5 = vector.load %arg4[%c0_4, %c0_5, %c0_6] : memref<1x8x128xf32, #tpu.memory_space<vmem>>, vector<1x8x128xf32>
    %6 = vector.shape_cast %5 : vector<1x8x128xf32> to vector<8x128xf32>
    %7 = vector.shape_cast %4 : vector<8x128xf32> to vector<1x8x128xf32>
    tpu.vector_store %arg4[%c0_4, %c0_5, %c0_6], %7 {strides = array<i32>} : memref<1x8x128xf32, #tpu.memory_space<vmem>>, vector<1x8x128xf32>,
    %8 = arith.mulf %3, %3 : vector<16x8x128xf32>
    %cst_7 = arith.constant dense<0.000000e+00> : vector<8x128xf32>
    %9 = vector.multi_reduction <add>, %8, %cst_7 [0] : vector<16x8x128xf32> to vector<8x128xf32>
    %c0_8 = arith.constant 0 : index
    %c0_9 = arith.constant 0 : index
    %c0_10 = arith.constant 0 : index
    %10 = vector.load %arg5[%c0_8, %c0_9, %c0_10] : memref<1x8x128xf32, #tpu.memory_space<vmem>>, vector<1x8x128xf32>
    %11 = vector.shape_cast %10 : vector<1x8x128xf32> to vector<8x128xf32>
    %12 = vector.shape_cast %9 : vector<8x128xf32> to vector<1x8x128xf32>
    tpu.vector_store %arg5[%c0_8, %c0_9, %c0_10], %12 {strides = array<i32>} : memref<1x8x128xf32, #tpu.memory_space<vmem>>, vector<1x8x128xf32>,
    %c0_11 = arith.constant 0 : index
    %c0_12 = arith.constant 0 : index
    %13 = vector.load %arg3[%c0_11, %c0_12] : memref<128x128xf32, #tpu.memory_space<vmem>>, vector<128x128xf32>
    tpu.vector_store %arg3[%c0_11, %c0_12], %2 {strides = array<i32>} : memref<128x128xf32, #tpu.memory_space<vmem>>, vector<128x128xf32>,
    return
  }
  func.func @transform_0(%arg0: i32) -> (i32, i32) {
    %c0_i32 = arith.constant 0 : i32
    %c0_i32_0 = arith.constant 0 : i32
    return %arg0, %c0_i32 : i32, i32
  }
  func.func @transform_1(%arg0: i32) -> (i32, i32) {
    %c0_i32 = arith.constant 0 : i32
    %c0_i32_0 = arith.constant 0 : i32
    %c0_i32_1 = arith.constant 0 : i32
    return %c0_i32, %c0_i32_0 : i32, i32
  }
  func.func @transform_2(%arg0: i32) -> (i32, i32) {
    %c0_i32 = arith.constant 0 : i32
    %c0_i32_0 = arith.constant 0 : i32
    return %arg0, %c0_i32 : i32, i32
  }
  func.func @transform_3(%arg0: i32) -> (i32, i32, i32) {
    %c0_i32 = arith.constant 0 : i32
    %c0_i32_0 = arith.constant 0 : i32
    %c0_i32_1 = arith.constant 0 : i32
    return %arg0, %c0_i32, %c0_i32_0 : i32, i32, i32
  }
  func.func @transform_4(%arg0: i32) -> (i32, i32, i32) {
    %c0_i32 = arith.constant 0 : i32
    %c0_i32_0 = arith.constant 0 : i32
    %c0_i32_1 = arith.constant 0 : i32
    return %arg0, %c0_i32, %c0_i32_0 : i32, i32, i32
  }
}

module attributes {stable_mosaic.version = 11 : i64} {
  func.func @_bn_act_kernel(%arg0: i32, %arg1: memref<128x128xf32, #tpu.memory_space<vmem>>, %arg2: memref<1x128xf32, #tpu.memory_space<vmem>>, %arg3: memref<1x128xf32, #tpu.memory_space<vmem>>, %arg4: memref<128x128xbf16, #tpu.memory_space<vmem>>) attributes {dimension_semantics = [#tpu.dimension_semantics<parallel>], iteration_bounds = array<i64: 1>, scalar_prefetch = 0 : i64, scratch_operands = 0 : i64, tpu.core_type = #tpu.core_type<tc>, window_params = [{transform_indices = @transform_0, window_bounds = array<i64: 128, 128>}, {pipeline_mode = #tpu.pipeline_mode<synchronous>, transform_indices = @transform_1, window_bounds = array<i64: 1, 128>}, {pipeline_mode = #tpu.pipeline_mode<synchronous>, transform_indices = @transform_2, window_bounds = array<i64: 1, 128>}, {transform_indices = @transform_3, window_bounds = array<i64: 128, 128>}]} {
    %c0 = arith.constant 0 : index
    %c0_0 = arith.constant 0 : index
    %0 = vector.load %arg1[%c0, %c0_0] : memref<128x128xf32, #tpu.memory_space<vmem>>, vector<128x128xf32>
    %c0_1 = arith.constant 0 : index
    %c0_2 = arith.constant 0 : index
    %1 = vector.load %arg2[%c0_1, %c0_2] : memref<1x128xf32, #tpu.memory_space<vmem>>, vector<1x128xf32>
    %2 = vector.broadcast %1 : vector<1x128xf32> to vector<128x128xf32>
    %3 = arith.mulf %0, %2 : vector<128x128xf32>
    %c0_3 = arith.constant 0 : index
    %c0_4 = arith.constant 0 : index
    %4 = vector.load %arg3[%c0_3, %c0_4] : memref<1x128xf32, #tpu.memory_space<vmem>>, vector<1x128xf32>
    %5 = vector.broadcast %4 : vector<1x128xf32> to vector<128x128xf32>
    %6 = arith.addf %3, %5 : vector<128x128xf32>
    %cst = arith.constant 0.000000e+00 : f32
    %7 = vector.broadcast %cst : f32 to vector<128x128xf32>
    %8 = arith.cmpf ogt, %6, %7 : vector<128x128xf32>
    %cst_5 = arith.constant 2.000000e-01 : f32
    %9 = vector.broadcast %cst_5 : f32 to vector<128x128xf32>
    %10 = arith.mulf %9, %6 : vector<128x128xf32>
    %11 = arith.select %8, %6, %10 : vector<128x128xi1>, vector<128x128xf32>
    %12 = arith.truncf %11 : vector<128x128xf32> to vector<128x128xbf16>
    %c0_6 = arith.constant 0 : index
    %c0_7 = arith.constant 0 : index
    %13 = vector.load %arg4[%c0_6, %c0_7] : memref<128x128xbf16, #tpu.memory_space<vmem>>, vector<128x128xbf16>
    tpu.vector_store %arg4[%c0_6, %c0_7], %12 {strides = array<i32>} : memref<128x128xbf16, #tpu.memory_space<vmem>>, vector<128x128xbf16>,
    return
  }
  func.func @transform_0(%arg0: i32) -> (i32, i32) {
    %c0_i32 = arith.constant 0 : i32
    %c0_i32_0 = arith.constant 0 : i32
    return %arg0, %c0_i32 : i32, i32
  }
  func.func @transform_1(%arg0: i32) -> (i32, i32) {
    %c0_i32 = arith.constant 0 : i32
    %c0_i32_0 = arith.constant 0 : i32
    %c0_i32_1 = arith.constant 0 : i32
    return %c0_i32, %c0_i32_0 : i32, i32
  }
  func.func @transform_2(%arg0: i32) -> (i32, i32) {
    %c0_i32 = arith.constant 0 : i32
    %c0_i32_0 = arith.constant 0 : i32
    %c0_i32_1 = arith.constant 0 : i32
    return %c0_i32, %c0_i32_0 : i32, i32
  }
  func.func @transform_3(%arg0: i32) -> (i32, i32) {
    %c0_i32 = arith.constant 0 : i32
    %c0_i32_0 = arith.constant 0 : i32
    return %arg0, %c0_i32 : i32, i32
  }
}

module attributes {stable_mosaic.version = 11 : i64} {
  func.func @_mm_stats_kernel(%arg0: i32, %arg1: memref<32x512xbf16, #tpu.memory_space<vmem>>, %arg2: memref<512x128xbf16, #tpu.memory_space<vmem>>, %arg3: memref<32x128xf32, #tpu.memory_space<vmem>>, %arg4: memref<1x8x128xf32, #tpu.memory_space<vmem>>, %arg5: memref<1x8x128xf32, #tpu.memory_space<vmem>>) attributes {dimension_semantics = [#tpu.dimension_semantics<parallel>], iteration_bounds = array<i64: 1>, scalar_prefetch = 0 : i64, scratch_operands = 0 : i64, tpu.core_type = #tpu.core_type<tc>, window_params = [{transform_indices = @transform_0, window_bounds = array<i64: 32, 512>}, {pipeline_mode = #tpu.pipeline_mode<synchronous>, transform_indices = @transform_1, window_bounds = array<i64: 512, 128>}, {transform_indices = @transform_2, window_bounds = array<i64: 32, 128>}, {transform_indices = @transform_3, window_bounds = array<i64: 1, 8, 128>}, {transform_indices = @transform_4, window_bounds = array<i64: 1, 8, 128>}]} {
    %c0 = arith.constant 0 : index
    %c0_0 = arith.constant 0 : index
    %0 = vector.load %arg1[%c0, %c0_0] : memref<32x512xbf16, #tpu.memory_space<vmem>>, vector<32x512xbf16>
    %c0_1 = arith.constant 0 : index
    %c0_2 = arith.constant 0 : index
    %1 = vector.load %arg2[%c0_1, %c0_2] : memref<512x128xbf16, #tpu.memory_space<vmem>>, vector<512x128xbf16>
    %cst = arith.constant dense<0.000000e+00> : vector<32x128xf32>
    %2 = tpu.matmul %0, %1, %cst {dimension_numbers = #tpu.dot_dimension_numbers<[1], [0], [0], [1], [0, 0, 1, 1], [], []>} : vector<32x512xbf16>, vector<512x128xbf16>, vector<32x128xf32> -> vector<32x128xf32>
    %3 = vector.shape_cast %2 : vector<32x128xf32> to vector<4x8x128xf32>
    %cst_3 = arith.constant dense<0.000000e+00> : vector<8x128xf32>
    %4 = vector.multi_reduction <add>, %3, %cst_3 [0] : vector<4x8x128xf32> to vector<8x128xf32>
    %c0_4 = arith.constant 0 : index
    %c0_5 = arith.constant 0 : index
    %c0_6 = arith.constant 0 : index
    %5 = vector.load %arg4[%c0_4, %c0_5, %c0_6] : memref<1x8x128xf32, #tpu.memory_space<vmem>>, vector<1x8x128xf32>
    %6 = vector.shape_cast %5 : vector<1x8x128xf32> to vector<8x128xf32>
    %7 = vector.shape_cast %4 : vector<8x128xf32> to vector<1x8x128xf32>
    tpu.vector_store %arg4[%c0_4, %c0_5, %c0_6], %7 {strides = array<i32>} : memref<1x8x128xf32, #tpu.memory_space<vmem>>, vector<1x8x128xf32>,
    %8 = arith.mulf %3, %3 : vector<4x8x128xf32>
    %cst_7 = arith.constant dense<0.000000e+00> : vector<8x128xf32>
    %9 = vector.multi_reduction <add>, %8, %cst_7 [0] : vector<4x8x128xf32> to vector<8x128xf32>
    %c0_8 = arith.constant 0 : index
    %c0_9 = arith.constant 0 : index
    %c0_10 = arith.constant 0 : index
    %10 = vector.load %arg5[%c0_8, %c0_9, %c0_10] : memref<1x8x128xf32, #tpu.memory_space<vmem>>, vector<1x8x128xf32>
    %11 = vector.shape_cast %10 : vector<1x8x128xf32> to vector<8x128xf32>
    %12 = vector.shape_cast %9 : vector<8x128xf32> to vector<1x8x128xf32>
    tpu.vector_store %arg5[%c0_8, %c0_9, %c0_10], %12 {strides = array<i32>} : memref<1x8x128xf32, #tpu.memory_space<vmem>>, vector<1x8x128xf32>,
    %c0_11 = arith.constant 0 : index
    %c0_12 = arith.constant 0 : index
    %13 = vector.load %arg3[%c0_11, %c0_12] : memref<32x128xf32, #tpu.memory_space<vmem>>, vector<32x128xf32>
    tpu.vector_store %arg3[%c0_11, %c0_12], %2 {strides = array<i32>} : memref<32x128xf32, #tpu.memory_space<vmem>>, vector<32x128xf32>,
    return
  }
  func.func @transform_0(%arg0: i32) -> (i32, i32) {
    %c0_i32 = arith.constant 0 : i32
    %c0_i32_0 = arith.constant 0 : i32
    return %arg0, %c0_i32 : i32, i32
  }
  func.func @transform_1(%arg0: i32) -> (i32, i32) {
    %c0_i32 = arith.constant 0 : i32
    %c0_i32_0 = arith.constant 0 : i32
    %c0_i32_1 = arith.constant 0 : i32
    return %c0_i32, %c0_i32_0 : i32, i32
  }
  func.func @transform_2(%arg0: i32) -> (i32, i32) {
    %c0_i32 = arith.constant 0 : i32
    %c0_i32_0 = arith.constant 0 : i32
    return %arg0, %c0_i32 : i32, i32
  }
  func.func @transform_3(%arg0: i32) -> (i32, i32, i32) {
    %c0_i32 = arith.constant 0 : i32
    %c0_i32_0 = arith.constant 0 : i32
    %c0_i32_1 = arith.constant 0 : i32
    return %arg0, %c0_i32, %c0_i32_0 : i32, i32, i32
  }
  func.func @transform_4(%arg0: i32) -> (i32, i32, i32) {
    %c0_i32 = arith.constant 0 : i32
    %c0_i32_0 = arith.constant 0 : i32
    %c0_i32_1 = arith.constant 0 : i32
    return %arg0, %c0_i32, %c0_i32_0 : i32, i32, i32
  }
}

module attributes {stable_mosaic.version = 11 : i64} {
  func.func @_bn_act_kernel(%arg0: i32, %arg1: memref<32x128xf32, #tpu.memory_space<vmem>>, %arg2: memref<1x128xf32, #tpu.memory_space<vmem>>, %arg3: memref<1x128xf32, #tpu.memory_space<vmem>>, %arg4: memref<32x128xbf16, #tpu.memory_space<vmem>>) attributes {dimension_semantics = [#tpu.dimension_semantics<parallel>], iteration_bounds = array<i64: 1>, scalar_prefetch = 0 : i64, scratch_operands = 0 : i64, tpu.core_type = #tpu.core_type<tc>, window_params = [{transform_indices = @transform_0, window_bounds = array<i64: 32, 128>}, {pipeline_mode = #tpu.pipeline_mode<synchronous>, transform_indices = @transform_1, window_bounds = array<i64: 1, 128>}, {pipeline_mode = #tpu.pipeline_mode<synchronous>, transform_indices = @transform_2, window_bounds = array<i64: 1, 128>}, {transform_indices = @transform_3, window_bounds = array<i64: 32, 128>}]} {
    %c0 = arith.constant 0 : index
    %c0_0 = arith.constant 0 : index
    %0 = vector.load %arg1[%c0, %c0_0] : memref<32x128xf32, #tpu.memory_space<vmem>>, vector<32x128xf32>
    %c0_1 = arith.constant 0 : index
    %c0_2 = arith.constant 0 : index
    %1 = vector.load %arg2[%c0_1, %c0_2] : memref<1x128xf32, #tpu.memory_space<vmem>>, vector<1x128xf32>
    %2 = vector.broadcast %1 : vector<1x128xf32> to vector<32x128xf32>
    %3 = arith.mulf %0, %2 : vector<32x128xf32>
    %c0_3 = arith.constant 0 : index
    %c0_4 = arith.constant 0 : index
    %4 = vector.load %arg3[%c0_3, %c0_4] : memref<1x128xf32, #tpu.memory_space<vmem>>, vector<1x128xf32>
    %5 = vector.broadcast %4 : vector<1x128xf32> to vector<32x128xf32>
    %6 = arith.addf %3, %5 : vector<32x128xf32>
    %cst = arith.constant 0.000000e+00 : f32
    %7 = vector.broadcast %cst : f32 to vector<32x128xf32>
    %8 = arith.cmpf ogt, %6, %7 : vector<32x128xf32>
    %cst_5 = arith.constant 2.000000e-01 : f32
    %9 = vector.broadcast %cst_5 : f32 to vector<32x128xf32>
    %10 = arith.mulf %9, %6 : vector<32x128xf32>
    %11 = arith.select %8, %6, %10 : vector<32x128xi1>, vector<32x128xf32>
    %12 = arith.truncf %11 : vector<32x128xf32> to vector<32x128xbf16>
    %c0_6 = arith.constant 0 : index
    %c0_7 = arith.constant 0 : index
    %13 = vector.load %arg4[%c0_6, %c0_7] : memref<32x128xbf16, #tpu.memory_space<vmem>>, vector<32x128xbf16>
    tpu.vector_store %arg4[%c0_6, %c0_7], %12 {strides = array<i32>} : memref<32x128xbf16, #tpu.memory_space<vmem>>, vector<32x128xbf16>,
    return
  }
  func.func @transform_0(%arg0: i32) -> (i32, i32) {
    %c0_i32 = arith.constant 0 : i32
    %c0_i32_0 = arith.constant 0 : i32
    return %arg0, %c0_i32 : i32, i32
  }
  func.func @transform_1(%arg0: i32) -> (i32, i32) {
    %c0_i32 = arith.constant 0 : i32
    %c0_i32_0 = arith.constant 0 : i32
    %c0_i32_1 = arith.constant 0 : i32
    return %c0_i32, %c0_i32_0 : i32, i32
  }
  func.func @transform_2(%arg0: i32) -> (i32, i32) {
    %c0_i32 = arith.constant 0 : i32
    %c0_i32_0 = arith.constant 0 : i32
    %c0_i32_1 = arith.constant 0 : i32
    return %c0_i32, %c0_i32_0 : i32, i32
  }
  func.func @transform_3(%arg0: i32) -> (i32, i32) {
    %c0_i32 = arith.constant 0 : i32
    %c0_i32_0 = arith.constant 0 : i32
    return %arg0, %c0_i32 : i32, i32
  }
}

module attributes {stable_mosaic.version = 11 : i64} {
  func.func @_mm_act_kernel(%arg0: i32, %arg1: memref<8x1024xbf16, #tpu.memory_space<vmem>>, %arg2: memref<1024x128xbf16, #tpu.memory_space<vmem>>, %arg3: memref<8x128xf32, #tpu.memory_space<vmem>>) attributes {dimension_semantics = [#tpu.dimension_semantics<parallel>], iteration_bounds = array<i64: 1>, scalar_prefetch = 0 : i64, scratch_operands = 0 : i64, tpu.core_type = #tpu.core_type<tc>, window_params = [{transform_indices = @transform_0, window_bounds = array<i64: 8, 1024>}, {pipeline_mode = #tpu.pipeline_mode<synchronous>, transform_indices = @transform_1, window_bounds = array<i64: 1024, 128>}, {transform_indices = @transform_2, window_bounds = array<i64: 8, 128>}]} {
    %c0 = arith.constant 0 : index
    %c0_0 = arith.constant 0 : index
    %0 = vector.load %arg1[%c0, %c0_0] : memref<8x1024xbf16, #tpu.memory_space<vmem>>, vector<8x1024xbf16>
    %c0_1 = arith.constant 0 : index
    %c0_2 = arith.constant 0 : index
    %1 = vector.load %arg2[%c0_1, %c0_2] : memref<1024x128xbf16, #tpu.memory_space<vmem>>, vector<1024x128xbf16>
    %cst = arith.constant dense<0.000000e+00> : vector<8x128xf32>
    %2 = tpu.matmul %0, %1, %cst {dimension_numbers = #tpu.dot_dimension_numbers<[1], [0], [0], [1], [0, 0, 1, 1], [], []>} : vector<8x1024xbf16>, vector<1024x128xbf16>, vector<8x128xf32> -> vector<8x128xf32>
    %3 = math.absf %2 : vector<8x128xf32>
    %cst_3 = arith.constant 0.000000e+00 : f32
    %4 = vector.broadcast %cst_3 : f32 to vector<8x128xf32>
    %5 = arith.subf %4, %3 : vector<8x128xf32>
    %6 = math.exp %5 : vector<8x128xf32>
    %cst_4 = arith.constant 0.000000e+00 : f32
    %7 = vector.broadcast %cst_4 : f32 to vector<8x128xf32>
    %8 = arith.cmpf oge, %2, %7 : vector<8x128xf32>
    %cst_5 = arith.constant 1.000000e+00 : f32
    %9 = vector.broadcast %cst_5 : f32 to vector<8x128xf32>
    %10 = arith.addf %9, %6 : vector<8x128xf32>
    %cst_6 = arith.constant 1.000000e+00 : f32
    %11 = vector.broadcast %cst_6 : f32 to vector<8x128xf32>
    %12 = arith.divf %11, %10 : vector<8x128xf32>
    %cst_7 = arith.constant 1.000000e+00 : f32
    %13 = vector.broadcast %cst_7 : f32 to vector<8x128xf32>
    %14 = arith.addf %13, %6 : vector<8x128xf32>
    %15 = arith.divf %6, %14 : vector<8x128xf32>
    %16 = arith.select %8, %12, %15 : vector<8x128xi1>, vector<8x128xf32>
    %c0_8 = arith.constant 0 : index
    %c0_9 = arith.constant 0 : index
    %17 = vector.load %arg3[%c0_8, %c0_9] : memref<8x128xf32, #tpu.memory_space<vmem>>, vector<8x128xf32>
    tpu.vector_store %arg3[%c0_8, %c0_9], %16 {strides = array<i32>} : memref<8x128xf32, #tpu.memory_space<vmem>>, vector<8x128xf32>,
    return
  }
  func.func @transform_0(%arg0: i32) -> (i32, i32) {
    %c0_i32 = arith.constant 0 : i32
    %c0_i32_0 = arith.constant 0 : i32
    return %arg0, %c0_i32 : i32, i32
  }
  func.func @transform_1(%arg0: i32) -> (i32, i32) {
    %c0_i32 = arith.constant 0 : i32
    %c0_i32_0 = arith.constant 0 : i32
    %c0_i32_1 = arith.constant 0 : i32
    return %c0_i32, %c0_i32_0 : i32, i32
  }
  func.func @transform_2(%arg0: i32) -> (i32, i32) {
    %c0_i32 = arith.constant 0 : i32
    %c0_i32_0 = arith.constant 0 : i32
    return %arg0, %c0_i32 : i32, i32
  }
}

</mosaic_0001>

<llo_original>
// kernel: discriminator_forward.8
$region0: #{discriminator_forward.8}
  #allocation0 [shape = 'u32[]', space=smem, size = 0x4, offset = 0x4, fixed_abs, tag = 'smem constant byte address 0x4 - core index']
  #allocation1 [shape = 'u32[144,128]{1,0:T(1,128)}', space=vmem, size = 0x12000, scoped, tag = 'internal scratch']
  %s0 = inlined_call_operand.vmem [shape: bf16[2048,128], index: 0, kind: input, shape index: {}]
  %s1 = inlined_call_operand.vmem [shape: bf16[128,128], index: 1, kind: input, shape index: {}]
  %s2 = inlined_call_operand.vmem [shape: bf16[2048,128], index: 2, kind: output, shape index: {}]
  %s3 = sld [smem:[#allocation0]]
  $region41: #{discriminator_forward.8} parent=0
    _
  %s5 = ssub.s32 1, %s3
  %s6 = scalar_select 0, %s5, %s3
  loop: start=0, step=1, limit=6
  $region2: #{discriminator_forward.8} parent=0 // loop_pre_header
    _
  $region3: #{discriminator_forward.8} parent=0 // loop_header
    %s8 = sphi 0, %s12
    %p9 = scmp.ge.s32.totalorder %s8, 6
    %s18 = sphi 0, %s20
    %s21 = sphi 0, %s18
    %s22 = sphi 0, %s21
    %s38 = sphi 0, %s22
    %s42 = sphi 0, %s42
    %s44 = sphi 0, %s42
    %s45 = sphi 0, %s44
    %s59 = sphi 0, %s45
    %s65 = sphi 0, %s67
    %s68 = sphi 0, %s65
    %s69 = sphi 0, %s68
    %s85 = sphi 0, %s69
  $region4: #{discriminator_forward.8} parent=0 // loop_header_branch
    %11 = sbr.rel (%p9) target = $region8
  $region5: #{discriminator_forward.8} parent=0 // loop_body
    %s13 = ssub.s32 %s8, 1
    %s14 = ssub.s32 %s8, 2
    %s15 = sadd.s32 %s8, 1
    %s16 = ssub.s32 %s8, %s15
    %p17 = scmp.eq.s32.totalorder %s16, 0
    %s19 = sadd.s32 %s18, 1
    %s20 = scalar_select %p17, %s18, %s19
    %p23 = pneg %p17
    %p24 = scmp.eq.s32.totalorder %s8, 3
    %p25 = por %p23, %p24
    %p26 = scmp.ne.s32.totalorder %s18, %s21
    %p27 = scmp.eq.s32.totalorder %s8, 0
    %p28 = por %p26, %p27
    %p29 = scmp.ne.s32.totalorder %s18, %s21
    %p30 = scmp.eq.s32.totalorder %s13, 3
    %p31 = por %p29, %p30
    %p32 = scmp.ne.s32.totalorder %s21, %s22
    %p33 = scmp.eq.s32.totalorder %s13, 0
    %p34 = por %p32, %p33
    %p35 = scmp.ne.s32.totalorder %s21, %s22
    %p36 = scmp.eq.s32.totalorder %s14, 3
    %p37 = por %p35, %p36
    %p39 = scmp.ne.s32.totalorder %s22, %s38
    %p40 = scmp.eq.s32.totalorder %s14, 0
    %p41 = por %p39, %p40
    %s43 = sadd.s32 %s42, 1
    %p46 = scmp.eq.s32.totalorder %s8, 3
    %p47 = scmp.ne.s32.totalorder %s42, %s44
    %p48 = scmp.eq.s32.totalorder %s8, 0
    %p49 = por %p47, %p48
    %p50 = scmp.ne.s32.totalorder %s42, %s44
    %p51 = scmp.eq.s32.totalorder %s13, 3
    %p52 = por %p50, %p51
    %p53 = scmp.ne.s32.totalorder %s44, %s45
    %p54 = scmp.eq.s32.totalorder %s13, 0
    %p55 = por %p53, %p54
    %p56 = scmp.ne.s32.totalorder %s44, %s45
    %p57 = scmp.eq.s32.totalorder %s14, 3
    %p58 = por %p56, %p57
    %p60 = scmp.ne.s32.totalorder %s45, %s59
    %p61 = scmp.eq.s32.totalorder %s14, 0
    %p62 = por %p60, %p61
    %s63 = ssub.s32 %s8, %s15
    %p64 = scmp.eq.s32.totalorder %s63, 0
    %s66 = sadd.s32 %s65, 1
    %s67 = scalar_select %p64, %s65, %s66
    %p70 = pneg %p64
    %p71 = scmp.eq.s32.totalorder %s8, 3
    %p72 = por %p70, %p71
    %p73 = scmp.ne.s32.totalorder %s65, %s68
    %p74 = scmp.eq.s32.totalorder %s8, 0
    %p75 = por %p73, %p74
    %p76 = scmp.ne.s32.totalorder %s65, %s68
    %p77 = scmp.eq.s32.totalorder %s13, 3
    %p78 = por %p76, %p77
    %p79 = scmp.ne.s32.totalorder %s68, %s69
    %p80 = scmp.eq.s32.totalorder %s13, 0
    %p81 = por %p79, %p80
    %p82 = scmp.ne.s32.totalorder %s68, %s69
    %p83 = scmp.eq.s32.totalorder %s14, 3
    %p84 = por %p82, %p83
    %p86 = scmp.ne.s32.totalorder %s69, %s85
    %p87 = scmp.eq.s32.totalorder %s14, 0
    %p88 = por %p86, %p87
    %p89 = scmp.le.s32.totalorder 1, %s8
    %p90 = scmp.lt.s32.totalorder %s8, 5
    %p91 = pnand %p89, %p90
    %p92 = pneg %p91
    // Predicated region
    $region9: #{discriminator_forward.8} parent=5 // pred_check
      _
    $region10: #{discriminator_forward.8} parent=5 // pred_check_branch
      %94 = sbr.rel (%p91) target = $region12
    $region11: #{discriminator_forward.8} parent=5 // pred_region
      %s95 = ssub.s32 %s8, 1
      // Predicated region
      $region13: #{discriminator_forward.8} parent=11 // pred_check
        %p96 = pneg %p55
      $region14: #{discriminator_forward.8} parent=11 // pred_check_branch
        %98 = sbr.rel (%p96) target = $region16
      $region15: #{discriminator_forward.8} parent=11 // pred_region
        _
      $region16: #{discriminator_forward.8} parent=11 // pred_fallthru
        _
    $region12: #{discriminator_forward.8} parent=5 // pred_fallthru
      _
    %p99 = scmp.lt.s32.totalorder %s8, 4
    // Predicated region
    $region17: #{discriminator_forward.8} parent=5 // pred_check
      %p100 = pneg %p99
    $region18: #{discriminator_forward.8} parent=5 // pred_check_branch
      %102 = sbr.rel (%p100) target = $region20
    $region19: #{discriminator_forward.8} parent=5 // pred_region
      // Predicated region
      $region21: #{discriminator_forward.8} parent=19 // pred_check
        %p103 = pneg %p28
      $region22: #{discriminator_forward.8} parent=19 // pred_check_branch
        %105 = sbr.rel (%p103) target = $region24
      $region23: #{discriminator_forward.8} parent=19 // pred_region
        %s106 = smul.u32 64, %s8
        %p107 = scmp.lt.s32.totalorder %s106, 255
        %s108 = scalar_select %p107, %s106, 255
        %s109 = smul.addr %s108, 4
        %s110 = scalar_lea.vmem %s0, %s109
        %s111 = smul.u32 64, %s8
      $region24: #{discriminator_forward.8} parent=19 // pred_fallthru
        _
    $region20: #{discriminator_forward.8} parent=5 // pred_fallthru
      _
    %p112 = scmp.le.s32.totalorder 1, %s8
    %p113 = scmp.lt.s32.totalorder %s8, 5
    %p114 = pnand %p112, %p113
    %p115 = pneg %p114
    // Predicated region
    $region25: #{discriminator_forward.8} parent=5 // pred_check
      _
    $region26: #{discriminator_forward.8} parent=5 // pred_check_branch
      %117 = sbr.rel (%p114) target = $region28
    $region27: #{discriminator_forward.8} parent=5 // pred_region
      %s118 = ssub.s32 %s8, 1
      %s119 = smul.u32 64, %s13
      %p120 = scmp.lt.s32.totalorder %s119, 255
      %s121 = scalar_select %p120, %s119, 255
      %s122 = smul.addr %s121, 4
      %s123 = scalar_lea.vmem %s0, %s122
      %p124 = pneg %p34
      %p125 = pneg %p31
      %p126 = pneg %p55
      %p127 = pneg %p52
      %p128 = pneg %p81
      %p129 = pneg %p78
      %s130 = smul.u32 64, %s13
      %p131 = scmp.lt.s32.totalorder %s130, 255
      %s132 = scalar_select %p131, %s130, 255
      %s133 = smul.addr %s132, 4
      %s134 = scalar_lea.vmem %s2, %s133
      %s135 = smul.u32 64, %s13
      %p136 = scmp.lt.s32.totalorder %s135, 255
      %s137 = scalar_select %p136, %s135, 255
      %s138 = smul.addr %s137, 4
      %s139 = scalar_lea.vmem %s0, %s138
      %s140 = smul.u32 64, %s13
      %s141 = smul.u32 64, %s13
      %p142 = scmp.lt.s32.totalorder %s141, 255
      %s143 = scalar_select %p142, %s141, 255
      %s144 = smul.addr %s143, 4
      %s145 = scalar_lea.vmem %s2, %s144
      %s146 = smul.u32 64, %s13
      %v148 = vld [vmem:[%s139] sm:$0xf]
      %v149 = vld [vmem:[%s139 + $0x4] sm:$0xf]
      %v150 = vld [vmem:[%s139 + $0x8] sm:$0xf]
      %v151 = vld [vmem:[%s139 + $0xc] sm:$0xf]
      %v152 = vld [vmem:[%s139 + $0x10] sm:$0xf]
      %v153 = vld [vmem:[%s139 + $0x14] sm:$0xf]
      %v154 = vld [vmem:[%s139 + $0x18] sm:$0xf]
      %v155 = vld [vmem:[%s139 + $0x1c] sm:$0xf]
      %v156 = vld [vmem:[%s139 + $0x20] sm:$0xf]
      %v157 = vld [vmem:[%s139 + $0x24] sm:$0xf]
      %v158 = vld [vmem:[%s139 + $0x28] sm:$0xf]
      %v159 = vld [vmem:[%s139 + $0x2c] sm:$0xf]
      %v160 = vld [vmem:[%s139 + $0x30] sm:$0xf]
      %v161 = vld [vmem:[%s139 + $0x34] sm:$0xf]
      %v162 = vld [vmem:[%s139 + $0x38] sm:$0xf]
      %v163 = vld [vmem:[%s139 + $0x3c] sm:$0xf]
      %v164 = vld [vmem:[%s139 + $0x40] sm:$0xf]
      %v165 = vld [vmem:[%s139 + $0x44] sm:$0xf]
      %v166 = vld [vmem:[%s139 + $0x48] sm:$0xf]
      %v167 = vld [vmem:[%s139 + $0x4c] sm:$0xf]
      %v168 = vld [vmem:[%s139 + $0x50] sm:$0xf]
      %v169 = vld [vmem:[%s139 + $0x54] sm:$0xf]
      %v170 = vld [vmem:[%s139 + $0x58] sm:$0xf]
      %v171 = vld [vmem:[%s139 + $0x5c] sm:$0xf]
      %v172 = vld [vmem:[%s139 + $0x60] sm:$0xf]
      %v173 = vld [vmem:[%s139 + $0x64] sm:$0xf]
      %v174 = vld [vmem:[%s139 + $0x68] sm:$0xf]
      %v175 = vld [vmem:[%s139 + $0x6c] sm:$0xf]
      %v176 = vld [vmem:[%s139 + $0x70] sm:$0xf]
      %v177 = vld [vmem:[%s139 + $0x74] sm:$0xf]
      %v178 = vld [vmem:[%s139 + $0x78] sm:$0xf]
      %v179 = vld [vmem:[%s139 + $0x7c] sm:$0xf]
      %v180 = vld [vmem:[%s139 + $0x80] sm:$0xf]
      %v181 = vld [vmem:[%s139 + $0x84] sm:$0xf]
      %v182 = vld [vmem:[%s139 + $0x88] sm:$0xf]
      %v183 = vld [vmem:[%s139 + $0x8c] sm:$0xf]
      %v184 = vld [vmem:[%s139 + $0x90] sm:$0xf]
      %v185 = vld [vmem:[%s139 + $0x94] sm:$0xf]
      %v186 = vld [vmem:[%s139 + $0x98] sm:$0xf]
      %v187 = vld [vmem:[%s139 + $0x9c] sm:$0xf]
      %v188 = vld [vmem:[%s139 + $0xa0] sm:$0xf]
      %v189 = vld [vmem:[%s139 + $0xa4] sm:$0xf]
      %v190 = vld [vmem:[%s139 + $0xa8] sm:$0xf]
      %v191 = vld [vmem:[%s139 + $0xac] sm:$0xf]
      %v192 = vld [vmem:[%s139 + $0xb0] sm:$0xf]
      %v193 = vld [vmem:[%s139 + $0xb4] sm:$0xf]
      %v194 = vld [vmem:[%s139 + $0xb8] sm:$0xf]
      %v195 = vld [vmem:[%s139 + $0xbc] sm:$0xf]
      %v196 = vld [vmem:[%s139 + $0xc0] sm:$0xf]
      %v197 = vld [vmem:[%s139 + $0xc4] sm:$0xf]
      %v198 = vld [vmem:[%s139 + $0xc8] sm:$0xf]
      %v199 = vld [vmem:[%s139 + $0xcc] sm:$0xf]
      %v200 = vld [vmem:[%s139 + $0xd0] sm:$0xf]
      %v201 = vld [vmem:[%s139 + $0xd4] sm:$0xf]
      %v202 = vld [vmem:[%s139 + $0xd8] sm:$0xf]
      %v203 = vld [vmem:[%s139 + $0xdc] sm:$0xf]
      %v204 = vld [vmem:[%s139 + $0xe0] sm:$0xf]
      %v205 = vld [vmem:[%s139 + $0xe4] sm:$0xf]
      %v206 = vld [vmem:[%s139 + $0xe8] sm:$0xf]
      %v207 = vld [vmem:[%s139 + $0xec] sm:$0xf]
      %v208 = vld [vmem:[%s139 + $0xf0] sm:$0xf]
      %v209 = vld [vmem:[%s139 + $0xf4] sm:$0xf]
      %v210 = vld [vmem:[%s139 + $0xf8] sm:$0xf]
      %v211 = vld [vmem:[%s139 + $0xfc] sm:$0xf]
      %v212 = vld [vmem:[%s1] sm:$0xf]
      %v213 = vld [vmem:[%s1 + $0x4] sm:$0xf]
      %v214 = vld [vmem:[%s1 + $0x8] sm:$0xf]
      %v215 = vld [vmem:[%s1 + $0xc] sm:$0xf]
      %v216 = vld [vmem:[%s1 + $0x10] sm:$0xf]
      %v217 = vld [vmem:[%s1 + $0x14] sm:$0xf]
      %v218 = vld [vmem:[%s1 + $0x18] sm:$0xf]
      %v219 = vld [vmem:[%s1 + $0x1c] sm:$0xf]
      %v220 = vld [vmem:[%s1 + $0x20] sm:$0xf]
      %v221 = vld [vmem:[%s1 + $0x24] sm:$0xf]
      %v222 = vld [vmem:[%s1 + $0x28] sm:$0xf]
      %v223 = vld [vmem:[%s1 + $0x2c] sm:$0xf]
      %v224 = vld [vmem:[%s1 + $0x30] sm:$0xf]
      %v225 = vld [vmem:[%s1 + $0x34] sm:$0xf]
      %v226 = vld [vmem:[%s1 + $0x38] sm:$0xf]
      %v227 = vld [vmem:[%s1 + $0x3c] sm:$0xf]
      %v292 = vunpack.c.l.b16 %v148
      %v293 = vunpack.c.l.b16 %v149
      %v294 = vunpack.c.l.b16 %v150
      %v295 = vunpack.c.l.b16 %v151
      %v296 = vunpack.c.l.b16 %v152
      %v297 = vunpack.c.l.b16 %v153
      %v298 = vunpack.c.l.b16 %v154
      %v299 = vunpack.c.l.b16 %v155
      %v300 = vunpack.c.l.b16 %v156
      %v301 = vunpack.c.l.b16 %v157
      %v302 = vunpack.c.l.b16 %v158
      %v303 = vunpack.c.l.b16 %v159
      %v304 = vunpack.c.l.b16 %v160
      %v305 = vunpack.c.l.b16 %v161
      %v306 = vunpack.c.l.b16 %v162
      %v307 = vunpack.c.l.b16 %v163
      %v308 = vunpack.c.l.b16 %v164
      %v309 = vunpack.c.l.b16 %v165
      %v310 = vunpack.c.l.b16 %v166
      %v311 = vunpack.c.l.b16 %v167
      %v312 = vunpack.c.l.b16 %v168
      %v313 = vunpack.c.l.b16 %v169
      %v314 = vunpack.c.l.b16 %v170
      %v315 = vunpack.c.l.b16 %v171
      %v316 = vunpack.c.l.b16 %v172
      %v317 = vunpack.c.l.b16 %v173
      %v318 = vunpack.c.l.b16 %v174
      %v319 = vunpack.c.l.b16 %v175
      %v320 = vunpack.c.l.b16 %v176
      %v321 = vunpack.c.l.b16 %v177
      %v322 = vunpack.c.l.b16 %v178
      %v323 = vunpack.c.l.b16 %v179
      %v324 = vunpack.c.l.b16 %v180
      %v325 = vunpack.c.l.b16 %v181
      %v326 = vunpack.c.l.b16 %v182
      %v327 = vunpack.c.l.b16 %v183
      %v328 = vunpack.c.l.b16 %v184
      %v329 = vunpack.c.l.b16 %v185
      %v330 = vunpack.c.l.b16 %v186
      %v331 = vunpack.c.l.b16 %v187
      %v332 = vunpack.c.l.b16 %v188
      %v333 = vunpack.c.l.b16 %v189
      %v334 = vunpack.c.l.b16 %v190
      %v335 = vunpack.c.l.b16 %v191
      %v336 = vunpack.c.l.b16 %v192
      %v337 = vunpack.c.l.b16 %v193
      %v338 = vunpack.c.l.b16 %v194
      %v339 = vunpack.c.l.b16 %v195
      %v340 = vunpack.c.l.b16 %v196
      %v341 = vunpack.c.l.b16 %v197
      %v342 = vunpack.c.l.b16 %v198
      %v343 = vunpack.c.l.b16 %v199
      %v344 = vunpack.c.l.b16 %v200
      %v345 = vunpack.c.l.b16 %v201
      %v346 = vunpack.c.l.b16 %v202
      %v347 = vunpack.c.l.b16 %v203
      %v348 = vunpack.c.l.b16 %v204
      %v349 = vunpack.c.l.b16 %v205
      %v350 = vunpack.c.l.b16 %v206
      %v351 = vunpack.c.l.b16 %v207
      %v352 = vunpack.c.l.b16 %v208
      %v353 = vunpack.c.l.b16 %v209
      %v354 = vunpack.c.l.b16 %v210
      %v355 = vunpack.c.l.b16 %v211
      %v356 = vpack.c.b16 %v293, %v292
      %v357 = vpack.c.b16 %v295, %v294
      %v358 = vpack.c.b16 %v297, %v296
      %v359 = vpack.c.b16 %v299, %v298
      %v360 = vpack.c.b16 %v301, %v300
      %v361 = vpack.c.b16 %v303, %v302
      %v362 = vpack.c.b16 %v305, %v304
      %v363 = vpack.c.b16 %v307, %v306
      %v364 = vpack.c.b16 %v309, %v308
      %v365 = vpack.c.b16 %v311, %v310
      %v366 = vpack.c.b16 %v313, %v312
      %v367 = vpack.c.b16 %v315, %v314
      %v368 = vpack.c.b16 %v317, %v316
      %v369 = vpack.c.b16 %v319, %v318
      %v370 = vpack.c.b16 %v321, %v320
      %v371 = vpack.c.b16 %v323, %v322
      %v372 = vpack.c.b16 %v325, %v324
      %v373 = vpack.c.b16 %v327, %v326
      %v374 = vpack.c.b16 %v329, %v328
      %v375 = vpack.c.b16 %v331, %v330
      %v376 = vpack.c.b16 %v333, %v332
      %v377 = vpack.c.b16 %v335, %v334
      %v378 = vpack.c.b16 %v337, %v336
      %v379 = vpack.c.b16 %v339, %v338
      %v380 = vpack.c.b16 %v341, %v340
      %v381 = vpack.c.b16 %v343, %v342
      %v382 = vpack.c.b16 %v345, %v344
      %v383 = vpack.c.b16 %v347, %v346
      %v384 = vpack.c.b16 %v349, %v348
      %v385 = vpack.c.b16 %v351, %v350
      %v386 = vpack.c.b16 %v353, %v352
      %v387 = vpack.c.b16 %v355, %v354
      %v436 = vunpack.c.l.b16 %v212
      %v437 = vunpack.c.l.b16 %v213
      %v438 = vunpack.c.l.b16 %v214
      %v439 = vunpack.c.l.b16 %v215
      %v440 = vunpack.c.l.b16 %v216
      %v441 = vunpack.c.l.b16 %v217
      %v442 = vunpack.c.l.b16 %v218
      %v443 = vunpack.c.l.b16 %v219
      %v444 = vunpack.c.l.b16 %v220
      %v445 = vunpack.c.l.b16 %v221
      %v446 = vunpack.c.l.b16 %v222
      %v447 = vunpack.c.l.b16 %v223
      %v448 = vunpack.c.l.b16 %v224
      %v449 = vunpack.c.l.b16 %v225
      %v450 = vunpack.c.l.b16 %v226
      %v451 = vunpack.c.l.b16 %v227
      %v452 = vpack.c.b16 %v437, %v436
      %v453 = vpack.c.b16 %v439, %v438
      %v454 = vpack.c.b16 %v441, %v440
      %v455 = vpack.c.b16 %v443, %v442
      %v456 = vpack.c.b16 %v445, %v444
      %v457 = vpack.c.b16 %v447, %v446
      %v458 = vpack.c.b16 %v449, %v448
      %v459 = vpack.c.b16 %v451, %v450
      %468 = vmatprep.subr.bf16.mxu0 0
      %469 = vmatpush1.bf16.msra.mxu0 %v459
      %470 = vmatprep.subr.bf16.mxu0 0
      %471 = vmatpush1.bf16.msra.mxu0 %v458
      %472 = vmatprep.subr.bf16.mxu0 0
      %473 = vmatpush1.bf16.msra.mxu0 %v457
      %474 = vmatprep.subr.bf16.mxu0 0
      %475 = vmatpush1.bf16.msra.mxu0 %v456
      %476 = vmatprep.subr.bf16.mxu0 0
      %477 = vmatpush1.bf16.msra.mxu0 %v455
      %478 = vmatprep.subr.bf16.mxu0 0
      %479 = vmatpush1.bf16.msra.mxu0 %v454
      %480 = vmatprep.subr.bf16.mxu0 0
      %481 = vmatpush1.bf16.msra.mxu0 %v453
      %482 = vmatprep.subr.bf16.mxu0 0
      %483 = vmatpush1.bf16.msra.mxu0 %v452
      %484 = vmatprep.subr.bf16.mxu0 0
      %485 = vmatpush2.bf16.msra.mxu0 0
      %486 = vmatprep.subr.bf16.mxu0 0
      %487 = vmatpush2.bf16.msra.mxu0 0
      %488 = vmatprep.subr.bf16.mxu0 0
      %489 = vmatpush2.bf16.msra.mxu0 0
      %490 = vmatprep.subr.bf16.mxu0 0
      %491 = vmatpush2.bf16.msra.mxu0 0
      %492 = vmatprep.subr.bf16.mxu0 0
      %493 = vmatpush2.bf16.msra.mxu0 0
      %494 = vmatprep.subr.bf16.mxu0 0
      %495 = vmatpush2.bf16.msra.mxu0 0
      %496 = vmatprep.subr.bf16.mxu0 0
      %497 = vmatpush2.bf16.msra.mxu0 0
      %498 = vmatprep.subr.bf16.mxu0 0
      %499 = vmatpush2.bf16.msra.mxu0 0
      %500 = vmatprep.mubr.bf16.mxu0 0
      %501 = vmatmul.mubr.bf16.gmra.mxu0 %v356
      %v502 = vpop.f32.mrf.mxu0
      %v503 = vadd.f32 0.0, %v502
      %v504 = vpop.f32.mrf.mxu0
      %v505 = vpop.f32.mrf.mxu0
      %v506 = vadd.f32 0.0, %v505
      %v507 = vpop.f32.mrf.mxu0
      %508 = vmatprep.mubr.bf16.mxu0 0
      %509 = vmatmul.mubr.bf16.gmra.mxu0 %v357
      %v510 = vpop.f32.mrf.mxu0
      %v511 = vadd.f32 0.0, %v510
      %v512 = vpop.f32.mrf.mxu0
      %v513 = vpop.f32.mrf.mxu0
      %v514 = vadd.f32 0.0, %v513
      %v515 = vpop.f32.mrf.mxu0
      %516 = vmatprep.mubr.bf16.mxu0 0
      %517 = vmatmul.mubr.bf16.gmra.mxu0 %v358
      %v518 = vpop.f32.mrf.mxu0
      %v519 = vadd.f32 0.0, %v518
      %v520 = vpop.f32.mrf.mxu0
      %v521 = vpop.f32.mrf.mxu0
      %v522 = vadd.f32 0.0, %v521
      %v523 = vpop.f32.mrf.mxu0
      %524 = vmatprep.mubr.bf16.mxu0 0
      %525 = vmatmul.mubr.bf16.gmra.mxu0 %v359
      %v526 = vpop.f32.mrf.mxu0
      %v527 = vadd.f32 0.0, %v526
      %v528 = vpop.f32.mrf.mxu0
      %v529 = vpop.f32.mrf.mxu0
      %v530 = vadd.f32 0.0, %v529
      %v531 = vpop.f32.mrf.mxu0
      %532 = vmatprep.mubr.bf16.mxu0 0
      %533 = vmatmul.mubr.bf16.gmra.mxu0 %v360
      %v534 = vpop.f32.mrf.mxu0
      %v535 = vadd.f32 0.0, %v534
      %v536 = vpop.f32.mrf.mxu0
      %v537 = vpop.f32.mrf.mxu0
      %v538 = vadd.f32 0.0, %v537
      %v539 = vpop.f32.mrf.mxu0
      %540 = vmatprep.mubr.bf16.mxu0 0
      %541 = vmatmul.mubr.bf16.gmra.mxu0 %v361
      %v542 = vpop.f32.mrf.mxu0
      %v543 = vadd.f32 0.0, %v542
      %v544 = vpop.f32.mrf.mxu0
      %v545 = vpop.f32.mrf.mxu0
      %v546 = vadd.f32 0.0, %v545
      %v547 = vpop.f32.mrf.mxu0
      %548 = vmatprep.mubr.bf16.mxu0 0
      %549 = vmatmul.mubr.bf16.gmra.mxu0 %v362
      %v550 = vpop.f32.mrf.mxu0
      %v551 = vadd.f32 0.0, %v550
      %v552 = vpop.f32.mrf.mxu0
      %v553 = vpop.f32.mrf.mxu0
      %v554 = vadd.f32 0.0, %v553
      %v555 = vpop.f32.mrf.mxu0
      %556 = vmatprep.mubr.bf16.mxu0 0
      %557 = vmatmul.mubr.bf16.gmra.mxu0 %v363
      %v558 = vpop.f32.mrf.mxu0
      %v559 = vadd.f32 0.0, %v558
      %v560 = vpop.f32.mrf.mxu0
      %v561 = vpop.f32.mrf.mxu0
      %v562 = vadd.f32 0.0, %v561
      %v563 = vpop.f32.mrf.mxu0
      %564 = vmatprep.mubr.bf16.mxu0 0
      %565 = vmatmul.mubr.bf16.gmra.mxu0 %v364
      %v566 = vpop.f32.mrf.mxu0
      %v567 = vadd.f32 0.0, %v566
      %v568 = vpop.f32.mrf.mxu0
      %v569 = vpop.f32.mrf.mxu0
      %v570 = vadd.f32 0.0, %v569
      %v571 = vpop.f32.mrf.mxu0
      %572 = vmatprep.mubr.bf16.mxu0 0
      %573 = vmatmul.mubr.bf16.gmra.mxu0 %v365
      %v574 = vpop.f32.mrf.mxu0
      %v575 = vadd.f32 0.0, %v574
      %v576 = vpop.f32.mrf.mxu0
      %v577 = vpop.f32.mrf.mxu0
      %v578 = vadd.f32 0.0, %v577
      %v579 = vpop.f32.mrf.mxu0
      %580 = vmatprep.mubr.bf16.mxu0 0
      %581 = vmatmul.mubr.bf16.gmra.mxu0 %v366
      %v582 = vpop.f32.mrf.mxu0
      %v583 = vadd.f32 0.0, %v582
      %v584 = vpop.f32.mrf.mxu0
      %v585 = vpop.f32.mrf.mxu0
      %v586 = vadd.f32 0.0, %v585
      %v587 = vpop.f32.mrf.mxu0
      %588 = vmatprep.mubr.bf16.mxu0 0
      %589 = vmatmul.mubr.bf16.gmra.mxu0 %v367
      %v590 = vpop.f32.mrf.mxu0
      %v591 = vadd.f32 0.0, %v590
      %v592 = vpop.f32.mrf.mxu0
      %v593 = vpop.f32.mrf.mxu0
      %v594 = vadd.f32 0.0, %v593
      %v595 = vpop.f32.mrf.mxu0
      %596 = vmatprep.mubr.bf16.mxu0 0
      %597 = vmatmul.mubr.bf16.gmra.mxu0 %v368
      %v598 = vpop.f32.mrf.mxu0
      %v599 = vadd.f32 0.0, %v598
      %v600 = vpop.f32.mrf.mxu0
      %v601 = vpop.f32.mrf.mxu0
      %v602 = vadd.f32 0.0, %v601
      %v603 = vpop.f32.mrf.mxu0
      %604 = vmatprep.mubr.bf16.mxu0 0
      %605 = vmatmul.mubr.bf16.gmra.mxu0 %v369
      %v606 = vpop.f32.mrf.mxu0
      %v607 = vadd.f32 0.0, %v606
      %v608 = vpop.f32.mrf.mxu0
      %v609 = vpop.f32.mrf.mxu0
      %v610 = vadd.f32 0.0, %v609
      %v611 = vpop.f32.mrf.mxu0
      %612 = vmatprep.mubr.bf16.mxu0 0
      %613 = vmatmul.mubr.bf16.gmra.mxu0 %v370
      %v614 = vpop.f32.mrf.mxu0
      %v615 = vadd.f32 0.0, %v614
      %v616 = vpop.f32.mrf.mxu0
      %v617 = vpop.f32.mrf.mxu0
      %v618 = vadd.f32 0.0, %v617
      %v619 = vpop.f32.mrf.mxu0
      %620 = vmatprep.mubr.bf16.mxu0 0
      %621 = vmatmul.mubr.bf16.gmra.mxu0 %v371
      %v622 = vpop.f32.mrf.mxu0
      %v623 = vadd.f32 0.0, %v622
      %v624 = vpop.f32.mrf.mxu0
      %v625 = vpop.f32.mrf.mxu0
      %v626 = vadd.f32 0.0, %v625
      %v627 = vpop.f32.mrf.mxu0
      %628 = vmatprep.mubr.bf16.mxu0 0
      %629 = vmatmul.mubr.bf16.gmra.mxu0 %v372
      %v630 = vpop.f32.mrf.mxu0
      %v631 = vadd.f32 0.0, %v630
      %v632 = vpop.f32.mrf.mxu0
      %v633 = vpop.f32.mrf.mxu0
      %v634 = vadd.f32 0.0, %v633
      %v635 = vpop.f32.mrf.mxu0
      %636 = vmatprep.mubr.bf16.mxu0 0
      %637 = vmatmul.mubr.bf16.gmra.mxu0 %v373
      %v638 = vpop.f32.mrf.mxu0
      %v639 = vadd.f32 0.0, %v638
      %v640 = vpop.f32.mrf.mxu0
      %v641 = vpop.f32.mrf.mxu0
      %v642 = vadd.f32 0.0, %v641
      %v643 = vpop.f32.mrf.mxu0
      %644 = vmatprep.mubr.bf16.mxu0 0
      %645 = vmatmul.mubr.bf16.gmra.mxu0 %v374
      %v646 = vpop.f32.mrf.mxu0
      %v647 = vadd.f32 0.0, %v646
      %v648 = vpop.f32.mrf.mxu0
      %v649 = vpop.f32.mrf.mxu0
      %v650 = vadd.f32 0.0, %v649
      %v651 = vpop.f32.mrf.mxu0
      %652 = vmatprep.mubr.bf16.mxu0 0
      %653 = vmatmul.mubr.bf16.gmra.mxu0 %v375
      %v654 = vpop.f32.mrf.mxu0
      %v655 = vadd.f32 0.0, %v654
      %v656 = vpop.f32.mrf.mxu0
      %v657 = vpop.f32.mrf.mxu0
      %v658 = vadd.f32 0.0, %v657
      %v659 = vpop.f32.mrf.mxu0
      %660 = vmatprep.mubr.bf16.mxu0 0
      %661 = vmatmul.mubr.bf16.gmra.mxu0 %v376
      %v662 = vpop.f32.mrf.mxu0
      %v663 = vadd.f32 0.0, %v662
      %v664 = vpop.f32.mrf.mxu0
      %v665 = vpop.f32.mrf.mxu0
      %v666 = vadd.f32 0.0, %v665
      %v667 = vpop.f32.mrf.mxu0
      %668 = vmatprep.mubr.bf16.mxu0 0
      %669 = vmatmul.mubr.bf16.gmra.mxu0 %v377
      %v670 = vpop.f32.mrf.mxu0
      %v671 = vadd.f32 0.0, %v670
      %v672 = vpop.f32.mrf.mxu0
      %v673 = vpop.f32.mrf.mxu0
      %v674 = vadd.f32 0.0, %v673
      %v675 = vpop.f32.mrf.mxu0
      %676 = vmatprep.mubr.bf16.mxu0 0
      %677 = vmatmul.mubr.bf16.gmra.mxu0 %v378
      %v678 = vpop.f32.mrf.mxu0
      %v679 = vadd.f32 0.0, %v678
      %v680 = vpop.f32.mrf.mxu0
      %v681 = vpop.f32.mrf.mxu0
      %v682 = vadd.f32 0.0, %v681
      %v683 = vpop.f32.mrf.mxu0
      %684 = vmatprep.mubr.bf16.mxu0 0
      %685 = vmatmul.mubr.bf16.gmra.mxu0 %v379
      %v686 = vpop.f32.mrf.mxu0
      %v687 = vadd.f32 0.0, %v686
      %v688 = vpop.f32.mrf.mxu0
      %v689 = vpop.f32.mrf.mxu0
      %v690 = vadd.f32 0.0, %v689
      %v691 = vpop.f32.mrf.mxu0
      %692 = vmatprep.mubr.bf16.mxu0 0
      %693 = vmatmul.mubr.bf16.gmra.mxu0 %v380
      %v694 = vpop.f32.mrf.mxu0
      %v695 = vadd.f32 0.0, %v694
      %v696 = vpop.f32.mrf.mxu0
      %v697 = vpop.f32.mrf.mxu0
      %v698 = vadd.f32 0.0, %v697
      %v699 = vpop.f32.mrf.mxu0
      %700 = vmatprep.mubr.bf16.mxu0 0
      %701 = vmatmul.mubr.bf16.gmra.mxu0 %v381
      %v702 = vpop.f32.mrf.mxu0
      %v703 = vadd.f32 0.0, %v702
      %v704 = vpop.f32.mrf.mxu0
      %v705 = vpop.f32.mrf.mxu0
      %v706 = vadd.f32 0.0, %v705
      %v707 = vpop.f32.mrf.mxu0
      %708 = vmatprep.mubr.bf16.mxu0 0
      %709 = vmatmul.mubr.bf16.gmra.mxu0 %v382
      %v710 = vpop.f32.mrf.mxu0
      %v711 = vadd.f32 0.0, %v710
      %v712 = vpop.f32.mrf.mxu0
      %v713 = vpop.f32.mrf.mxu0
      %v714 = vadd.f32 0.0, %v713
      %v715 = vpop.f32.mrf.mxu0
      %716 = vmatprep.mubr.bf16.mxu0 0
      %717 = vmatmul.mubr.bf16.gmra.mxu0 %v383
      %v718 = vpop.f32.mrf.mxu0
      %v719 = vadd.f32 0.0, %v718
      %v720 = vpop.f32.mrf.mxu0
      %v721 = vpop.f32.mrf.mxu0
      %v722 = vadd.f32 0.0, %v721
      %v723 = vpop.f32.mrf.mxu0
      %724 = vmatprep.mubr.bf16.mxu0 0
      %725 = vmatmul.mubr.bf16.gmra.mxu0 %v384
      %v726 = vpop.f32.mrf.mxu0
      %v727 = vadd.f32 0.0, %v726
      %v728 = vpop.f32.mrf.mxu0
      %v729 = vpop.f32.mrf.mxu0
      %v730 = vadd.f32 0.0, %v729
      %v731 = vpop.f32.mrf.mxu0
      %732 = vmatprep.mubr.bf16.mxu0 0
      %733 = vmatmul.mubr.bf16.gmra.mxu0 %v385
      %v734 = vpop.f32.mrf.mxu0
      %v735 = vadd.f32 0.0, %v734
      %v736 = vpop.f32.mrf.mxu0
      %v737 = vpop.f32.mrf.mxu0
      %v738 = vadd.f32 0.0, %v737
      %v739 = vpop.f32.mrf.mxu0
      %740 = vmatprep.mubr.bf16.mxu0 0
      %741 = vmatmul.mubr.bf16.gmra.mxu0 %v386
      %v742 = vpop.f32.mrf.mxu0
      %v743 = vadd.f32 0.0, %v742
      %v744 = vpop.f32.mrf.mxu0
      %v745 = vpop.f32.mrf.mxu0
      %v746 = vadd.f32 0.0, %v745
      %v747 = vpop.f32.mrf.mxu0
      %748 = vmatprep.mubr.bf16.mxu0 0
      %749 = vmatmul.mubr.bf16.gmra.mxu0 %v387
      %v750 = vpop.f32.mrf.mxu0
      %v751 = vadd.f32 0.0, %v750
      %v752 = vpop.f32.mrf.mxu0
      %v753 = vpop.f32.mrf.mxu0
      %v754 = vadd.f32 0.0, %v753
      %v755 = vpop.f32.mrf.mxu0
      %756 = vdwg.mxu0
      %vm757 = vcmp.gt.f32.partialorder %v503, 0.0
      %vm758 = vcmp.gt.f32.partialorder %v506, 0.0
      %vm759 = vcmp.gt.f32.partialorder %v511, 0.0
      %vm760 = vcmp.gt.f32.partialorder %v514, 0.0
      %vm761 = vcmp.gt.f32.partialorder %v519, 0.0
      %vm762 = vcmp.gt.f32.partialorder %v522, 0.0
      %vm763 = vcmp.gt.f32.partialorder %v527, 0.0
      %vm764 = vcmp.gt.f32.partialorder %v530, 0.0
      %vm765 = vcmp.gt.f32.partialorder %v535, 0.0
      %vm766 = vcmp.gt.f32.partialorder %v538, 0.0
      %vm767 = vcmp.gt.f32.partialorder %v543, 0.0
      %vm768 = vcmp.gt.f32.partialorder %v546, 0.0
      %vm769 = vcmp.gt.f32.partialorder %v551, 0.0
      %vm770 = vcmp.gt.f32.partialorder %v554, 0.0
      %vm771 = vcmp.gt.f32.partialorder %v559, 0.0
      %vm772 = vcmp.gt.f32.partialorder %v562, 0.0
      %vm773 = vcmp.gt.f32.partialorder %v567, 0.0
      %vm774 = vcmp.gt.f32.partialorder %v570, 0.0
      %vm775 = vcmp.gt.f32.partialorder %v575, 0.0
      %vm776 = vcmp.gt.f32.partialorder %v578, 0.0
      %vm777 = vcmp.gt.f32.partialorder %v583, 0.0
      %vm778 = vcmp.gt.f32.partialorder %v586, 0.0
      %vm779 = vcmp.gt.f32.partialorder %v591, 0.0
      %vm780 = vcmp.gt.f32.partialorder %v594, 0.0
      %vm781 = vcmp.gt.f32.partialorder %v599, 0.0
      %vm782 = vcmp.gt.f32.partialorder %v602, 0.0
      %vm783 = vcmp.gt.f32.partialorder %v607, 0.0
      %vm784 = vcmp.gt.f32.partialorder %v610, 0.0
      %vm785 = vcmp.gt.f32.partialorder %v615, 0.0
      %vm786 = vcmp.gt.f32.partialorder %v618, 0.0
      %vm787 = vcmp.gt.f32.partialorder %v623, 0.0
      %vm788 = vcmp.gt.f32.partialorder %v626, 0.0
      %vm789 = vcmp.gt.f32.partialorder %v631, 0.0
      %vm790 = vcmp.gt.f32.partialorder %v634, 0.0
      %vm791 = vcmp.gt.f32.partialorder %v639, 0.0
      %vm792 = vcmp.gt.f32.partialorder %v642, 0.0
      %vm793 = vcmp.gt.f32.partialorder %v647, 0.0
      %vm794 = vcmp.gt.f32.partialorder %v650, 0.0
      %vm795 = vcmp.gt.f32.partialorder %v655, 0.0
      %vm796 = vcmp.gt.f32.partialorder %v658, 0.0
      %vm797 = vcmp.gt.f32.partialorder %v663, 0.0
      %vm798 = vcmp.gt.f32.partialorder %v666, 0.0
      %vm799 = vcmp.gt.f32.partialorder %v671, 0.0
      %vm800 = vcmp.gt.f32.partialorder %v674, 0.0
      %vm801 = vcmp.gt.f32.partialorder %v679, 0.0
      %vm802 = vcmp.gt.f32.partialorder %v682, 0.0
      %vm803 = vcmp.gt.f32.partialorder %v687, 0.0
      %vm804 = vcmp.gt.f32.partialorder %v690, 0.0
      %vm805 = vcmp.gt.f32.partialorder %v695, 0.0
      %vm806 = vcmp.gt.f32.partialorder %v698, 0.0
      %vm807 = vcmp.gt.f32.partialorder %v703, 0.0
      %vm808 = vcmp.gt.f32.partialorder %v706, 0.0
      %vm809 = vcmp.gt.f32.partialorder %v711, 0.0
      %vm810 = vcmp.gt.f32.partialorder %v714, 0.0
      %vm811 = vcmp.gt.f32.partialorder %v719, 0.0
      %vm812 = vcmp.gt.f32.partialorder %v722, 0.0
      %vm813 = vcmp.gt.f32.partialorder %v727, 0.0
      %vm814 = vcmp.gt.f32.partialorder %v730, 0.0
      %vm815 = vcmp.gt.f32.partialorder %v735, 0.0
      %vm816 = vcmp.gt.f32.partialorder %v738, 0.0
      %vm817 = vcmp.gt.f32.partialorder %v743, 0.0
      %vm818 = vcmp.gt.f32.partialorder %v746, 0.0
      %vm819 = vcmp.gt.f32.partialorder %v751, 0.0
      %vm820 = vcmp.gt.f32.partialorder %v754, 0.0
      %v821 = vmul.f32 %v503, 0.2
      %v822 = vmul.f32 %v506, 0.2
      %v823 = vmul.f32 %v511, 0.2
      %v824 = vmul.f32 %v514, 0.2
      %v825 = vmul.f32 %v519, 0.2
      %v826 = vmul.f32 %v522, 0.2
      %v827 = vmul.f32 %v527, 0.2
      %v828 = vmul.f32 %v530, 0.2
      %v829 = vmul.f32 %v535, 0.2
      %v830 = vmul.f32 %v538, 0.2
      %v831 = vmul.f32 %v543, 0.2
      %v832 = vmul.f32 %v546, 0.2
      %v833 = vmul.f32 %v551, 0.2
      %v834 = vmul.f32 %v554, 0.2
      %v835 = vmul.f32 %v559, 0.2
      %v836 = vmul.f32 %v562, 0.2
      %v837 = vmul.f32 %v567, 0.2
      %v838 = vmul.f32 %v570, 0.2
      %v839 = vmul.f32 %v575, 0.2
      %v840 = vmul.f32 %v578, 0.2
      %v841 = vmul.f32 %v583, 0.2
      %v842 = vmul.f32 %v586, 0.2
      %v843 = vmul.f32 %v591, 0.2
      %v844 = vmul.f32 %v594, 0.2
      %v845 = vmul.f32 %v599, 0.2
      %v846 = vmul.f32 %v602, 0.2
      %v847 = vmul.f32 %v607, 0.2
      %v848 = vmul.f32 %v610, 0.2
      %v849 = vmul.f32 %v615, 0.2
      %v850 = vmul.f32 %v618, 0.2
      %v851 = vmul.f32 %v623, 0.2
      %v852 = vmul.f32 %v626, 0.2
      %v853 = vmul.f32 %v631, 0.2
      %v854 = vmul.f32 %v634, 0.2
      %v855 = vmul.f32 %v639, 0.2
      %v856 = vmul.f32 %v642, 0.2
      %v857 = vmul.f32 %v647, 0.2
      %v858 = vmul.f32 %v650, 0.2
      %v859 = vmul.f32 %v655, 0.2
      %v860 = vmul.f32 %v658, 0.2
      %v861 = vmul.f32 %v663, 0.2
      %v862 = vmul.f32 %v666, 0.2
      %v863 = vmul.f32 %v671, 0.2
      %v864 = vmul.f32 %v674, 0.2
      %v865 = vmul.f32 %v679, 0.2
      %v866 = vmul.f32 %v682, 0.2
      %v867 = vmul.f32 %v687, 0.2
      %v868 = vmul.f32 %v690, 0.2
      %v869 = vmul.f32 %v695, 0.2
      %v870 = vmul.f32 %v698, 0.2
      %v871 = vmul.f32 %v703, 0.2
      %v872 = vmul.f32 %v706, 0.2
      %v873 = vmul.f32 %v711, 0.2
      %v874 = vmul.f32 %v714, 0.2
      %v875 = vmul.f32 %v719, 0.2
      %v876 = vmul.f32 %v722, 0.2
      %v877 = vmul.f32 %v727, 0.2
      %v878 = vmul.f32 %v730, 0.2
      %v879 = vmul.f32 %v735, 0.2
      %v880 = vmul.f32 %v738, 0.2
      %v881 = vmul.f32 %v743, 0.2
      %v882 = vmul.f32 %v746, 0.2
      %v883 = vmul.f32 %v751, 0.2
      %v884 = vmul.f32 %v754, 0.2
      %v885 = vsel %vm757, %v503, %v821
      %v886 = vsel %vm758, %v506, %v822
      %v887 = vsel %vm759, %v511, %v823
      %v888 = vsel %vm760, %v514, %v824
      %v889 = vsel %vm761, %v519, %v825
      %v890 = vsel %vm762, %v522, %v826
      %v891 = vsel %vm763, %v527, %v827
      %v892 = vsel %vm764, %v530, %v828
      %v893 = vsel %vm765, %v535, %v829
      %v894 = vsel %vm766, %v538, %v830
      %v895 = vsel %vm767, %v543, %v831
      %v896 = vsel %vm768, %v546, %v832
      %v897 = vsel %vm769, %v551, %v833
      %v898 = vsel %vm770, %v554, %v834
      %v899 = vsel %vm771, %v559, %v835
      %v900 = vsel %vm772, %v562, %v836
      %v901 = vsel %vm773, %v567, %v837
      %v902 = vsel %vm774, %v570, %v838
      %v903 = vsel %vm775, %v575, %v839
      %v904 = vsel %vm776, %v578, %v840
      %v905 = vsel %vm777, %v583, %v841
      %v906 = vsel %vm778, %v586, %v842
      %v907 = vsel %vm779, %v591, %v843
      %v908 = vsel %vm780, %v594, %v844
      %v909 = vsel %vm781, %v599, %v845
      %v910 = vsel %vm782, %v602, %v846
      %v911 = vsel %vm783, %v607, %v847
      %v912 = vsel %vm784, %v610, %v848
      %v913 = vsel %vm785, %v615, %v849
      %v914 = vsel %vm786, %v618, %v850
      %v915 = vsel %vm787, %v623, %v851
      %v916 = vsel %vm788, %v626, %v852
      %v917 = vsel %vm789, %v631, %v853
      %v918 = vsel %vm790, %v634, %v854
      %v919 = vsel %vm791, %v639, %v855
      %v920 = vsel %vm792, %v642, %v856
      %v921 = vsel %vm793, %v647, %v857
      %v922 = vsel %vm794, %v650, %v858
      %v923 = vsel %vm795, %v655, %v859
      %v924 = vsel %vm796, %v658, %v860
      %v925 = vsel %vm797, %v663, %v861
      %v926 = vsel %vm798, %v666, %v862
      %v927 = vsel %vm799, %v671, %v863
      %v928 = vsel %vm800, %v674, %v864
      %v929 = vsel %vm801, %v679, %v865
      %v930 = vsel %vm802, %v682, %v866
      %v931 = vsel %vm803, %v687, %v867
      %v932 = vsel %vm804, %v690, %v868
      %v933 = vsel %vm805, %v695, %v869
      %v934 = vsel %vm806, %v698, %v870
      %v935 = vsel %vm807, %v703, %v871
      %v936 = vsel %vm808, %v706, %v872
      %v937 = vsel %vm809, %v711, %v873
      %v938 = vsel %vm810, %v714, %v874
      %v939 = vsel %vm811, %v719, %v875
      %v940 = vsel %vm812, %v722, %v876
      %v941 = vsel %vm813, %v727, %v877
      %v942 = vsel %vm814, %v730, %v878
      %v943 = vsel %vm815, %v735, %v879
      %v944 = vsel %vm816, %v738, %v880
      %v945 = vsel %vm817, %v743, %v881
      %v946 = vsel %vm818, %v746, %v882
      %v947 = vsel %vm819, %v751, %v883
      %v948 = vsel %vm820, %v754, %v884
      %v949 = vpack.c.bf16 %v886, %v885
      %v950 = vpack.c.bf16 %v888, %v887
      %v951 = vpack.c.bf16 %v890, %v889
      %v952 = vpack.c.bf16 %v892, %v891
      %v953 = vpack.c.bf16 %v894, %v893
      %v954 = vpack.c.bf16 %v896, %v895
      %v955 = vpack.c.bf16 %v898, %v897
      %v956 = vpack.c.bf16 %v900, %v899
      %v957 = vpack.c.bf16 %v902, %v901
      %v958 = vpack.c.bf16 %v904, %v903
      %v959 = vpack.c.bf16 %v906, %v905
      %v960 = vpack.c.bf16 %v908, %v907
      %v961 = vpack.c.bf16 %v910, %v909
      %v962 = vpack.c.bf16 %v912, %v911
      %v963 = vpack.c.bf16 %v914, %v913
      %v964 = vpack.c.bf16 %v916, %v915
      %v965 = vpack.c.bf16 %v918, %v917
      %v966 = vpack.c.bf16 %v920, %v919
      %v967 = vpack.c.bf16 %v922, %v921
      %v968 = vpack.c.bf16 %v924, %v923
      %v969 = vpack.c.bf16 %v926, %v925
      %v970 = vpack.c.bf16 %v928, %v927
      %v971 = vpack.c.bf16 %v930, %v929
      %v972 = vpack.c.bf16 %v932, %v931
      %v973 = vpack.c.bf16 %v934, %v933
      %v974 = vpack.c.bf16 %v936, %v935
      %v975 = vpack.c.bf16 %v938, %v937
      %v976 = vpack.c.bf16 %v940, %v939
      %v977 = vpack.c.bf16 %v942, %v941
      %v978 = vpack.c.bf16 %v944, %v943
      %v979 = vpack.c.bf16 %v946, %v945
      %v980 = vpack.c.bf16 %v948, %v947
      %v1013 = vunpack.c.l.b16 %v949
      %v1014 = vunpack.c.h.b16 %v949
      %v1015 = vunpack.c.l.b16 %v950
      %v1016 = vunpack.c.h.b16 %v950
      %v1017 = vunpack.c.l.b16 %v951
      %v1018 = vunpack.c.h.b16 %v951
      %v1019 = vunpack.c.l.b16 %v952
      %v1020 = vunpack.c.h.b16 %v952
      %v1021 = vunpack.c.l.b16 %v953
      %v1022 = vunpack.c.h.b16 %v953
      %v1023 = vunpack.c.l.b16 %v954
      %v1024 = vunpack.c.h.b16 %v954
      %v1025 = vunpack.c.l.b16 %v955
      %v1026 = vunpack.c.h.b16 %v955
      %v1027 = vunpack.c.l.b16 %v956
      %v1028 = vunpack.c.h.b16 %v956
      %v1029 = vunpack.c.l.b16 %v957
      %v1030 = vunpack.c.h.b16 %v957
      %v1031 = vunpack.c.l.b16 %v958
      %v1032 = vunpack.c.h.b16 %v958
      %v1033 = vunpack.c.l.b16 %v959
      %v1034 = vunpack.c.h.b16 %v959
      %v1035 = vunpack.c.l.b16 %v960
      %v1036 = vunpack.c.h.b16 %v960
      %v1037 = vunpack.c.l.b16 %v961
      %v1038 = vunpack.c.h.b16 %v961
      %v1039 = vunpack.c.l.b16 %v962
      %v1040 = vunpack.c.h.b16 %v962
      %v1041 = vunpack.c.l.b16 %v963
      %v1042 = vunpack.c.h.b16 %v963
      %v1043 = vunpack.c.l.b16 %v964
      %v1044 = vunpack.c.h.b16 %v964
      %v1045 = vunpack.c.l.b16 %v965
      %v1046 = vunpack.c.h.b16 %v965
      %v1047 = vunpack.c.l.b16 %v966
      %v1048 = vunpack.c.h.b16 %v966
      %v1049 = vunpack.c.l.b16 %v967
      %v1050 = vunpack.c.h.b16 %v967
      %v1051 = vunpack.c.l.b16 %v968
      %v1052 = vunpack.c.h.b16 %v968
      %v1053 = vunpack.c.l.b16 %v969
      %v1054 = vunpack.c.h.b16 %v969
      %v1055 = vunpack.c.l.b16 %v970
      %v1056 = vunpack.c.h.b16 %v970
      %v1057 = vunpack.c.l.b16 %v971
      %v1058 = vunpack.c.h.b16 %v971
      %v1059 = vunpack.c.l.b16 %v972
      %v1060 = vunpack.c.h.b16 %v972
      %v1061 = vunpack.c.l.b16 %v973
      %v1062 = vunpack.c.h.b16 %v973
      %v1063 = vunpack.c.l.b16 %v974
      %v1064 = vunpack.c.h.b16 %v974
      %v1065 = vunpack.c.l.b16 %v975
      %v1066 = vunpack.c.h.b16 %v975
      %v1067 = vunpack.c.l.b16 %v976
      %v1068 = vunpack.c.h.b16 %v976
      %v1069 = vunpack.c.l.b16 %v977
      %v1070 = vunpack.c.h.b16 %v977
      %v1071 = vunpack.c.l.b16 %v978
      %v1072 = vunpack.c.h.b16 %v978
      %v1073 = vunpack.c.l.b16 %v979
      %v1074 = vunpack.c.h.b16 %v979
      %v1075 = vunpack.c.l.b16 %v980
      %v1076 = vunpack.c.h.b16 %v980
      %v1077 = vpack.c.b16 %v1013, %v1013
      %v1078 = vpack.c.b16 %v1014, %v1014
      %v1079 = vpack.c.b16 %v1015, %v1015
      %v1080 = vpack.c.b16 %v1016, %v1016
      %v1081 = vpack.c.b16 %v1017, %v1017
      %v1082 = vpack.c.b16 %v1018, %v1018
      %v1083 = vpack.c.b16 %v1019, %v1019
      %v1084 = vpack.c.b16 %v1020, %v1020
      %v1085 = vpack.c.b16 %v1021, %v1021
      %v1086 = vpack.c.b16 %v1022, %v1022
      %v1087 = vpack.c.b16 %v1023, %v1023
      %v1088 = vpack.c.b16 %v1024, %v1024
      %v1089 = vpack.c.b16 %v1025, %v1025
      %v1090 = vpack.c.b16 %v1026, %v1026
      %v1091 = vpack.c.b16 %v1027, %v1027
      %v1092 = vpack.c.b16 %v1028, %v1028
      %v1093 = vpack.c.b16 %v1029, %v1029
      %v1094 = vpack.c.b16 %v1030, %v1030
      %v1095 = vpack.c.b16 %v1031, %v1031
      %v1096 = vpack.c.b16 %v1032, %v1032
      %v1097 = vpack.c.b16 %v1033, %v1033
      %v1098 = vpack.c.b16 %v1034, %v1034
      %v1099 = vpack.c.b16 %v1035, %v1035
      %v1100 = vpack.c.b16 %v1036, %v1036
      %v1101 = vpack.c.b16 %v1037, %v1037
      %v1102 = vpack.c.b16 %v1038, %v1038
      %v1103 = vpack.c.b16 %v1039, %v1039
      %v1104 = vpack.c.b16 %v1040, %v1040
      %v1105 = vpack.c.b16 %v1041, %v1041
      %v1106 = vpack.c.b16 %v1042, %v1042
      %v1107 = vpack.c.b16 %v1043, %v1043
      %v1108 = vpack.c.b16 %v1044, %v1044
      %v1109 = vpack.c.b16 %v1045, %v1045
      %v1110 = vpack.c.b16 %v1046, %v1046
      %v1111 = vpack.c.b16 %v1047, %v1047
      %v1112 = vpack.c.b16 %v1048, %v1048
      %v1113 = vpack.c.b16 %v1049, %v1049
      %v1114 = vpack.c.b16 %v1050, %v1050
      %v1115 = vpack.c.b16 %v1051, %v1051
      %v1116 = vpack.c.b16 %v1052, %v1052
      %v1117 = vpack.c.b16 %v1053, %v1053
      %v1118 = vpack.c.b16 %v1054, %v1054
      %v1119 = vpack.c.b16 %v1055, %v1055
      %v1120 = vpack.c.b16 %v1056, %v1056
      %v1121 = vpack.c.b16 %v1057, %v1057
      %v1122 = vpack.c.b16 %v1058, %v1058
      %v1123 = vpack.c.b16 %v1059, %v1059
      %v1124 = vpack.c.b16 %v1060, %v1060
      %v1125 = vpack.c.b16 %v1061, %v1061
      %v1126 = vpack.c.b16 %v1062, %v1062
      %v1127 = vpack.c.b16 %v1063, %v1063
      %v1128 = vpack.c.b16 %v1064, %v1064
      %v1129 = vpack.c.b16 %v1065, %v1065
      %v1130 = vpack.c.b16 %v1066, %v1066
      %v1131 = vpack.c.b16 %v1067, %v1067
      %v1132 = vpack.c.b16 %v1068, %v1068
      %v1133 = vpack.c.b16 %v1069, %v1069
      %v1134 = vpack.c.b16 %v1070, %v1070
      %v1135 = vpack.c.b16 %v1071, %v1071
      %v1136 = vpack.c.b16 %v1072, %v1072
      %v1137 = vpack.c.b16 %v1073, %v1073
      %v1138 = vpack.c.b16 %v1074, %v1074
      %v1139 = vpack.c.b16 %v1075, %v1075
      %v1140 = vpack.c.b16 %v1076, %v1076
      %1205 = vst [vmem:[%s145] sm:$0xf] %v1077
      %1206 = vst [vmem:[%s145 + $0x4] sm:$0xf] %v1078
      %1207 = vst [vmem:[%s145 + $0x8] sm:$0xf] %v1079
      %1208 = vst [vmem:[%s145 + $0xc] sm:$0xf] %v1080
      %1209 = vst [vmem:[%s145 + $0x10] sm:$0xf] %v1081
      %1210 = vst [vmem:[%s145 + $0x14] sm:$0xf] %v1082
      %1211 = vst [vmem:[%s145 + $0x18] sm:$0xf] %v1083
      %1212 = vst [vmem:[%s145 + $0x1c] sm:$0xf] %v1084
      %1213 = vst [vmem:[%s145 + $0x20] sm:$0xf] %v1085
      %1214 = vst [vmem:[%s145 + $0x24] sm:$0xf] %v1086
      %1215 = vst [vmem:[%s145 + $0x28] sm:$0xf] %v1087
      %1216 = vst [vmem:[%s145 + $0x2c] sm:$0xf] %v1088
      %1217 = vst [vmem:[%s145 + $0x30] sm:$0xf] %v1089
      %1218 = vst [vmem:[%s145 + $0x34] sm:$0xf] %v1090
      %1219 = vst [vmem:[%s145 + $0x38] sm:$0xf] %v1091
      %1220 = vst [vmem:[%s145 + $0x3c] sm:$0xf] %v1092
      %1221 = vst [vmem:[%s145 + $0x40] sm:$0xf] %v1093
      %1222 = vst [vmem:[%s145 + $0x44] sm:$0xf] %v1094
      %1223 = vst [vmem:[%s145 + $0x48] sm:$0xf] %v1095
      %1224 = vst [vmem:[%s145 + $0x4c] sm:$0xf] %v1096
      %1225 = vst [vmem:[%s145 + $0x50] sm:$0xf] %v1097
      %1226 = vst [vmem:[%s145 + $0x54] sm:$0xf] %v1098
      %1227 = vst [vmem:[%s145 + $0x58] sm:$0xf] %v1099
      %1228 = vst [vmem:[%s145 + $0x5c] sm:$0xf] %v1100
      %1229 = vst [vmem:[%s145 + $0x60] sm:$0xf] %v1101
      %1230 = vst [vmem:[%s145 + $0x64] sm:$0xf] %v1102
      %1231 = vst [vmem:[%s145 + $0x68] sm:$0xf] %v1103
      %1232 = vst [vmem:[%s145 + $0x6c] sm:$0xf] %v1104
      %1233 = vst [vmem:[%s145 + $0x70] sm:$0xf] %v1105
      %1234 = vst [vmem:[%s145 + $0x74] sm:$0xf] %v1106
      %1235 = vst [vmem:[%s145 + $0x78] sm:$0xf] %v1107
      %1236 = vst [vmem:[%s145 + $0x7c] sm:$0xf] %v1108
      %1237 = vst [vmem:[%s145 + $0x80] sm:$0xf] %v1109
      %1238 = vst [vmem:[%s145 + $0x84] sm:$0xf] %v1110
      %1239 = vst [vmem:[%s145 + $0x88] sm:$0xf] %v1111
      %1240 = vst [vmem:[%s145 + $0x8c] sm:$0xf] %v1112
      %1241 = vst [vmem:[%s145 + $0x90] sm:$0xf] %v1113
      %1242 = vst [vmem:[%s145 + $0x94] sm:$0xf] %v1114
      %1243 = vst [vmem:[%s145 + $0x98] sm:$0xf] %v1115
      %1244 = vst [vmem:[%s145 + $0x9c] sm:$0xf] %v1116
      %1245 = vst [vmem:[%s145 + $0xa0] sm:$0xf] %v1117
      %1246 = vst [vmem:[%s145 + $0xa4] sm:$0xf] %v1118
      %1247 = vst [vmem:[%s145 + $0xa8] sm:$0xf] %v1119
      %1248 = vst [vmem:[%s145 + $0xac] sm:$0xf] %v1120
      %1249 = vst [vmem:[%s145 + $0xb0] sm:$0xf] %v1121
      %1250 = vst [vmem:[%s145 + $0xb4] sm:$0xf] %v1122
      %1251 = vst [vmem:[%s145 + $0xb8] sm:$0xf] %v1123
      %1252 = vst [vmem:[%s145 + $0xbc] sm:$0xf] %v1124
      %1253 = vst [vmem:[%s145 + $0xc0] sm:$0xf] %v1125
      %1254 = vst [vmem:[%s145 + $0xc4] sm:$0xf] %v1126
      %1255 = vst [vmem:[%s145 + $0xc8] sm:$0xf] %v1127
      %1256 = vst [vmem:[%s145 + $0xcc] sm:$0xf] %v1128
      %1257 = vst [vmem:[%s145 + $0xd0] sm:$0xf] %v1129
      %1258 = vst [vmem:[%s145 + $0xd4] sm:$0xf] %v1130
      %1259 = vst [vmem:[%s145 + $0xd8] sm:$0xf] %v1131
      %1260 = vst [vmem:[%s145 + $0xdc] sm:$0xf] %v1132
      %1261 = vst [vmem:[%s145 + $0xe0] sm:$0xf] %v1133
      %1262 = vst [vmem:[%s145 + $0xe4] sm:$0xf] %v1134
      %1263 = vst [vmem:[%s145 + $0xe8] sm:$0xf] %v1135
      %1264 = vst [vmem:[%s145 + $0xec] sm:$0xf] %v1136
      %1265 = vst [vmem:[%s145 + $0xf0] sm:$0xf] %v1137
      %1266 = vst [vmem:[%s145 + $0xf4] sm:$0xf] %v1138
      %1267 = vst [vmem:[%s145 + $0xf8] sm:$0xf] %v1139
      %1268 = vst [vmem:[%s145 + $0xfc] sm:$0xf] %v1140
      %s1269 = smul.u32 64, %s13
      %p1270 = scmp.lt.s32.totalorder %s1269, 255
      %s1271 = scalar_select %p1270, %s1269, 255
      %s1272 = smul.addr %s1271, 4
      %s1273 = scalar_lea.vmem %s2, %s1272
      // Predicated region
      $region29: #{discriminator_forward.8} parent=27 // pred_check
        %p1274 = pneg %p78
      $region30: #{discriminator_forward.8} parent=27 // pred_check_branch
        %1276 = sbr.rel (%p1274) target = $region32
      $region31: #{discriminator_forward.8} parent=27 // pred_region
        %s1277 = smul.u32 64, %s13
      $region32: #{discriminator_forward.8} parent=27 // pred_fallthru
        _
    $region28: #{discriminator_forward.8} parent=5 // pred_fallthru
      _
    %p1278 = scmp.le.s32.totalorder 2, %s8
    // Predicated region
    $region33: #{discriminator_forward.8} parent=5 // pred_check
      %p1279 = pneg %p1278
    $region34: #{discriminator_forward.8} parent=5 // pred_check_branch
      %1281 = sbr.rel (%p1279) target = $region36
    $region35: #{discriminator_forward.8} parent=5 // pred_region
      %s1282 = ssub.s32 %s8, 2
      // Predicated region
      $region37: #{discriminator_forward.8} parent=35 // pred_check
        %p1283 = pneg %p84
      $region38: #{discriminator_forward.8} parent=35 // pred_check_branch
        %1285 = sbr.rel (%p1283) target = $region40
      $region39: #{discriminator_forward.8} parent=35 // pred_region
        %s1286 = smul.u32 64, %s14
        %p1287 = scmp.lt.s32.totalorder %s1286, 255
        %s1288 = scalar_select %p1287, %s1286, 255
        %s1289 = smul.addr %s1288, 4
        %s1290 = scalar_lea.vmem %s2, %s1289
      $region40: #{discriminator_forward.8} parent=35 // pred_fallthru
        _
    $region36: #{discriminator_forward.8} parent=5 // pred_fallthru
      _
  $region6: #{discriminator_forward.8} parent=0 // loop_footer
    %s12 = sadd.s32 1, %s8
  $region7: #{discriminator_forward.8} parent=0 // loop_footer_branch
    %7 = sbr.rel target = $region3
  $region8: #{discriminator_forward.8} parent=0 // loop_exit
    _

// kernel: discriminator_forward.9
$region0: #{discriminator_forward.9}
  #allocation0 [shape = 'u32[]', space=smem, size = 0x4, offset = 0x4, fixed_abs, tag = 'smem constant byte address 0x4 - core index']
  #allocation1 [shape = 'u32[144,128]{1,0:T(1,128)}', space=vmem, size = 0x12000, scoped, tag = 'internal scratch']
  %s0 = inlined_call_operand.vmem [shape: bf16[512,128], index: 0, kind: input, shape index: {}]
  %s1 = inlined_call_operand.vmem [shape: bf16[128,128], index: 1, kind: input, shape index: {}]
  %s2 = inlined_call_operand.vmem [shape: f32[512,128], index: 2, kind: output, shape index: {0}]
  %s3 = inlined_call_operand.vmem [shape: f32[1,8,128], index: 3, kind: output, shape index: {1}]
  %s4 = inlined_call_operand.vmem [shape: f32[1,8,128], index: 4, kind: output, shape index: {2}]
  %5 = xla_tuple %s2, %s3, %s4
  %s6 = sld [smem:[#allocation0]]
  $region34: #{discriminator_forward.9} parent=0
    _
  %s8 = ssub.s32 1, %s6
  %s9 = scalar_select 0, %s8, %s6
  // Predicated region
  $region2: #{discriminator_forward.9} parent=0 // pred_check
    _
  $region3: #{discriminator_forward.9} parent=0 // pred_check_branch
    %11 = sbr.rel (0) target = $region5
  $region4: #{discriminator_forward.9} parent=0 // pred_region
    _
  $region5: #{discriminator_forward.9} parent=0 // pred_fallthru
    _
  // Predicated region
  $region6: #{discriminator_forward.9} parent=0 // pred_check
    _
  $region7: #{discriminator_forward.9} parent=0 // pred_check_branch
    %13 = sbr.rel (0) target = $region9
  $region8: #{discriminator_forward.9} parent=0 // pred_region
    _
  $region9: #{discriminator_forward.9} parent=0 // pred_fallthru
    _
  %v15 = vld [vmem:[%s0] sm:$0xf]
  %v16 = vld [vmem:[%s0 + $0x4] sm:$0xf]
  %v17 = vld [vmem:[%s0 + $0x8] sm:$0xf]
  %v18 = vld [vmem:[%s0 + $0xc] sm:$0xf]
  %v19 = vld [vmem:[%s0 + $0x10] sm:$0xf]
  %v20 = vld [vmem:[%s0 + $0x14] sm:$0xf]
  %v21 = vld [vmem:[%s0 + $0x18] sm:$0xf]
  %v22 = vld [vmem:[%s0 + $0x1c] sm:$0xf]
  %v23 = vld [vmem:[%s0 + $0x20] sm:$0xf]
  %v24 = vld [vmem:[%s0 + $0x24] sm:$0xf]
  %v25 = vld [vmem:[%s0 + $0x28] sm:$0xf]
  %v26 = vld [vmem:[%s0 + $0x2c] sm:$0xf]
  %v27 = vld [vmem:[%s0 + $0x30] sm:$0xf]
  %v28 = vld [vmem:[%s0 + $0x34] sm:$0xf]
  %v29 = vld [vmem:[%s0 + $0x38] sm:$0xf]
  %v30 = vld [vmem:[%s0 + $0x3c] sm:$0xf]
  %v31 = vld [vmem:[%s0 + $0x40] sm:$0xf]
  %v32 = vld [vmem:[%s0 + $0x44] sm:$0xf]
  %v33 = vld [vmem:[%s0 + $0x48] sm:$0xf]
  %v34 = vld [vmem:[%s0 + $0x4c] sm:$0xf]
  %v35 = vld [vmem:[%s0 + $0x50] sm:$0xf]
  %v36 = vld [vmem:[%s0 + $0x54] sm:$0xf]
  %v37 = vld [vmem:[%s0 + $0x58] sm:$0xf]
  %v38 = vld [vmem:[%s0 + $0x5c] sm:$0xf]
  %v39 = vld [vmem:[%s0 + $0x60] sm:$0xf]
  %v40 = vld [vmem:[%s0 + $0x64] sm:$0xf]
  %v41 = vld [vmem:[%s0 + $0x68] sm:$0xf]
  %v42 = vld [vmem:[%s0 + $0x6c] sm:$0xf]
  %v43 = vld [vmem:[%s0 + $0x70] sm:$0xf]
  %v44 = vld [vmem:[%s0 + $0x74] sm:$0xf]
  %v45 = vld [vmem:[%s0 + $0x78] sm:$0xf]
  %v46 = vld [vmem:[%s0 + $0x7c] sm:$0xf]
  %v47 = vld [vmem:[%s0 + $0x80] sm:$0xf]
  %v48 = vld [vmem:[%s0 + $0x84] sm:$0xf]
  %v49 = vld [vmem:[%s0 + $0x88] sm:$0xf]
  %v50 = vld [vmem:[%s0 + $0x8c] sm:$0xf]
  %v51 = vld [vmem:[%s0 + $0x90] sm:$0xf]
  %v52 = vld [vmem:[%s0 + $0x94] sm:$0xf]
  %v53 = vld [vmem:[%s0 + $0x98] sm:$0xf]
  %v54 = vld [vmem:[%s0 + $0x9c] sm:$0xf]
  %v55 = vld [vmem:[%s0 + $0xa0] sm:$0xf]
  %v56 = vld [vmem:[%s0 + $0xa4] sm:$0xf]
  %v57 = vld [vmem:[%s0 + $0xa8] sm:$0xf]
  %v58 = vld [vmem:[%s0 + $0xac] sm:$0xf]
  %v59 = vld [vmem:[%s0 + $0xb0] sm:$0xf]
  %v60 = vld [vmem:[%s0 + $0xb4] sm:$0xf]
  %v61 = vld [vmem:[%s0 + $0xb8] sm:$0xf]
  %v62 = vld [vmem:[%s0 + $0xbc] sm:$0xf]
  %v63 = vld [vmem:[%s0 + $0xc0] sm:$0xf]
  %v64 = vld [vmem:[%s0 + $0xc4] sm:$0xf]
  %v65 = vld [vmem:[%s0 + $0xc8] sm:$0xf]
  %v66 = vld [vmem:[%s0 + $0xcc] sm:$0xf]
  %v67 = vld [vmem:[%s0 + $0xd0] sm:$0xf]
  %v68 = vld [vmem:[%s0 + $0xd4] sm:$0xf]
  %v69 = vld [vmem:[%s0 + $0xd8] sm:$0xf]
  %v70 = vld [vmem:[%s0 + $0xdc] sm:$0xf]
  %v71 = vld [vmem:[%s0 + $0xe0] sm:$0xf]
  %v72 = vld [vmem:[%s0 + $0xe4] sm:$0xf]
  %v73 = vld [vmem:[%s0 + $0xe8] sm:$0xf]
  %v74 = vld [vmem:[%s0 + $0xec] sm:$0xf]
  %v75 = vld [vmem:[%s0 + $0xf0] sm:$0xf]
  %v76 = vld [vmem:[%s0 + $0xf4] sm:$0xf]
  %v77 = vld [vmem:[%s0 + $0xf8] sm:$0xf]
  %v78 = vld [vmem:[%s0 + $0xfc] sm:$0xf]
  %v79 = vld [vmem:[%s1] sm:$0xf]
  %v80 = vld [vmem:[%s1 + $0x4] sm:$0xf]
  %v81 = vld [vmem:[%s1 + $0x8] sm:$0xf]
  %v82 = vld [vmem:[%s1 + $0xc] sm:$0xf]
  %v83 = vld [vmem:[%s1 + $0x10] sm:$0xf]
  %v84 = vld [vmem:[%s1 + $0x14] sm:$0xf]
  %v85 = vld [vmem:[%s1 + $0x18] sm:$0xf]
  %v86 = vld [vmem:[%s1 + $0x1c] sm:$0xf]
  %v87 = vld [vmem:[%s1 + $0x20] sm:$0xf]
  %v88 = vld [vmem:[%s1 + $0x24] sm:$0xf]
  %v89 = vld [vmem:[%s1 + $0x28] sm:$0xf]
  %v90 = vld [vmem:[%s1 + $0x2c] sm:$0xf]
  %v91 = vld [vmem:[%s1 + $0x30] sm:$0xf]
  %v92 = vld [vmem:[%s1 + $0x34] sm:$0xf]
  %v93 = vld [vmem:[%s1 + $0x38] sm:$0xf]
  %v94 = vld [vmem:[%s1 + $0x3c] sm:$0xf]
  %v159 = vunpack.c.l.b16 %v15
  %v160 = vunpack.c.l.b16 %v16
  %v161 = vunpack.c.l.b16 %v17
  %v162 = vunpack.c.l.b16 %v18
  %v163 = vunpack.c.l.b16 %v19
  %v164 = vunpack.c.l.b16 %v20
  %v165 = vunpack.c.l.b16 %v21
  %v166 = vunpack.c.l.b16 %v22
  %v167 = vunpack.c.l.b16 %v23
  %v168 = vunpack.c.l.b16 %v24
  %v169 = vunpack.c.l.b16 %v25
  %v170 = vunpack.c.l.b16 %v26
  %v171 = vunpack.c.l.b16 %v27
  %v172 = vunpack.c.l.b16 %v28
  %v173 = vunpack.c.l.b16 %v29
  %v174 = vunpack.c.l.b16 %v30
  %v175 = vunpack.c.l.b16 %v31
  %v176 = vunpack.c.l.b16 %v32
  %v177 = vunpack.c.l.b16 %v33
  %v178 = vunpack.c.l.b16 %v34
  %v179 = vunpack.c.l.b16 %v35
  %v180 = vunpack.c.l.b16 %v36
  %v181 = vunpack.c.l.b16 %v37
  %v182 = vunpack.c.l.b16 %v38
  %v183 = vunpack.c.l.b16 %v39
  %v184 = vunpack.c.l.b16 %v40
  %v185 = vunpack.c.l.b16 %v41
  %v186 = vunpack.c.l.b16 %v42
  %v187 = vunpack.c.l.b16 %v43
  %v188 = vunpack.c.l.b16 %v44
  %v189 = vunpack.c.l.b16 %v45
  %v190 = vunpack.c.l.b16 %v46
  %v191 = vunpack.c.l.b16 %v47
  %v192 = vunpack.c.l.b16 %v48
  %v193 = vunpack.c.l.b16 %v49
  %v194 = vunpack.c.l.b16 %v50
  %v195 = vunpack.c.l.b16 %v51
  %v196 = vunpack.c.l.b16 %v52
  %v197 = vunpack.c.l.b16 %v53
  %v198 = vunpack.c.l.b16 %v54
  %v199 = vunpack.c.l.b16 %v55
  %v200 = vunpack.c.l.b16 %v56
  %v201 = vunpack.c.l.b16 %v57
  %v202 = vunpack.c.l.b16 %v58
  %v203 = vunpack.c.l.b16 %v59
  %v204 = vunpack.c.l.b16 %v60
  %v205 = vunpack.c.l.b16 %v61
  %v206 = vunpack.c.l.b16 %v62
  %v207 = vunpack.c.l.b16 %v63
  %v208 = vunpack.c.l.b16 %v64
  %v209 = vunpack.c.l.b16 %v65
  %v210 = vunpack.c.l.b16 %v66
  %v211 = vunpack.c.l.b16 %v67
  %v212 = vunpack.c.l.b16 %v68
  %v213 = vunpack.c.l.b16 %v69
  %v214 = vunpack.c.l.b16 %v70
  %v215 = vunpack.c.l.b16 %v71
  %v216 = vunpack.c.l.b16 %v72
  %v217 = vunpack.c.l.b16 %v73
  %v218 = vunpack.c.l.b16 %v74
  %v219 = vunpack.c.l.b16 %v75
  %v220 = vunpack.c.l.b16 %v76
  %v221 = vunpack.c.l.b16 %v77
  %v222 = vunpack.c.l.b16 %v78
  %v223 = vpack.c.b16 %v160, %v159
  %v224 = vpack.c.b16 %v162, %v161
  %v225 = vpack.c.b16 %v164, %v163
  %v226 = vpack.c.b16 %v166, %v165
  %v227 = vpack.c.b16 %v168, %v167
  %v228 = vpack.c.b16 %v170, %v169
  %v229 = vpack.c.b16 %v172, %v171
  %v230 = vpack.c.b16 %v174, %v173
  %v231 = vpack.c.b16 %v176, %v175
  %v232 = vpack.c.b16 %v178, %v177
  %v233 = vpack.c.b16 %v180, %v179
  %v234 = vpack.c.b16 %v182, %v181
  %v235 = vpack.c.b16 %v184, %v183
  %v236 = vpack.c.b16 %v186, %v185
  %v237 = vpack.c.b16 %v188, %v187
  %v238 = vpack.c.b16 %v190, %v189
  %v239 = vpack.c.b16 %v192, %v191
  %v240 = vpack.c.b16 %v194, %v193
  %v241 = vpack.c.b16 %v196, %v195
  %v242 = vpack.c.b16 %v198, %v197
  %v243 = vpack.c.b16 %v200, %v199
  %v244 = vpack.c.b16 %v202, %v201
  %v245 = vpack.c.b16 %v204, %v203
  %v246 = vpack.c.b16 %v206, %v205
  %v247 = vpack.c.b16 %v208, %v207
  %v248 = vpack.c.b16 %v210, %v209
  %v249 = vpack.c.b16 %v212, %v211
  %v250 = vpack.c.b16 %v214, %v213
  %v251 = vpack.c.b16 %v216, %v215
  %v252 = vpack.c.b16 %v218, %v217
  %v253 = vpack.c.b16 %v220, %v219
  %v254 = vpack.c.b16 %v222, %v221
  %v303 = vunpack.c.l.b16 %v79
  %v304 = vunpack.c.l.b16 %v80
  %v305 = vunpack.c.l.b16 %v81
  %v306 = vunpack.c.l.b16 %v82
  %v307 = vunpack.c.l.b16 %v83
  %v308 = vunpack.c.l.b16 %v84
  %v309 = vunpack.c.l.b16 %v85
  %v310 = vunpack.c.l.b16 %v86
  %v311 = vunpack.c.l.b16 %v87
  %v312 = vunpack.c.l.b16 %v88
  %v313 = vunpack.c.l.b16 %v89
  %v314 = vunpack.c.l.b16 %v90
  %v315 = vunpack.c.l.b16 %v91
  %v316 = vunpack.c.l.b16 %v92
  %v317 = vunpack.c.l.b16 %v93
  %v318 = vunpack.c.l.b16 %v94
  %v319 = vpack.c.b16 %v304, %v303
  %v320 = vpack.c.b16 %v306, %v305
  %v321 = vpack.c.b16 %v308, %v307
  %v322 = vpack.c.b16 %v310, %v309
  %v323 = vpack.c.b16 %v312, %v311
  %v324 = vpack.c.b16 %v314, %v313
  %v325 = vpack.c.b16 %v316, %v315
  %v326 = vpack.c.b16 %v318, %v317
  %335 = vmatprep.subr.bf16.mxu0 0
  %336 = vmatpush1.bf16.msra.mxu0 %v326
  %337 = vmatprep.subr.bf16.mxu0 0
  %338 = vmatpush1.bf16.msra.mxu0 %v325
  %339 = vmatprep.subr.bf16.mxu0 0
  %340 = vmatpush1.bf16.msra.mxu0 %v324
  %341 = vmatprep.subr.bf16.mxu0 0
  %342 = vmatpush1.bf16.msra.mxu0 %v323
  %343 = vmatprep.subr.bf16.mxu0 0
  %344 = vmatpush1.bf16.msra.mxu0 %v322
  %345 = vmatprep.subr.bf16.mxu0 0
  %346 = vmatpush1.bf16.msra.mxu0 %v321
  %347 = vmatprep.subr.bf16.mxu0 0
  %348 = vmatpush1.bf16.msra.mxu0 %v320
  %349 = vmatprep.subr.bf16.mxu0 0
  %350 = vmatpush1.bf16.msra.mxu0 %v319
  %351 = vmatprep.subr.bf16.mxu0 0
  %352 = vmatpush2.bf16.msra.mxu0 0
  %353 = vmatprep.subr.bf16.mxu0 0
  %354 = vmatpush2.bf16.msra.mxu0 0
  %355 = vmatprep.subr.bf16.mxu0 0
  %356 = vmatpush2.bf16.msra.mxu0 0
  %357 = vmatprep.subr.bf16.mxu0 0
  %358 = vmatpush2.bf16.msra.mxu0 0
  %359 = vmatprep.subr.bf16.mxu0 0
  %360 = vmatpush2.bf16.msra.mxu0 0
  %361 = vmatprep.subr.bf16.mxu0 0
  %362 = vmatpush2.bf16.msra.mxu0 0
  %363 = vmatprep.subr.bf16.mxu0 0
  %364 = vmatpush2.bf16.msra.mxu0 0
  %365 = vmatprep.subr.bf16.mxu0 0
  %366 = vmatpush2.bf16.msra.mxu0 0
  %367 = vmatprep.mubr.bf16.mxu0 0
  %368 = vmatmul.mubr.bf16.gmra.mxu0 %v223
  %v369 = vpop.f32.mrf.mxu0
  %v370 = vadd.f32 0.0, %v369
  %v371 = vpop.f32.mrf.mxu0
  %v372 = vpop.f32.mrf.mxu0
  %v373 = vadd.f32 0.0, %v372
  %v374 = vpop.f32.mrf.mxu0
  %375 = vmatprep.mubr.bf16.mxu0 0
  %376 = vmatmul.mubr.bf16.gmra.mxu0 %v224
  %v377 = vpop.f32.mrf.mxu0
  %v378 = vadd.f32 0.0, %v377
  %v379 = vpop.f32.mrf.mxu0
  %v380 = vpop.f32.mrf.mxu0
  %v381 = vadd.f32 0.0, %v380
  %v382 = vpop.f32.mrf.mxu0
  %383 = vmatprep.mubr.bf16.mxu0 0
  %384 = vmatmul.mubr.bf16.gmra.mxu0 %v225
  %v385 = vpop.f32.mrf.mxu0
  %v386 = vadd.f32 0.0, %v385
  %v387 = vpop.f32.mrf.mxu0
  %v388 = vpop.f32.mrf.mxu0
  %v389 = vadd.f32 0.0, %v388
  %v390 = vpop.f32.mrf.mxu0
  %391 = vmatprep.mubr.bf16.mxu0 0
  %392 = vmatmul.mubr.bf16.gmra.mxu0 %v226
  %v393 = vpop.f32.mrf.mxu0
  %v394 = vadd.f32 0.0, %v393
  %v395 = vpop.f32.mrf.mxu0
  %v396 = vpop.f32.mrf.mxu0
  %v397 = vadd.f32 0.0, %v396
  %v398 = vpop.f32.mrf.mxu0
  %399 = vmatprep.mubr.bf16.mxu0 0
  %400 = vmatmul.mubr.bf16.gmra.mxu0 %v227
  %v401 = vpop.f32.mrf.mxu0
  %v402 = vadd.f32 0.0, %v401
  %v403 = vpop.f32.mrf.mxu0
  %v404 = vpop.f32.mrf.mxu0
  %v405 = vadd.f32 0.0, %v404
  %v406 = vpop.f32.mrf.mxu0
  %407 = vmatprep.mubr.bf16.mxu0 0
  %408 = vmatmul.mubr.bf16.gmra.mxu0 %v228
  %v409 = vpop.f32.mrf.mxu0
  %v410 = vadd.f32 0.0, %v409
  %v411 = vpop.f32.mrf.mxu0
  %v412 = vpop.f32.mrf.mxu0
  %v413 = vadd.f32 0.0, %v412
  %v414 = vpop.f32.mrf.mxu0
  %415 = vmatprep.mubr.bf16.mxu0 0
  %416 = vmatmul.mubr.bf16.gmra.mxu0 %v229
  %v417 = vpop.f32.mrf.mxu0
  %v418 = vadd.f32 0.0, %v417
  %v419 = vpop.f32.mrf.mxu0
  %v420 = vpop.f32.mrf.mxu0
  %v421 = vadd.f32 0.0, %v420
  %v422 = vpop.f32.mrf.mxu0
  %423 = vmatprep.mubr.bf16.mxu0 0
  %424 = vmatmul.mubr.bf16.gmra.mxu0 %v230
  %v425 = vpop.f32.mrf.mxu0
  %v426 = vadd.f32 0.0, %v425
  %v427 = vpop.f32.mrf.mxu0
  %v428 = vpop.f32.mrf.mxu0
  %v429 = vadd.f32 0.0, %v428
  %v430 = vpop.f32.mrf.mxu0
  %431 = vmatprep.mubr.bf16.mxu0 0
  %432 = vmatmul.mubr.bf16.gmra.mxu0 %v231
  %v433 = vpop.f32.mrf.mxu0
  %v434 = vadd.f32 0.0, %v433
  %v435 = vpop.f32.mrf.mxu0
  %v436 = vpop.f32.mrf.mxu0
  %v437 = vadd.f32 0.0, %v436
  %v438 = vpop.f32.mrf.mxu0
  %439 = vmatprep.mubr.bf16.mxu0 0
  %440 = vmatmul.mubr.bf16.gmra.mxu0 %v232
  %v441 = vpop.f32.mrf.mxu0
  %v442 = vadd.f32 0.0, %v441
  %v443 = vpop.f32.mrf.mxu0
  %v444 = vpop.f32.mrf.mxu0
  %v445 = vadd.f32 0.0, %v444
  %v446 = vpop.f32.mrf.mxu0
  %447 = vmatprep.mubr.bf16.mxu0 0
  %448 = vmatmul.mubr.bf16.gmra.mxu0 %v233
  %v449 = vpop.f32.mrf.mxu0
  %v450 = vadd.f32 0.0, %v449
  %v451 = vpop.f32.mrf.mxu0
  %v452 = vpop.f32.mrf.mxu0
  %v453 = vadd.f32 0.0, %v452
  %v454 = vpop.f32.mrf.mxu0
  %455 = vmatprep.mubr.bf16.mxu0 0
  %456 = vmatmul.mubr.bf16.gmra.mxu0 %v234
  %v457 = vpop.f32.mrf.mxu0
  %v458 = vadd.f32 0.0, %v457
  %v459 = vpop.f32.mrf.mxu0
  %v460 = vpop.f32.mrf.mxu0
  %v461 = vadd.f32 0.0, %v460
  %v462 = vpop.f32.mrf.mxu0
  %463 = vmatprep.mubr.bf16.mxu0 0
  %464 = vmatmul.mubr.bf16.gmra.mxu0 %v235
  %v465 = vpop.f32.mrf.mxu0
  %v466 = vadd.f32 0.0, %v465
  %v467 = vpop.f32.mrf.mxu0
  %v468 = vpop.f32.mrf.mxu0
  %v469 = vadd.f32 0.0, %v468
  %v470 = vpop.f32.mrf.mxu0
  %471 = vmatprep.mubr.bf16.mxu0 0
  %472 = vmatmul.mubr.bf16.gmra.mxu0 %v236
  %v473 = vpop.f32.mrf.mxu0
  %v474 = vadd.f32 0.0, %v473
  %v475 = vpop.f32.mrf.mxu0
  %v476 = vpop.f32.mrf.mxu0
  %v477 = vadd.f32 0.0, %v476
  %v478 = vpop.f32.mrf.mxu0
  %479 = vmatprep.mubr.bf16.mxu0 0
  %480 = vmatmul.mubr.bf16.gmra.mxu0 %v237
  %v481 = vpop.f32.mrf.mxu0
  %v482 = vadd.f32 0.0, %v481
  %v483 = vpop.f32.mrf.mxu0
  %v484 = vpop.f32.mrf.mxu0
  %v485 = vadd.f32 0.0, %v484
  %v486 = vpop.f32.mrf.mxu0
  %487 = vmatprep.mubr.bf16.mxu0 0
  %488 = vmatmul.mubr.bf16.gmra.mxu0 %v238
  %v489 = vpop.f32.mrf.mxu0
  %v490 = vadd.f32 0.0, %v489
  %v491 = vpop.f32.mrf.mxu0
  %v492 = vpop.f32.mrf.mxu0
  %v493 = vadd.f32 0.0, %v492
  %v494 = vpop.f32.mrf.mxu0
  %495 = vmatprep.mubr.bf16.mxu0 0
  %496 = vmatmul.mubr.bf16.gmra.mxu0 %v239
  %v497 = vpop.f32.mrf.mxu0
  %v498 = vadd.f32 0.0, %v497
  %v499 = vpop.f32.mrf.mxu0
  %v500 = vpop.f32.mrf.mxu0
  %v501 = vadd.f32 0.0, %v500
  %v502 = vpop.f32.mrf.mxu0
  %503 = vmatprep.mubr.bf16.mxu0 0
  %504 = vmatmul.mubr.bf16.gmra.mxu0 %v240
  %v505 = vpop.f32.mrf.mxu0
  %v506 = vadd.f32 0.0, %v505
  %v507 = vpop.f32.mrf.mxu0
  %v508 = vpop.f32.mrf.mxu0
  %v509 = vadd.f32 0.0, %v508
  %v510 = vpop.f32.mrf.mxu0
  %511 = vmatprep.mubr.bf16.mxu0 0
  %512 = vmatmul.mubr.bf16.gmra.mxu0 %v241
  %v513 = vpop.f32.mrf.mxu0
  %v514 = vadd.f32 0.0, %v513
  %v515 = vpop.f32.mrf.mxu0
  %v516 = vpop.f32.mrf.mxu0
  %v517 = vadd.f32 0.0, %v516
  %v518 = vpop.f32.mrf.mxu0
  %519 = vmatprep.mubr.bf16.mxu0 0
  %520 = vmatmul.mubr.bf16.gmra.mxu0 %v242
  %v521 = vpop.f32.mrf.mxu0
  %v522 = vadd.f32 0.0, %v521
  %v523 = vpop.f32.mrf.mxu0
  %v524 = vpop.f32.mrf.mxu0
  %v525 = vadd.f32 0.0, %v524
  %v526 = vpop.f32.mrf.mxu0
  %527 = vmatprep.mubr.bf16.mxu0 0
  %528 = vmatmul.mubr.bf16.gmra.mxu0 %v243
  %v529 = vpop.f32.mrf.mxu0
  %v530 = vadd.f32 0.0, %v529
  %v531 = vpop.f32.mrf.mxu0
  %v532 = vpop.f32.mrf.mxu0
  %v533 = vadd.f32 0.0, %v532
  %v534 = vpop.f32.mrf.mxu0
  %535 = vmatprep.mubr.bf16.mxu0 0
  %536 = vmatmul.mubr.bf16.gmra.mxu0 %v244
  %v537 = vpop.f32.mrf.mxu0
  %v538 = vadd.f32 0.0, %v537
  %v539 = vpop.f32.mrf.mxu0
  %v540 = vpop.f32.mrf.mxu0
  %v541 = vadd.f32 0.0, %v540
  %v542 = vpop.f32.mrf.mxu0
  %543 = vmatprep.mubr.bf16.mxu0 0
  %544 = vmatmul.mubr.bf16.gmra.mxu0 %v245
  %v545 = vpop.f32.mrf.mxu0
  %v546 = vadd.f32 0.0, %v545
  %v547 = vpop.f32.mrf.mxu0
  %v548 = vpop.f32.mrf.mxu0
  %v549 = vadd.f32 0.0, %v548
  %v550 = vpop.f32.mrf.mxu0
  %551 = vmatprep.mubr.bf16.mxu0 0
  %552 = vmatmul.mubr.bf16.gmra.mxu0 %v246
  %v553 = vpop.f32.mrf.mxu0
  %v554 = vadd.f32 0.0, %v553
  %v555 = vpop.f32.mrf.mxu0
  %v556 = vpop.f32.mrf.mxu0
  %v557 = vadd.f32 0.0, %v556
  %v558 = vpop.f32.mrf.mxu0
  %559 = vmatprep.mubr.bf16.mxu0 0
  %560 = vmatmul.mubr.bf16.gmra.mxu0 %v247
  %v561 = vpop.f32.mrf.mxu0
  %v562 = vadd.f32 0.0, %v561
  %v563 = vpop.f32.mrf.mxu0
  %v564 = vpop.f32.mrf.mxu0
  %v565 = vadd.f32 0.0, %v564
  %v566 = vpop.f32.mrf.mxu0
  %567 = vmatprep.mubr.bf16.mxu0 0
  %568 = vmatmul.mubr.bf16.gmra.mxu0 %v248
  %v569 = vpop.f32.mrf.mxu0
  %v570 = vadd.f32 0.0, %v569
  %v571 = vpop.f32.mrf.mxu0
  %v572 = vpop.f32.mrf.mxu0
  %v573 = vadd.f32 0.0, %v572
  %v574 = vpop.f32.mrf.mxu0
  %575 = vmatprep.mubr.bf16.mxu0 0
  %576 = vmatmul.mubr.bf16.gmra.mxu0 %v249
  %v577 = vpop.f32.mrf.mxu0
  %v578 = vadd.f32 0.0, %v577
  %v579 = vpop.f32.mrf.mxu0
  %v580 = vpop.f32.mrf.mxu0
  %v581 = vadd.f32 0.0, %v580
  %v582 = vpop.f32.mrf.mxu0
  %583 = vmatprep.mubr.bf16.mxu0 0
  %584 = vmatmul.mubr.bf16.gmra.mxu0 %v250
  %v585 = vpop.f32.mrf.mxu0
  %v586 = vadd.f32 0.0, %v585
  %v587 = vpop.f32.mrf.mxu0
  %v588 = vpop.f32.mrf.mxu0
  %v589 = vadd.f32 0.0, %v588
  %v590 = vpop.f32.mrf.mxu0
  %591 = vmatprep.mubr.bf16.mxu0 0
  %592 = vmatmul.mubr.bf16.gmra.mxu0 %v251
  %v593 = vpop.f32.mrf.mxu0
  %v594 = vadd.f32 0.0, %v593
  %v595 = vpop.f32.mrf.mxu0
  %v596 = vpop.f32.mrf.mxu0
  %v597 = vadd.f32 0.0, %v596
  %v598 = vpop.f32.mrf.mxu0
  %599 = vmatprep.mubr.bf16.mxu0 0
  %600 = vmatmul.mubr.bf16.gmra.mxu0 %v252
  %v601 = vpop.f32.mrf.mxu0
  %v602 = vadd.f32 0.0, %v601
  %v603 = vpop.f32.mrf.mxu0
  %v604 = vpop.f32.mrf.mxu0
  %v605 = vadd.f32 0.0, %v604
  %v606 = vpop.f32.mrf.mxu0
  %607 = vmatprep.mubr.bf16.mxu0 0
  %608 = vmatmul.mubr.bf16.gmra.mxu0 %v253
  %v609 = vpop.f32.mrf.mxu0
  %v610 = vadd.f32 0.0, %v609
  %v611 = vpop.f32.mrf.mxu0
  %v612 = vpop.f32.mrf.mxu0
  %v613 = vadd.f32 0.0, %v612
  %v614 = vpop.f32.mrf.mxu0
  %615 = vmatprep.mubr.bf16.mxu0 0
  %616 = vmatmul.mubr.bf16.gmra.mxu0 %v254
  %v617 = vpop.f32.mrf.mxu0
  %v618 = vadd.f32 0.0, %v617
  %v619 = vpop.f32.mrf.mxu0
  %v620 = vpop.f32.mrf.mxu0
  %v621 = vadd.f32 0.0, %v620
  %v622 = vpop.f32.mrf.mxu0
  %623 = vdwg.mxu0
  %v624 = vadd.f32 %v370, %v373
  %v625 = vadd.f32 %v624, %v378
  %v626 = vadd.f32 %v625, %v381
  %v627 = vadd.f32 %v626, %v386
  %v628 = vadd.f32 %v627, %v389
  %v629 = vadd.f32 %v628, %v394
  %v630 = vadd.f32 %v629, %v397
  %v631 = vadd.f32 %v630, %v402
  %v632 = vadd.f32 %v631, %v405
  %v633 = vadd.f32 %v632, %v410
  %v634 = vadd.f32 %v633, %v413
  %v635 = vadd.f32 %v634, %v418
  %v636 = vadd.f32 %v635, %v421
  %v637 = vadd.f32 %v636, %v426
  %v638 = vadd.f32 %v637, %v429
  %v639 = vadd.f32 %v638, %v434
  %v640 = vadd.f32 %v639, %v437
  %v641 = vadd.f32 %v640, %v442
  %v642 = vadd.f32 %v641, %v445
  %v643 = vadd.f32 %v642, %v450
  %v644 = vadd.f32 %v643, %v453
  %v645 = vadd.f32 %v644, %v458
  %v646 = vadd.f32 %v645, %v461
  %v647 = vadd.f32 %v646, %v466
  %v648 = vadd.f32 %v647, %v469
  %v649 = vadd.f32 %v648, %v474
  %v650 = vadd.f32 %v649, %v477
  %v651 = vadd.f32 %v650, %v482
  %v652 = vadd.f32 %v651, %v485
  %v653 = vadd.f32 %v652, %v490
  %v654 = vadd.f32 %v653, %v493
  %v655 = vadd.f32 %v654, %v498
  %v656 = vadd.f32 %v655, %v501
  %v657 = vadd.f32 %v656, %v506
  %v658 = vadd.f32 %v657, %v509
  %v659 = vadd.f32 %v658, %v514
  %v660 = vadd.f32 %v659, %v517
  %v661 = vadd.f32 %v660, %v522
  %v662 = vadd.f32 %v661, %v525
  %v663 = vadd.f32 %v662, %v530
  %v664 = vadd.f32 %v663, %v533
  %v665 = vadd.f32 %v664, %v538
  %v666 = vadd.f32 %v665, %v541
  %v667 = vadd.f32 %v666, %v546
  %v668 = vadd.f32 %v667, %v549
  %v669 = vadd.f32 %v668, %v554
  %v670 = vadd.f32 %v669, %v557
  %v671 = vadd.f32 %v670, %v562
  %v672 = vadd.f32 %v671, %v565
  %v673 = vadd.f32 %v672, %v570
  %v674 = vadd.f32 %v673, %v573
  %v675 = vadd.f32 %v674, %v578
  %v676 = vadd.f32 %v675, %v581
  %v677 = vadd.f32 %v676, %v586
  %v678 = vadd.f32 %v677, %v589
  %v679 = vadd.f32 %v678, %v594
  %v680 = vadd.f32 %v679, %v597
  %v681 = vadd.f32 %v680, %v602
  %v682 = vadd.f32 %v681, %v605
  %v683 = vadd.f32 %v682, %v610
  %v684 = vadd.f32 %v683, %v613
  %v685 = vadd.f32 %v684, %v618
  %v686 = vadd.f32 %v685, %v621
  %687 = vst [vmem:[%s3] sm:$0xff] %v686
  %v688 = vmul.f32 %v370, %v370
  %v689 = vmul.f32 %v373, %v373
  %v690 = vmul.f32 %v378, %v378
  %v691 = vmul.f32 %v381, %v381
  %v692 = vmul.f32 %v386, %v386
  %v693 = vmul.f32 %v389, %v389
  %v694 = vmul.f32 %v394, %v394
  %v695 = vmul.f32 %v397, %v397
  %v696 = vmul.f32 %v402, %v402
  %v697 = vmul.f32 %v405, %v405
  %v698 = vmul.f32 %v410, %v410
  %v699 = vmul.f32 %v413, %v413
  %v700 = vmul.f32 %v418, %v418
  %v701 = vmul.f32 %v421, %v421
  %v702 = vmul.f32 %v426, %v426
  %v703 = vmul.f32 %v429, %v429
  %v704 = vmul.f32 %v434, %v434
  %v705 = vmul.f32 %v437, %v437
  %v706 = vmul.f32 %v442, %v442
  %v707 = vmul.f32 %v445, %v445
  %v708 = vmul.f32 %v450, %v450
  %v709 = vmul.f32 %v453, %v453
  %v710 = vmul.f32 %v458, %v458
  %v711 = vmul.f32 %v461, %v461
  %v712 = vmul.f32 %v466, %v466
  %v713 = vmul.f32 %v469, %v469
  %v714 = vmul.f32 %v474, %v474
  %v715 = vmul.f32 %v477, %v477
  %v716 = vmul.f32 %v482, %v482
  %v717 = vmul.f32 %v485, %v485
  %v718 = vmul.f32 %v490, %v490
  %v719 = vmul.f32 %v493, %v493
  %v720 = vmul.f32 %v498, %v498
  %v721 = vmul.f32 %v501, %v501
  %v722 = vmul.f32 %v506, %v506
  %v723 = vmul.f32 %v509, %v509
  %v724 = vmul.f32 %v514, %v514
  %v725 = vmul.f32 %v517, %v517
  %v726 = vmul.f32 %v522, %v522
  %v727 = vmul.f32 %v525, %v525
  %v728 = vmul.f32 %v530, %v530
  %v729 = vmul.f32 %v533, %v533
  %v730 = vmul.f32 %v538, %v538
  %v731 = vmul.f32 %v541, %v541
  %v732 = vmul.f32 %v546, %v546
  %v733 = vmul.f32 %v549, %v549
  %v734 = vmul.f32 %v554, %v554
  %v735 = vmul.f32 %v557, %v557
  %v736 = vmul.f32 %v562, %v562
  %v737 = vmul.f32 %v565, %v565
  %v738 = vmul.f32 %v570, %v570
  %v739 = vmul.f32 %v573, %v573
  %v740 = vmul.f32 %v578, %v578
  %v741 = vmul.f32 %v581, %v581
  %v742 = vmul.f32 %v586, %v586
  %v743 = vmul.f32 %v589, %v589
  %v744 = vmul.f32 %v594, %v594
  %v745 = vmul.f32 %v597, %v597
  %v746 = vmul.f32 %v602, %v602
  %v747 = vmul.f32 %v605, %v605
  %v748 = vmul.f32 %v610, %v610
  %v749 = vmul.f32 %v613, %v613
  %v750 = vmul.f32 %v618, %v618
  %v751 = vmul.f32 %v621, %v621
  %v752 = vadd.f32 %v688, %v689
  %v753 = vadd.f32 %v752, %v690
  %v754 = vadd.f32 %v753, %v691
  %v755 = vadd.f32 %v754, %v692
  %v756 = vadd.f32 %v755, %v693
  %v757 = vadd.f32 %v756, %v694
  %v758 = vadd.f32 %v757, %v695
  %v759 = vadd.f32 %v758, %v696
  %v760 = vadd.f32 %v759, %v697
  %v761 = vadd.f32 %v760, %v698
  %v762 = vadd.f32 %v761, %v699
  %v763 = vadd.f32 %v762, %v700
  %v764 = vadd.f32 %v763, %v701
  %v765 = vadd.f32 %v764, %v702
  %v766 = vadd.f32 %v765, %v703
  %v767 = vadd.f32 %v766, %v704
  %v768 = vadd.f32 %v767, %v705
  %v769 = vadd.f32 %v768, %v706
  %v770 = vadd.f32 %v769, %v707
  %v771 = vadd.f32 %v770, %v708
  %v772 = vadd.f32 %v771, %v709
  %v773 = vadd.f32 %v772, %v710
  %v774 = vadd.f32 %v773, %v711
  %v775 = vadd.f32 %v774, %v712
  %v776 = vadd.f32 %v775, %v713
  %v777 = vadd.f32 %v776, %v714
  %v778 = vadd.f32 %v777, %v715
  %v779 = vadd.f32 %v778, %v716
  %v780 = vadd.f32 %v779, %v717
  %v781 = vadd.f32 %v780, %v718
  %v782 = vadd.f32 %v781, %v719
  %v783 = vadd.f32 %v782, %v720
  %v784 = vadd.f32 %v783, %v721
  %v785 = vadd.f32 %v784, %v722
  %v786 = vadd.f32 %v785, %v723
  %v787 = vadd.f32 %v786, %v724
  %v788 = vadd.f32 %v787, %v725
  %v789 = vadd.f32 %v788, %v726
  %v790 = vadd.f32 %v789, %v727
  %v791 = vadd.f32 %v790, %v728
  %v792 = vadd.f32 %v791, %v729
  %v793 = vadd.f32 %v792, %v730
  %v794 = vadd.f32 %v793, %v731
  %v795 = vadd.f32 %v794, %v732
  %v796 = vadd.f32 %v795, %v733
  %v797 = vadd.f32 %v796, %v734
  %v798 = vadd.f32 %v797, %v735
  %v799 = vadd.f32 %v798, %v736
  %v800 = vadd.f32 %v799, %v737
  %v801 = vadd.f32 %v800, %v738
  %v802 = vadd.f32 %v801, %v739
  %v803 = vadd.f32 %v802, %v740
  %v804 = vadd.f32 %v803, %v741
  %v805 = vadd.f32 %v804, %v742
  %v806 = vadd.f32 %v805, %v743
  %v807 = vadd.f32 %v806, %v744
  %v808 = vadd.f32 %v807, %v745
  %v809 = vadd.f32 %v808, %v746
  %v810 = vadd.f32 %v809, %v747
  %v811 = vadd.f32 %v810, %v748
  %v812 = vadd.f32 %v811, %v749
  %v813 = vadd.f32 %v812, %v750
  %v814 = vadd.f32 %v813, %v751
  %815 = vst [vmem:[%s4] sm:$0xff] %v814
  %816 = vst [vmem:[%s2] sm:$0xff] %v370
  %817 = vst [vmem:[%s2 + $0x8] sm:$0xff] %v373
  %818 = vst [vmem:[%s2 + $0x10] sm:$0xff] %v378
  %819 = vst [vmem:[%s2 + $0x18] sm:$0xff] %v381
  %820 = vst [vmem:[%s2 + $0x20] sm:$0xff] %v386
  %821 = vst [vmem:[%s2 + $0x28] sm:$0xff] %v389
  %822 = vst [vmem:[%s2 + $0x30] sm:$0xff] %v394
  %823 = vst [vmem:[%s2 + $0x38] sm:$0xff] %v397
  %824 = vst [vmem:[%s2 + $0x40] sm:$0xff] %v402
  %825 = vst [vmem:[%s2 + $0x48] sm:$0xff] %v405
  %826 = vst [vmem:[%s2 + $0x50] sm:$0xff] %v410
  %827 = vst [vmem:[%s2 + $0x58] sm:$0xff] %v413
  %828 = vst [vmem:[%s2 + $0x60] sm:$0xff] %v418
  %829 = vst [vmem:[%s2 + $0x68] sm:$0xff] %v421
  %830 = vst [vmem:[%s2 + $0x70] sm:$0xff] %v426
  %831 = vst [vmem:[%s2 + $0x78] sm:$0xff] %v429
  %832 = vst [vmem:[%s2 + $0x80] sm:$0xff] %v434
  %833 = vst [vmem:[%s2 + $0x88] sm:$0xff] %v437
  %834 = vst [vmem:[%s2 + $0x90] sm:$0xff] %v442
  %835 = vst [vmem:[%s2 + $0x98] sm:$0xff] %v445
  %836 = vst [vmem:[%s2 + $0xa0] sm:$0xff] %v450
  %837 = vst [vmem:[%s2 + $0xa8] sm:$0xff] %v453
  %838 = vst [vmem:[%s2 + $0xb0] sm:$0xff] %v458
  %839 = vst [vmem:[%s2 + $0xb8] sm:$0xff] %v461
  %840 = vst [vmem:[%s2 + $0xc0] sm:$0xff] %v466
  %841 = vst [vmem:[%s2 + $0xc8] sm:$0xff] %v469
  %842 = vst [vmem:[%s2 + $0xd0] sm:$0xff] %v474
  %843 = vst [vmem:[%s2 + $0xd8] sm:$0xff] %v477
  %844 = vst [vmem:[%s2 + $0xe0] sm:$0xff] %v482
  %845 = vst [vmem:[%s2 + $0xe8] sm:$0xff] %v485
  %846 = vst [vmem:[%s2 + $0xf0] sm:$0xff] %v490
  %847 = vst [vmem:[%s2 + $0xf8] sm:$0xff] %v493
  %848 = vst [vmem:[%s2 + $0x100] sm:$0xff] %v498
  %849 = vst [vmem:[%s2 + $0x108] sm:$0xff] %v501
  %850 = vst [vmem:[%s2 + $0x110] sm:$0xff] %v506
  %851 = vst [vmem:[%s2 + $0x118] sm:$0xff] %v509
  %852 = vst [vmem:[%s2 + $0x120] sm:$0xff] %v514
  %853 = vst [vmem:[%s2 + $0x128] sm:$0xff] %v517
  %854 = vst [vmem:[%s2 + $0x130] sm:$0xff] %v522
  %855 = vst [vmem:[%s2 + $0x138] sm:$0xff] %v525
  %856 = vst [vmem:[%s2 + $0x140] sm:$0xff] %v530
  %857 = vst [vmem:[%s2 + $0x148] sm:$0xff] %v533
  %858 = vst [vmem:[%s2 + $0x150] sm:$0xff] %v538
  %859 = vst [vmem:[%s2 + $0x158] sm:$0xff] %v541
  %860 = vst [vmem:[%s2 + $0x160] sm:$0xff] %v546
  %861 = vst [vmem:[%s2 + $0x168] sm:$0xff] %v549
  %862 = vst [vmem:[%s2 + $0x170] sm:$0xff] %v554
  %863 = vst [vmem:[%s2 + $0x178] sm:$0xff] %v557
  %864 = vst [vmem:[%s2 + $0x180] sm:$0xff] %v562
  %865 = vst [vmem:[%s2 + $0x188] sm:$0xff] %v565
  %866 = vst [vmem:[%s2 + $0x190] sm:$0xff] %v570
  %867 = vst [vmem:[%s2 + $0x198] sm:$0xff] %v573
  %868 = vst [vmem:[%s2 + $0x1a0] sm:$0xff] %v578
  %869 = vst [vmem:[%s2 + $0x1a8] sm:$0xff] %v581
  %870 = vst [vmem:[%s2 + $0x1b0] sm:$0xff] %v586
  %871 = vst [vmem:[%s2 + $0x1b8] sm:$0xff] %v589
  %872 = vst [vmem:[%s2 + $0x1c0] sm:$0xff] %v594
  %873 = vst [vmem:[%s2 + $0x1c8] sm:$0xff] %v597
  %874 = vst [vmem:[%s2 + $0x1d0] sm:$0xff] %v602
  %875 = vst [vmem:[%s2 + $0x1d8] sm:$0xff] %v605
  %876 = vst [vmem:[%s2 + $0x1e0] sm:$0xff] %v610
  %877 = vst [vmem:[%s2 + $0x1e8] sm:$0xff] %v613
  %878 = vst [vmem:[%s2 + $0x1f0] sm:$0xff] %v618
  %879 = vst [vmem:[%s2 + $0x1f8] sm:$0xff] %v621
  // Predicated region
  $region10: #{discriminator_forward.9} parent=0 // pred_check
    _
  $region11: #{discriminator_forward.9} parent=0 // pred_check_branch
    %881 = sbr.rel (0) target = $region13
  $region12: #{discriminator_forward.9} parent=0 // pred_region
    _
  $region13: #{discriminator_forward.9} parent=0 // pred_fallthru
    _
  // Predicated region
  $region14: #{discriminator_forward.9} parent=0 // pred_check
    _
  $region15: #{discriminator_forward.9} parent=0 // pred_check_branch
    %883 = sbr.rel (0) target = $region17
  $region16: #{discriminator_forward.9} parent=0 // pred_region
    _
  $region17: #{discriminator_forward.9} parent=0 // pred_fallthru
    _
  // Predicated region
  $region18: #{discriminator_forward.9} parent=0 // pred_check
    _
  $region19: #{discriminator_forward.9} parent=0 // pred_check_branch
    %885 = sbr.rel (0) target = $region21
  $region20: #{discriminator_forward.9} parent=0 // pred_region
    _
  $region21: #{discriminator_forward.9} parent=0 // pred_fallthru
    _
  // Predicated region
  $region22: #{discriminator_forward.9} parent=0 // pred_check
    _
  $region23: #{discriminator_forward.9} parent=0 // pred_check_branch
    %887 = sbr.rel (0) target = $region25
  $region24: #{discriminator_forward.9} parent=0 // pred_region
    _
  $region25: #{discriminator_forward.9} parent=0 // pred_fallthru
    _
  // Predicated region
  $region26: #{discriminator_forward.9} parent=0 // pred_check
    _
  $region27: #{discriminator_forward.9} parent=0 // pred_check_branch
    %889 = sbr.rel (0) target = $region29
  $region28: #{discriminator_forward.9} parent=0 // pred_region
    _
  $region29: #{discriminator_forward.9} parent=0 // pred_fallthru
    _
  // Predicated region
  $region30: #{discriminator_forward.9} parent=0 // pred_check
    _
  $region31: #{discriminator_forward.9} parent=0 // pred_check_branch
    %891 = sbr.rel (0) target = $region33
  $region32: #{discriminator_forward.9} parent=0 // pred_region
    _
  $region33: #{discriminator_forward.9} parent=0 // pred_fallthru
    _

// kernel: discriminator_forward.10
$region0: #{discriminator_forward.10}
  #allocation0 [shape = 'u32[]', space=smem, size = 0x4, offset = 0x4, fixed_abs, tag = 'smem constant byte address 0x4 - core index']
  #allocation1 [shape = 'u32[144,128]{1,0:T(1,128)}', space=vmem, size = 0x12000, scoped, tag = 'internal scratch']
  %s0 = inlined_call_operand.vmem [shape: f32[512,128], index: 0, kind: input, shape index: {}]
  %s1 = inlined_call_operand.vmem [shape: f32[1,128], index: 1, kind: input, shape index: {}]
  %s2 = inlined_call_operand.vmem [shape: f32[1,128], index: 2, kind: input, shape index: {}]
  %s3 = inlined_call_operand.vmem [shape: bf16[512,128], index: 3, kind: output, shape index: {}]
  %s4 = sld [smem:[#allocation0]]
  $region22: #{discriminator_forward.10} parent=0
    _
  %s6 = ssub.s32 1, %s4
  %s7 = scalar_select 0, %s6, %s4
  // Predicated region
  $region2: #{discriminator_forward.10} parent=0 // pred_check
    _
  $region3: #{discriminator_forward.10} parent=0 // pred_check_branch
    %9 = sbr.rel (0) target = $region5
  $region4: #{discriminator_forward.10} parent=0 // pred_region
    _
  $region5: #{discriminator_forward.10} parent=0 // pred_fallthru
    _
  // Predicated region
  $region6: #{discriminator_forward.10} parent=0 // pred_check
    _
  $region7: #{discriminator_forward.10} parent=0 // pred_check_branch
    %11 = sbr.rel (0) target = $region9
  $region8: #{discriminator_forward.10} parent=0 // pred_region
    _
  $region9: #{discriminator_forward.10} parent=0 // pred_fallthru
    _
  // Predicated region
  $region10: #{discriminator_forward.10} parent=0 // pred_check
    _
  $region11: #{discriminator_forward.10} parent=0 // pred_check_branch
    %13 = sbr.rel (0) target = $region13
  $region12: #{discriminator_forward.10} parent=0 // pred_region
    _
  $region13: #{discriminator_forward.10} parent=0 // pred_fallthru
    _
  %v14 = vld [vmem:[%s0] sm:$0xff]
  %v15 = vld [vmem:[%s0 + $0x8] sm:$0xff]
  %v16 = vld [vmem:[%s0 + $0x10] sm:$0xff]
  %v17 = vld [vmem:[%s0 + $0x18] sm:$0xff]
  %v18 = vld [vmem:[%s0 + $0x20] sm:$0xff]
  %v19 = vld [vmem:[%s0 + $0x28] sm:$0xff]
  %v20 = vld [vmem:[%s0 + $0x30] sm:$0xff]
  %v21 = vld [vmem:[%s0 + $0x38] sm:$0xff]
  %v22 = vld [vmem:[%s0 + $0x40] sm:$0xff]
  %v23 = vld [vmem:[%s0 + $0x48] sm:$0xff]
  %v24 = vld [vmem:[%s0 + $0x50] sm:$0xff]
  %v25 = vld [vmem:[%s0 + $0x58] sm:$0xff]
  %v26 = vld [vmem:[%s0 + $0x60] sm:$0xff]
  %v27 = vld [vmem:[%s0 + $0x68] sm:$0xff]
  %v28 = vld [vmem:[%s0 + $0x70] sm:$0xff]
  %v29 = vld [vmem:[%s0 + $0x78] sm:$0xff]
  %v30 = vld [vmem:[%s0 + $0x80] sm:$0xff]
  %v31 = vld [vmem:[%s0 + $0x88] sm:$0xff]
  %v32 = vld [vmem:[%s0 + $0x90] sm:$0xff]
  %v33 = vld [vmem:[%s0 + $0x98] sm:$0xff]
  %v34 = vld [vmem:[%s0 + $0xa0] sm:$0xff]
  %v35 = vld [vmem:[%s0 + $0xa8] sm:$0xff]
  %v36 = vld [vmem:[%s0 + $0xb0] sm:$0xff]
  %v37 = vld [vmem:[%s0 + $0xb8] sm:$0xff]
  %v38 = vld [vmem:[%s0 + $0xc0] sm:$0xff]
  %v39 = vld [vmem:[%s0 + $0xc8] sm:$0xff]
  %v40 = vld [vmem:[%s0 + $0xd0] sm:$0xff]
  %v41 = vld [vmem:[%s0 + $0xd8] sm:$0xff]
  %v42 = vld [vmem:[%s0 + $0xe0] sm:$0xff]
  %v43 = vld [vmem:[%s0 + $0xe8] sm:$0xff]
  %v44 = vld [vmem:[%s0 + $0xf0] sm:$0xff]
  %v45 = vld [vmem:[%s0 + $0xf8] sm:$0xff]
  %v46 = vld [vmem:[%s0 + $0x100] sm:$0xff]
  %v47 = vld [vmem:[%s0 + $0x108] sm:$0xff]
  %v48 = vld [vmem:[%s0 + $0x110] sm:$0xff]
  %v49 = vld [vmem:[%s0 + $0x118] sm:$0xff]
  %v50 = vld [vmem:[%s0 + $0x120] sm:$0xff]
  %v51 = vld [vmem:[%s0 + $0x128] sm:$0xff]
  %v52 = vld [vmem:[%s0 + $0x130] sm:$0xff]
  %v53 = vld [vmem:[%s0 + $0x138] sm:$0xff]
  %v54 = vld [vmem:[%s0 + $0x140] sm:$0xff]
  %v55 = vld [vmem:[%s0 + $0x148] sm:$0xff]
  %v56 = vld [vmem:[%s0 + $0x150] sm:$0xff]
  %v57 = vld [vmem:[%s0 + $0x158] sm:$0xff]
  %v58 = vld [vmem:[%s0 + $0x160] sm:$0xff]
  %v59 = vld [vmem:[%s0 + $0x168] sm:$0xff]
  %v60 = vld [vmem:[%s0 + $0x170] sm:$0xff]
  %v61 = vld [vmem:[%s0 + $0x178] sm:$0xff]
  %v62 = vld [vmem:[%s0 + $0x180] sm:$0xff]
  %v63 = vld [vmem:[%s0 + $0x188] sm:$0xff]
  %v64 = vld [vmem:[%s0 + $0x190] sm:$0xff]
  %v65 = vld [vmem:[%s0 + $0x198] sm:$0xff]
  %v66 = vld [vmem:[%s0 + $0x1a0] sm:$0xff]
  %v67 = vld [vmem:[%s0 + $0x1a8] sm:$0xff]
  %v68 = vld [vmem:[%s0 + $0x1b0] sm:$0xff]
  %v69 = vld [vmem:[%s0 + $0x1b8] sm:$0xff]
  %v70 = vld [vmem:[%s0 + $0x1c0] sm:$0xff]
  %v71 = vld [vmem:[%s0 + $0x1c8] sm:$0xff]
  %v72 = vld [vmem:[%s0 + $0x1d0] sm:$0xff]
  %v73 = vld [vmem:[%s0 + $0x1d8] sm:$0xff]
  %v74 = vld [vmem:[%s0 + $0x1e0] sm:$0xff]
  %v75 = vld [vmem:[%s0 + $0x1e8] sm:$0xff]
  %v76 = vld [vmem:[%s0 + $0x1f0] sm:$0xff]
  %v77 = vld [vmem:[%s0 + $0x1f8] sm:$0xff]
  %v78 = vld [vmem:[%s1] sm:$0x1]
  %v80 = vlaneseq
  %v81 = vshrl.u32 %v80, 7
  %v82 = vsub.s32 0, %v81
  %v83 = vrot.slane %v78, %v82
  %v85 = vmul.f32 %v14, %v83
  %v86 = vmul.f32 %v15, %v83
  %v87 = vmul.f32 %v16, %v83
  %v88 = vmul.f32 %v17, %v83
  %v89 = vmul.f32 %v18, %v83
  %v90 = vmul.f32 %v19, %v83
  %v91 = vmul.f32 %v20, %v83
  %v92 = vmul.f32 %v21, %v83
  %v93 = vmul.f32 %v22, %v83
  %v94 = vmul.f32 %v23, %v83
  %v95 = vmul.f32 %v24, %v83
  %v96 = vmul.f32 %v25, %v83
  %v97 = vmul.f32 %v26, %v83
  %v98 = vmul.f32 %v27, %v83
  %v99 = vmul.f32 %v28, %v83
  %v100 = vmul.f32 %v29, %v83
  %v101 = vmul.f32 %v30, %v83
  %v102 = vmul.f32 %v31, %v83
  %v103 = vmul.f32 %v32, %v83
  %v104 = vmul.f32 %v33, %v83
  %v105 = vmul.f32 %v34, %v83
  %v106 = vmul.f32 %v35, %v83
  %v107 = vmul.f32 %v36, %v83
  %v108 = vmul.f32 %v37, %v83
  %v109 = vmul.f32 %v38, %v83
  %v110 = vmul.f32 %v39, %v83
  %v111 = vmul.f32 %v40, %v83
  %v112 = vmul.f32 %v41, %v83
  %v113 = vmul.f32 %v42, %v83
  %v114 = vmul.f32 %v43, %v83
  %v115 = vmul.f32 %v44, %v83
  %v116 = vmul.f32 %v45, %v83
  %v117 = vmul.f32 %v46, %v83
  %v118 = vmul.f32 %v47, %v83
  %v119 = vmul.f32 %v48, %v83
  %v120 = vmul.f32 %v49, %v83
  %v121 = vmul.f32 %v50, %v83
  %v122 = vmul.f32 %v51, %v83
  %v123 = vmul.f32 %v52, %v83
  %v124 = vmul.f32 %v53, %v83
  %v125 = vmul.f32 %v54, %v83
  %v126 = vmul.f32 %v55, %v83
  %v127 = vmul.f32 %v56, %v83
  %v128 = vmul.f32 %v57, %v83
  %v129 = vmul.f32 %v58, %v83
  %v130 = vmul.f32 %v59, %v83
  %v131 = vmul.f32 %v60, %v83
  %v132 = vmul.f32 %v61, %v83
  %v133 = vmul.f32 %v62, %v83
  %v134 = vmul.f32 %v63, %v83
  %v135 = vmul.f32 %v64, %v83
  %v136 = vmul.f32 %v65, %v83
  %v137 = vmul.f32 %v66, %v83
  %v138 = vmul.f32 %v67, %v83
  %v139 = vmul.f32 %v68, %v83
  %v140 = vmul.f32 %v69, %v83
  %v141 = vmul.f32 %v70, %v83
  %v142 = vmul.f32 %v71, %v83
  %v143 = vmul.f32 %v72, %v83
  %v144 = vmul.f32 %v73, %v83
  %v145 = vmul.f32 %v74, %v83
  %v146 = vmul.f32 %v75, %v83
  %v147 = vmul.f32 %v76, %v83
  %v148 = vmul.f32 %v77, %v83
  %v149 = vld [vmem:[%s2] sm:$0x1]
  %v151 = vlaneseq
  %v152 = vshrl.u32 %v151, 7
  %v153 = vsub.s32 0, %v152
  %v154 = vrot.slane %v149, %v153
  %v156 = vadd.f32 %v85, %v154
  %v157 = vadd.f32 %v86, %v154
  %v158 = vadd.f32 %v87, %v154
  %v159 = vadd.f32 %v88, %v154
  %v160 = vadd.f32 %v89, %v154
  %v161 = vadd.f32 %v90, %v154
  %v162 = vadd.f32 %v91, %v154
  %v163 = vadd.f32 %v92, %v154
  %v164 = vadd.f32 %v93, %v154
  %v165 = vadd.f32 %v94, %v154
  %v166 = vadd.f32 %v95, %v154
  %v167 = vadd.f32 %v96, %v154
  %v168 = vadd.f32 %v97, %v154
  %v169 = vadd.f32 %v98, %v154
  %v170 = vadd.f32 %v99, %v154
  %v171 = vadd.f32 %v100, %v154
  %v172 = vadd.f32 %v101, %v154
  %v173 = vadd.f32 %v102, %v154
  %v174 = vadd.f32 %v103, %v154
  %v175 = vadd.f32 %v104, %v154
  %v176 = vadd.f32 %v105, %v154
  %v177 = vadd.f32 %v106, %v154
  %v178 = vadd.f32 %v107, %v154
  %v179 = vadd.f32 %v108, %v154
  %v180 = vadd.f32 %v109, %v154
  %v181 = vadd.f32 %v110, %v154
  %v182 = vadd.f32 %v111, %v154
  %v183 = vadd.f32 %v112, %v154
  %v184 = vadd.f32 %v113, %v154
  %v185 = vadd.f32 %v114, %v154
  %v186 = vadd.f32 %v115, %v154
  %v187 = vadd.f32 %v116, %v154
  %v188 = vadd.f32 %v117, %v154
  %v189 = vadd.f32 %v118, %v154
  %v190 = vadd.f32 %v119, %v154
  %v191 = vadd.f32 %v120, %v154
  %v192 = vadd.f32 %v121, %v154
  %v193 = vadd.f32 %v122, %v154
  %v194 = vadd.f32 %v123, %v154
  %v195 = vadd.f32 %v124, %v154
  %v196 = vadd.f32 %v125, %v154
  %v197 = vadd.f32 %v126, %v154
  %v198 = vadd.f32 %v127, %v154
  %v199 = vadd.f32 %v128, %v154
  %v200 = vadd.f32 %v129, %v154
  %v201 = vadd.f32 %v130, %v154
  %v202 = vadd.f32 %v131, %v154
  %v203 = vadd.f32 %v132, %v154
  %v204 = vadd.f32 %v133, %v154
  %v205 = vadd.f32 %v134, %v154
  %v206 = vadd.f32 %v135, %v154
  %v207 = vadd.f32 %v136, %v154
  %v208 = vadd.f32 %v137, %v154
  %v209 = vadd.f32 %v138, %v154
  %v210 = vadd.f32 %v139, %v154
  %v211 = vadd.f32 %v140, %v154
  %v212 = vadd.f32 %v141, %v154
  %v213 = vadd.f32 %v142, %v154
  %v214 = vadd.f32 %v143, %v154
  %v215 = vadd.f32 %v144, %v154
  %v216 = vadd.f32 %v145, %v154
  %v217 = vadd.f32 %v146, %v154
  %v218 = vadd.f32 %v147, %v154
  %v219 = vadd.f32 %v148, %v154
  %vm220 = vcmp.gt.f32.partialorder %v156, 0.0
  %vm221 = vcmp.gt.f32.partialorder %v157, 0.0
  %vm222 = vcmp.gt.f32.partialorder %v158, 0.0
  %vm223 = vcmp.gt.f32.partialorder %v159, 0.0
  %vm224 = vcmp.gt.f32.partialorder %v160, 0.0
  %vm225 = vcmp.gt.f32.partialorder %v161, 0.0
  %vm226 = vcmp.gt.f32.partialorder %v162, 0.0
  %vm227 = vcmp.gt.f32.partialorder %v163, 0.0
  %vm228 = vcmp.gt.f32.partialorder %v164, 0.0
  %vm229 = vcmp.gt.f32.partialorder %v165, 0.0
  %vm230 = vcmp.gt.f32.partialorder %v166, 0.0
  %vm231 = vcmp.gt.f32.partialorder %v167, 0.0
  %vm232 = vcmp.gt.f32.partialorder %v168, 0.0
  %vm233 = vcmp.gt.f32.partialorder %v169, 0.0
  %vm234 = vcmp.gt.f32.partialorder %v170, 0.0
  %vm235 = vcmp.gt.f32.partialorder %v171, 0.0
  %vm236 = vcmp.gt.f32.partialorder %v172, 0.0
  %vm237 = vcmp.gt.f32.partialorder %v173, 0.0
  %vm238 = vcmp.gt.f32.partialorder %v174, 0.0
  %vm239 = vcmp.gt.f32.partialorder %v175, 0.0
  %vm240 = vcmp.gt.f32.partialorder %v176, 0.0
  %vm241 = vcmp.gt.f32.partialorder %v177, 0.0
  %vm242 = vcmp.gt.f32.partialorder %v178, 0.0
  %vm243 = vcmp.gt.f32.partialorder %v179, 0.0
  %vm244 = vcmp.gt.f32.partialorder %v180, 0.0
  %vm245 = vcmp.gt.f32.partialorder %v181, 0.0
  %vm246 = vcmp.gt.f32.partialorder %v182, 0.0
  %vm247 = vcmp.gt.f32.partialorder %v183, 0.0
  %vm248 = vcmp.gt.f32.partialorder %v184, 0.0
  %vm249 = vcmp.gt.f32.partialorder %v185, 0.0
  %vm250 = vcmp.gt.f32.partialorder %v186, 0.0
  %vm251 = vcmp.gt.f32.partialorder %v187, 0.0
  %vm252 = vcmp.gt.f32.partialorder %v188, 0.0
  %vm253 = vcmp.gt.f32.partialorder %v189, 0.0
  %vm254 = vcmp.gt.f32.partialorder %v190, 0.0
  %vm255 = vcmp.gt.f32.partialorder %v191, 0.0
  %vm256 = vcmp.gt.f32.partialorder %v192, 0.0
  %vm257 = vcmp.gt.f32.partialorder %v193, 0.0
  %vm258 = vcmp.gt.f32.partialorder %v194, 0.0
  %vm259 = vcmp.gt.f32.partialorder %v195, 0.0
  %vm260 = vcmp.gt.f32.partialorder %v196, 0.0
  %vm261 = vcmp.gt.f32.partialorder %v197, 0.0
  %vm262 = vcmp.gt.f32.partialorder %v198, 0.0
  %vm263 = vcmp.gt.f32.partialorder %v199, 0.0
  %vm264 = vcmp.gt.f32.partialorder %v200, 0.0
  %vm265 = vcmp.gt.f32.partialorder %v201, 0.0
  %vm266 = vcmp.gt.f32.partialorder %v202, 0.0
  %vm267 = vcmp.gt.f32.partialorder %v203, 0.0
  %vm268 = vcmp.gt.f32.partialorder %v204, 0.0
  %vm269 = vcmp.gt.f32.partialorder %v205, 0.0
  %vm270 = vcmp.gt.f32.partialorder %v206, 0.0
  %vm271 = vcmp.gt.f32.partialorder %v207, 0.0
  %vm272 = vcmp.gt.f32.partialorder %v208, 0.0
  %vm273 = vcmp.gt.f32.partialorder %v209, 0.0
  %vm274 = vcmp.gt.f32.partialorder %v210, 0.0
  %vm275 = vcmp.gt.f32.partialorder %v211, 0.0
  %vm276 = vcmp.gt.f32.partialorder %v212, 0.0
  %vm277 = vcmp.gt.f32.partialorder %v213, 0.0
  %vm278 = vcmp.gt.f32.partialorder %v214, 0.0
  %vm279 = vcmp.gt.f32.partialorder %v215, 0.0
  %vm280 = vcmp.gt.f32.partialorder %v216, 0.0
  %vm281 = vcmp.gt.f32.partialorder %v217, 0.0
  %vm282 = vcmp.gt.f32.partialorder %v218, 0.0
  %vm283 = vcmp.gt.f32.partialorder %v219, 0.0
  %v284 = vmul.f32 %v156, 0.2
  %v285 = vmul.f32 %v157, 0.2
  %v286 = vmul.f32 %v158, 0.2
  %v287 = vmul.f32 %v159, 0.2
  %v288 = vmul.f32 %v160, 0.2
  %v289 = vmul.f32 %v161, 0.2
  %v290 = vmul.f32 %v162, 0.2
  %v291 = vmul.f32 %v163, 0.2
  %v292 = vmul.f32 %v164, 0.2
  %v293 = vmul.f32 %v165, 0.2
  %v294 = vmul.f32 %v166, 0.2
  %v295 = vmul.f32 %v167, 0.2
  %v296 = vmul.f32 %v168, 0.2
  %v297 = vmul.f32 %v169, 0.2
  %v298 = vmul.f32 %v170, 0.2
  %v299 = vmul.f32 %v171, 0.2
  %v300 = vmul.f32 %v172, 0.2
  %v301 = vmul.f32 %v173, 0.2
  %v302 = vmul.f32 %v174, 0.2
  %v303 = vmul.f32 %v175, 0.2
  %v304 = vmul.f32 %v176, 0.2
  %v305 = vmul.f32 %v177, 0.2
  %v306 = vmul.f32 %v178, 0.2
  %v307 = vmul.f32 %v179, 0.2
  %v308 = vmul.f32 %v180, 0.2
  %v309 = vmul.f32 %v181, 0.2
  %v310 = vmul.f32 %v182, 0.2
  %v311 = vmul.f32 %v183, 0.2
  %v312 = vmul.f32 %v184, 0.2
  %v313 = vmul.f32 %v185, 0.2
  %v314 = vmul.f32 %v186, 0.2
  %v315 = vmul.f32 %v187, 0.2
  %v316 = vmul.f32 %v188, 0.2
  %v317 = vmul.f32 %v189, 0.2
  %v318 = vmul.f32 %v190, 0.2
  %v319 = vmul.f32 %v191, 0.2
  %v320 = vmul.f32 %v192, 0.2
  %v321 = vmul.f32 %v193, 0.2
  %v322 = vmul.f32 %v194, 0.2
  %v323 = vmul.f32 %v195, 0.2
  %v324 = vmul.f32 %v196, 0.2
  %v325 = vmul.f32 %v197, 0.2
  %v326 = vmul.f32 %v198, 0.2
  %v327 = vmul.f32 %v199, 0.2
  %v328 = vmul.f32 %v200, 0.2
  %v329 = vmul.f32 %v201, 0.2
  %v330 = vmul.f32 %v202, 0.2
  %v331 = vmul.f32 %v203, 0.2
  %v332 = vmul.f32 %v204, 0.2
  %v333 = vmul.f32 %v205, 0.2
  %v334 = vmul.f32 %v206, 0.2
  %v335 = vmul.f32 %v207, 0.2
  %v336 = vmul.f32 %v208, 0.2
  %v337 = vmul.f32 %v209, 0.2
  %v338 = vmul.f32 %v210, 0.2
  %v339 = vmul.f32 %v211, 0.2
  %v340 = vmul.f32 %v212, 0.2
  %v341 = vmul.f32 %v213, 0.2
  %v342 = vmul.f32 %v214, 0.2
  %v343 = vmul.f32 %v215, 0.2
  %v344 = vmul.f32 %v216, 0.2
  %v345 = vmul.f32 %v217, 0.2
  %v346 = vmul.f32 %v218, 0.2
  %v347 = vmul.f32 %v219, 0.2
  %v348 = vsel %vm220, %v156, %v284
  %v349 = vsel %vm221, %v157, %v285
  %v350 = vsel %vm222, %v158, %v286
  %v351 = vsel %vm223, %v159, %v287
  %v352 = vsel %vm224, %v160, %v288
  %v353 = vsel %vm225, %v161, %v289
  %v354 = vsel %vm226, %v162, %v290
  %v355 = vsel %vm227, %v163, %v291
  %v356 = vsel %vm228, %v164, %v292
  %v357 = vsel %vm229, %v165, %v293
  %v358 = vsel %vm230, %v166, %v294
  %v359 = vsel %vm231, %v167, %v295
  %v360 = vsel %vm232, %v168, %v296
  %v361 = vsel %vm233, %v169, %v297
  %v362 = vsel %vm234, %v170, %v298
  %v363 = vsel %vm235, %v171, %v299
  %v364 = vsel %vm236, %v172, %v300
  %v365 = vsel %vm237, %v173, %v301
  %v366 = vsel %vm238, %v174, %v302
  %v367 = vsel %vm239, %v175, %v303
  %v368 = vsel %vm240, %v176, %v304
  %v369 = vsel %vm241, %v177, %v305
  %v370 = vsel %vm242, %v178, %v306
  %v371 = vsel %vm243, %v179, %v307
  %v372 = vsel %vm244, %v180, %v308
  %v373 = vsel %vm245, %v181, %v309
  %v374 = vsel %vm246, %v182, %v310
  %v375 = vsel %vm247, %v183, %v311
  %v376 = vsel %vm248, %v184, %v312
  %v377 = vsel %vm249, %v185, %v313
  %v378 = vsel %vm250, %v186, %v314
  %v379 = vsel %vm251, %v187, %v315
  %v380 = vsel %vm252, %v188, %v316
  %v381 = vsel %vm253, %v189, %v317
  %v382 = vsel %vm254, %v190, %v318
  %v383 = vsel %vm255, %v191, %v319
  %v384 = vsel %vm256, %v192, %v320
  %v385 = vsel %vm257, %v193, %v321
  %v386 = vsel %vm258, %v194, %v322
  %v387 = vsel %vm259, %v195, %v323
  %v388 = vsel %vm260, %v196, %v324
  %v389 = vsel %vm261, %v197, %v325
  %v390 = vsel %vm262, %v198, %v326
  %v391 = vsel %vm263, %v199, %v327
  %v392 = vsel %vm264, %v200, %v328
  %v393 = vsel %vm265, %v201, %v329
  %v394 = vsel %vm266, %v202, %v330
  %v395 = vsel %vm267, %v203, %v331
  %v396 = vsel %vm268, %v204, %v332
  %v397 = vsel %vm269, %v205, %v333
  %v398 = vsel %vm270, %v206, %v334
  %v399 = vsel %vm271, %v207, %v335
  %v400 = vsel %vm272, %v208, %v336
  %v401 = vsel %vm273, %v209, %v337
  %v402 = vsel %vm274, %v210, %v338
  %v403 = vsel %vm275, %v211, %v339
  %v404 = vsel %vm276, %v212, %v340
  %v405 = vsel %vm277, %v213, %v341
  %v406 = vsel %vm278, %v214, %v342
  %v407 = vsel %vm279, %v215, %v343
  %v408 = vsel %vm280, %v216, %v344
  %v409 = vsel %vm281, %v217, %v345
  %v410 = vsel %vm282, %v218, %v346
  %v411 = vsel %vm283, %v219, %v347
  %v412 = vpack.c.bf16 %v349, %v348
  %v413 = vpack.c.bf16 %v351, %v350
  %v414 = vpack.c.bf16 %v353, %v352
  %v415 = vpack.c.bf16 %v355, %v354
  %v416 = vpack.c.bf16 %v357, %v356
  %v417 = vpack.c.bf16 %v359, %v358
  %v418 = vpack.c.bf16 %v361, %v360
  %v419 = vpack.c.bf16 %v363, %v362
  %v420 = vpack.c.bf16 %v365, %v364
  %v421 = vpack.c.bf16 %v367, %v366
  %v422 = vpack.c.bf16 %v369, %v368
  %v423 = vpack.c.bf16 %v371, %v370
  %v424 = vpack.c.bf16 %v373, %v372
  %v425 = vpack.c.bf16 %v375, %v374
  %v426 = vpack.c.bf16 %v377, %v376
  %v427 = vpack.c.bf16 %v379, %v378
  %v428 = vpack.c.bf16 %v381, %v380
  %v429 = vpack.c.bf16 %v383, %v382
  %v430 = vpack.c.bf16 %v385, %v384
  %v431 = vpack.c.bf16 %v387, %v386
  %v432 = vpack.c.bf16 %v389, %v388
  %v433 = vpack.c.bf16 %v391, %v390
  %v434 = vpack.c.bf16 %v393, %v392
  %v435 = vpack.c.bf16 %v395, %v394
  %v436 = vpack.c.bf16 %v397, %v396
  %v437 = vpack.c.bf16 %v399, %v398
  %v438 = vpack.c.bf16 %v401, %v400
  %v439 = vpack.c.bf16 %v403, %v402
  %v440 = vpack.c.bf16 %v405, %v404
  %v441 = vpack.c.bf16 %v407, %v406
  %v442 = vpack.c.bf16 %v409, %v408
  %v443 = vpack.c.bf16 %v411, %v410
  %v476 = vunpack.c.l.b16 %v412
  %v477 = vunpack.c.h.b16 %v412
  %v478 = vunpack.c.l.b16 %v413
  %v479 = vunpack.c.h.b16 %v413
  %v480 = vunpack.c.l.b16 %v414
  %v481 = vunpack.c.h.b16 %v414
  %v482 = vunpack.c.l.b16 %v415
  %v483 = vunpack.c.h.b16 %v415
  %v484 = vunpack.c.l.b16 %v416
  %v485 = vunpack.c.h.b16 %v416
  %v486 = vunpack.c.l.b16 %v417
  %v487 = vunpack.c.h.b16 %v417
  %v488 = vunpack.c.l.b16 %v418
  %v489 = vunpack.c.h.b16 %v418
  %v490 = vunpack.c.l.b16 %v419
  %v491 = vunpack.c.h.b16 %v419
  %v492 = vunpack.c.l.b16 %v420
  %v493 = vunpack.c.h.b16 %v420
  %v494 = vunpack.c.l.b16 %v421
  %v495 = vunpack.c.h.b16 %v421
  %v496 = vunpack.c.l.b16 %v422
  %v497 = vunpack.c.h.b16 %v422
  %v498 = vunpack.c.l.b16 %v423
  %v499 = vunpack.c.h.b16 %v423
  %v500 = vunpack.c.l.b16 %v424
  %v501 = vunpack.c.h.b16 %v424
  %v502 = vunpack.c.l.b16 %v425
  %v503 = vunpack.c.h.b16 %v425
  %v504 = vunpack.c.l.b16 %v426
  %v505 = vunpack.c.h.b16 %v426
  %v506 = vunpack.c.l.b16 %v427
  %v507 = vunpack.c.h.b16 %v427
  %v508 = vunpack.c.l.b16 %v428
  %v509 = vunpack.c.h.b16 %v428
  %v510 = vunpack.c.l.b16 %v429
  %v511 = vunpack.c.h.b16 %v429
  %v512 = vunpack.c.l.b16 %v430
  %v513 = vunpack.c.h.b16 %v430
  %v514 = vunpack.c.l.b16 %v431
  %v515 = vunpack.c.h.b16 %v431
  %v516 = vunpack.c.l.b16 %v432
  %v517 = vunpack.c.h.b16 %v432
  %v518 = vunpack.c.l.b16 %v433
  %v519 = vunpack.c.h.b16 %v433
  %v520 = vunpack.c.l.b16 %v434
  %v521 = vunpack.c.h.b16 %v434
  %v522 = vunpack.c.l.b16 %v435
  %v523 = vunpack.c.h.b16 %v435
  %v524 = vunpack.c.l.b16 %v436
  %v525 = vunpack.c.h.b16 %v436
  %v526 = vunpack.c.l.b16 %v437
  %v527 = vunpack.c.h.b16 %v437
  %v528 = vunpack.c.l.b16 %v438
  %v529 = vunpack.c.h.b16 %v438
  %v530 = vunpack.c.l.b16 %v439
  %v531 = vunpack.c.h.b16 %v439
  %v532 = vunpack.c.l.b16 %v440
  %v533 = vunpack.c.h.b16 %v440
  %v534 = vunpack.c.l.b16 %v441
  %v535 = vunpack.c.h.b16 %v441
  %v536 = vunpack.c.l.b16 %v442
  %v537 = vunpack.c.h.b16 %v442
  %v538 = vunpack.c.l.b16 %v443
  %v539 = vunpack.c.h.b16 %v443
  %v540 = vpack.c.b16 %v476, %v476
  %v541 = vpack.c.b16 %v477, %v477
  %v542 = vpack.c.b16 %v478, %v478
  %v543 = vpack.c.b16 %v479, %v479
  %v544 = vpack.c.b16 %v480, %v480
  %v545 = vpack.c.b16 %v481, %v481
  %v546 = vpack.c.b16 %v482, %v482
  %v547 = vpack.c.b16 %v483, %v483
  %v548 = vpack.c.b16 %v484, %v484
  %v549 = vpack.c.b16 %v485, %v485
  %v550 = vpack.c.b16 %v486, %v486
  %v551 = vpack.c.b16 %v487, %v487
  %v552 = vpack.c.b16 %v488, %v488
  %v553 = vpack.c.b16 %v489, %v489
  %v554 = vpack.c.b16 %v490, %v490
  %v555 = vpack.c.b16 %v491, %v491
  %v556 = vpack.c.b16 %v492, %v492
  %v557 = vpack.c.b16 %v493, %v493
  %v558 = vpack.c.b16 %v494, %v494
  %v559 = vpack.c.b16 %v495, %v495
  %v560 = vpack.c.b16 %v496, %v496
  %v561 = vpack.c.b16 %v497, %v497
  %v562 = vpack.c.b16 %v498, %v498
  %v563 = vpack.c.b16 %v499, %v499
  %v564 = vpack.c.b16 %v500, %v500
  %v565 = vpack.c.b16 %v501, %v501
  %v566 = vpack.c.b16 %v502, %v502
  %v567 = vpack.c.b16 %v503, %v503
  %v568 = vpack.c.b16 %v504, %v504
  %v569 = vpack.c.b16 %v505, %v505
  %v570 = vpack.c.b16 %v506, %v506
  %v571 = vpack.c.b16 %v507, %v507
  %v572 = vpack.c.b16 %v508, %v508
  %v573 = vpack.c.b16 %v509, %v509
  %v574 = vpack.c.b16 %v510, %v510
  %v575 = vpack.c.b16 %v511, %v511
  %v576 = vpack.c.b16 %v512, %v512
  %v577 = vpack.c.b16 %v513, %v513
  %v578 = vpack.c.b16 %v514, %v514
  %v579 = vpack.c.b16 %v515, %v515
  %v580 = vpack.c.b16 %v516, %v516
  %v581 = vpack.c.b16 %v517, %v517
  %v582 = vpack.c.b16 %v518, %v518
  %v583 = vpack.c.b16 %v519, %v519
  %v584 = vpack.c.b16 %v520, %v520
  %v585 = vpack.c.b16 %v521, %v521
  %v586 = vpack.c.b16 %v522, %v522
  %v587 = vpack.c.b16 %v523, %v523
  %v588 = vpack.c.b16 %v524, %v524
  %v589 = vpack.c.b16 %v525, %v525
  %v590 = vpack.c.b16 %v526, %v526
  %v591 = vpack.c.b16 %v527, %v527
  %v592 = vpack.c.b16 %v528, %v528
  %v593 = vpack.c.b16 %v529, %v529
  %v594 = vpack.c.b16 %v530, %v530
  %v595 = vpack.c.b16 %v531, %v531
  %v596 = vpack.c.b16 %v532, %v532
  %v597 = vpack.c.b16 %v533, %v533
  %v598 = vpack.c.b16 %v534, %v534
  %v599 = vpack.c.b16 %v535, %v535
  %v600 = vpack.c.b16 %v536, %v536
  %v601 = vpack.c.b16 %v537, %v537
  %v602 = vpack.c.b16 %v538, %v538
  %v603 = vpack.c.b16 %v539, %v539
  %668 = vst [vmem:[%s3] sm:$0xf] %v540
  %669 = vst [vmem:[%s3 + $0x4] sm:$0xf] %v541
  %670 = vst [vmem:[%s3 + $0x8] sm:$0xf] %v542
  %671 = vst [vmem:[%s3 + $0xc] sm:$0xf] %v543
  %672 = vst [vmem:[%s3 + $0x10] sm:$0xf] %v544
  %673 = vst [vmem:[%s3 + $0x14] sm:$0xf] %v545
  %674 = vst [vmem:[%s3 + $0x18] sm:$0xf] %v546
  %675 = vst [vmem:[%s3 + $0x1c] sm:$0xf] %v547
  %676 = vst [vmem:[%s3 + $0x20] sm:$0xf] %v548
  %677 = vst [vmem:[%s3 + $0x24] sm:$0xf] %v549
  %678 = vst [vmem:[%s3 + $0x28] sm:$0xf] %v550
  %679 = vst [vmem:[%s3 + $0x2c] sm:$0xf] %v551
  %680 = vst [vmem:[%s3 + $0x30] sm:$0xf] %v552
  %681 = vst [vmem:[%s3 + $0x34] sm:$0xf] %v553
  %682 = vst [vmem:[%s3 + $0x38] sm:$0xf] %v554
  %683 = vst [vmem:[%s3 + $0x3c] sm:$0xf] %v555
  %684 = vst [vmem:[%s3 + $0x40] sm:$0xf] %v556
  %685 = vst [vmem:[%s3 + $0x44] sm:$0xf] %v557
  %686 = vst [vmem:[%s3 + $0x48] sm:$0xf] %v558
  %687 = vst [vmem:[%s3 + $0x4c] sm:$0xf] %v559
  %688 = vst [vmem:[%s3 + $0x50] sm:$0xf] %v560
  %689 = vst [vmem:[%s3 + $0x54] sm:$0xf] %v561
  %690 = vst [vmem:[%s3 + $0x58] sm:$0xf] %v562
  %691 = vst [vmem:[%s3 + $0x5c] sm:$0xf] %v563
  %692 = vst [vmem:[%s3 + $0x60] sm:$0xf] %v564
  %693 = vst [vmem:[%s3 + $0x64] sm:$0xf] %v565
  %694 = vst [vmem:[%s3 + $0x68] sm:$0xf] %v566
  %695 = vst [vmem:[%s3 + $0x6c] sm:$0xf] %v567
  %696 = vst [vmem:[%s3 + $0x70] sm:$0xf] %v568
  %697 = vst [vmem:[%s3 + $0x74] sm:$0xf] %v569
  %698 = vst [vmem:[%s3 + $0x78] sm:$0xf] %v570
  %699 = vst [vmem:[%s3 + $0x7c] sm:$0xf] %v571
  %700 = vst [vmem:[%s3 + $0x80] sm:$0xf] %v572
  %701 = vst [vmem:[%s3 + $0x84] sm:$0xf] %v573
  %702 = vst [vmem:[%s3 + $0x88] sm:$0xf] %v574
  %703 = vst [vmem:[%s3 + $0x8c] sm:$0xf] %v575
  %704 = vst [vmem:[%s3 + $0x90] sm:$0xf] %v576
  %705 = vst [vmem:[%s3 + $0x94] sm:$0xf] %v577
  %706 = vst [vmem:[%s3 + $0x98] sm:$0xf] %v578
  %707 = vst [vmem:[%s3 + $0x9c] sm:$0xf] %v579
  %708 = vst [vmem:[%s3 + $0xa0] sm:$0xf] %v580
  %709 = vst [vmem:[%s3 + $0xa4] sm:$0xf] %v581
  %710 = vst [vmem:[%s3 + $0xa8] sm:$0xf] %v582
  %711 = vst [vmem:[%s3 + $0xac] sm:$0xf] %v583
  %712 = vst [vmem:[%s3 + $0xb0] sm:$0xf] %v584
  %713 = vst [vmem:[%s3 + $0xb4] sm:$0xf] %v585
  %714 = vst [vmem:[%s3 + $0xb8] sm:$0xf] %v586
  %715 = vst [vmem:[%s3 + $0xbc] sm:$0xf] %v587
  %716 = vst [vmem:[%s3 + $0xc0] sm:$0xf] %v588
  %717 = vst [vmem:[%s3 + $0xc4] sm:$0xf] %v589
  %718 = vst [vmem:[%s3 + $0xc8] sm:$0xf] %v590
  %719 = vst [vmem:[%s3 + $0xcc] sm:$0xf] %v591
  %720 = vst [vmem:[%s3 + $0xd0] sm:$0xf] %v592
  %721 = vst [vmem:[%s3 + $0xd4] sm:$0xf] %v593
  %722 = vst [vmem:[%s3 + $0xd8] sm:$0xf] %v594
  %723 = vst [vmem:[%s3 + $0xdc] sm:$0xf] %v595
  %724 = vst [vmem:[%s3 + $0xe0] sm:$0xf] %v596
  %725 = vst [vmem:[%s3 + $0xe4] sm:$0xf] %v597
  %726 = vst [vmem:[%s3 + $0xe8] sm:$0xf] %v598
  %727 = vst [vmem:[%s3 + $0xec] sm:$0xf] %v599
  %728 = vst [vmem:[%s3 + $0xf0] sm:$0xf] %v600
  %729 = vst [vmem:[%s3 + $0xf4] sm:$0xf] %v601
  %730 = vst [vmem:[%s3 + $0xf8] sm:$0xf] %v602
  %731 = vst [vmem:[%s3 + $0xfc] sm:$0xf] %v603
  // Predicated region
  $region14: #{discriminator_forward.10} parent=0 // pred_check
    _
  $region15: #{discriminator_forward.10} parent=0 // pred_check_branch
    %733 = sbr.rel (0) target = $region17
  $region16: #{discriminator_forward.10} parent=0 // pred_region
    _
  $region17: #{discriminator_forward.10} parent=0 // pred_fallthru
    _
  // Predicated region
  $region18: #{discriminator_forward.10} parent=0 // pred_check
    _
  $region19: #{discriminator_forward.10} parent=0 // pred_check_branch
    %735 = sbr.rel (0) target = $region21
  $region20: #{discriminator_forward.10} parent=0 // pred_region
    _
  $region21: #{discriminator_forward.10} parent=0 // pred_fallthru
    _

// kernel: discriminator_forward.11
$region0: #{discriminator_forward.11}
  #allocation0 [shape = 'u32[]', space=smem, size = 0x4, offset = 0x4, fixed_abs, tag = 'smem constant byte address 0x4 - core index']
  #allocation1 [shape = 'u32[144,128]{1,0:T(1,128)}', space=vmem, size = 0x12000, scoped, tag = 'internal scratch']
  %s0 = inlined_call_operand.vmem [shape: bf16[128,256], index: 0, kind: input, shape index: {}]
  %s1 = inlined_call_operand.vmem [shape: bf16[256,128], index: 1, kind: input, shape index: {}]
  %s2 = inlined_call_operand.vmem [shape: f32[128,128], index: 2, kind: output, shape index: {0}]
  %s3 = inlined_call_operand.vmem [shape: f32[1,8,128], index: 3, kind: output, shape index: {1}]
  %s4 = inlined_call_operand.vmem [shape: f32[1,8,128], index: 4, kind: output, shape index: {2}]
  %5 = xla_tuple %s2, %s3, %s4
  %s6 = sld [smem:[#allocation0]]
  $region34: #{discriminator_forward.11} parent=0
    _
  %s8 = ssub.s32 1, %s6
  %s9 = scalar_select 0, %s8, %s6
  // Predicated region
  $region2: #{discriminator_forward.11} parent=0 // pred_check
    _
  $region3: #{discriminator_forward.11} parent=0 // pred_check_branch
    %11 = sbr.rel (0) target = $region5
  $region4: #{discriminator_forward.11} parent=0 // pred_region
    _
  $region5: #{discriminator_forward.11} parent=0 // pred_fallthru
    _
  // Predicated region
  $region6: #{discriminator_forward.11} parent=0 // pred_check
    _
  $region7: #{discriminator_forward.11} parent=0 // pred_check_branch
    %13 = sbr.rel (0) target = $region9
  $region8: #{discriminator_forward.11} parent=0 // pred_region
    _
  $region9: #{discriminator_forward.11} parent=0 // pred_fallthru
    _
  %v15 = vld [vmem:[%s0] sm:$0xff]
  %v16 = vld [vmem:[%s0 + $0x8] sm:$0xff]
  %v17 = vld [vmem:[%s0 + $0x10] sm:$0xff]
  %v18 = vld [vmem:[%s0 + $0x18] sm:$0xff]
  %v19 = vld [vmem:[%s0 + $0x20] sm:$0xff]
  %v20 = vld [vmem:[%s0 + $0x28] sm:$0xff]
  %v21 = vld [vmem:[%s0 + $0x30] sm:$0xff]
  %v22 = vld [vmem:[%s0 + $0x38] sm:$0xff]
  %v23 = vld [vmem:[%s0 + $0x40] sm:$0xff]
  %v24 = vld [vmem:[%s0 + $0x48] sm:$0xff]
  %v25 = vld [vmem:[%s0 + $0x50] sm:$0xff]
  %v26 = vld [vmem:[%s0 + $0x58] sm:$0xff]
  %v27 = vld [vmem:[%s0 + $0x60] sm:$0xff]
  %v28 = vld [vmem:[%s0 + $0x68] sm:$0xff]
  %v29 = vld [vmem:[%s0 + $0x70] sm:$0xff]
  %v30 = vld [vmem:[%s0 + $0x78] sm:$0xff]
  %v31 = vld [vmem:[%s1] sm:$0xf]
  %v32 = vld [vmem:[%s1 + $0x4] sm:$0xf]
  %v33 = vld [vmem:[%s1 + $0x8] sm:$0xf]
  %v34 = vld [vmem:[%s1 + $0xc] sm:$0xf]
  %v35 = vld [vmem:[%s1 + $0x10] sm:$0xf]
  %v36 = vld [vmem:[%s1 + $0x14] sm:$0xf]
  %v37 = vld [vmem:[%s1 + $0x18] sm:$0xf]
  %v38 = vld [vmem:[%s1 + $0x1c] sm:$0xf]
  %v39 = vld [vmem:[%s1 + $0x20] sm:$0xf]
  %v40 = vld [vmem:[%s1 + $0x24] sm:$0xf]
  %v41 = vld [vmem:[%s1 + $0x28] sm:$0xf]
  %v42 = vld [vmem:[%s1 + $0x2c] sm:$0xf]
  %v43 = vld [vmem:[%s1 + $0x30] sm:$0xf]
  %v44 = vld [vmem:[%s1 + $0x34] sm:$0xf]
  %v45 = vld [vmem:[%s1 + $0x38] sm:$0xf]
  %v46 = vld [vmem:[%s1 + $0x3c] sm:$0xf]
  %v47 = vld [vmem:[%s1 + $0x40] sm:$0xf]
  %v48 = vld [vmem:[%s1 + $0x44] sm:$0xf]
  %v49 = vld [vmem:[%s1 + $0x48] sm:$0xf]
  %v50 = vld [vmem:[%s1 + $0x4c] sm:$0xf]
  %v51 = vld [vmem:[%s1 + $0x50] sm:$0xf]
  %v52 = vld [vmem:[%s1 + $0x54] sm:$0xf]
  %v53 = vld [vmem:[%s1 + $0x58] sm:$0xf]
  %v54 = vld [vmem:[%s1 + $0x5c] sm:$0xf]
  %v55 = vld [vmem:[%s1 + $0x60] sm:$0xf]
  %v56 = vld [vmem:[%s1 + $0x64] sm:$0xf]
  %v57 = vld [vmem:[%s1 + $0x68] sm:$0xf]
  %v58 = vld [vmem:[%s1 + $0x6c] sm:$0xf]
  %v59 = vld [vmem:[%s1 + $0x70] sm:$0xf]
  %v60 = vld [vmem:[%s1 + $0x74] sm:$0xf]
  %v61 = vld [vmem:[%s1 + $0x78] sm:$0xf]
  %v62 = vld [vmem:[%s1 + $0x7c] sm:$0xf]
  %v79 = vunpack.c.l.b16 %v15
  %v80 = vunpack.c.h.b16 %v15
  %v81 = vunpack.c.l.b16 %v16
  %v82 = vunpack.c.h.b16 %v16
  %v83 = vunpack.c.l.b16 %v17
  %v84 = vunpack.c.h.b16 %v17
  %v85 = vunpack.c.l.b16 %v18
  %v86 = vunpack.c.h.b16 %v18
  %v87 = vunpack.c.l.b16 %v19
  %v88 = vunpack.c.h.b16 %v19
  %v89 = vunpack.c.l.b16 %v20
  %v90 = vunpack.c.h.b16 %v20
  %v91 = vunpack.c.l.b16 %v21
  %v92 = vunpack.c.h.b16 %v21
  %v93 = vunpack.c.l.b16 %v22
  %v94 = vunpack.c.h.b16 %v22
  %v95 = vunpack.c.l.b16 %v23
  %v96 = vunpack.c.h.b16 %v23
  %v97 = vunpack.c.l.b16 %v24
  %v98 = vunpack.c.h.b16 %v24
  %v99 = vunpack.c.l.b16 %v25
  %v100 = vunpack.c.h.b16 %v25
  %v101 = vunpack.c.l.b16 %v26
  %v102 = vunpack.c.h.b16 %v26
  %v103 = vunpack.c.l.b16 %v27
  %v104 = vunpack.c.h.b16 %v27
  %v105 = vunpack.c.l.b16 %v28
  %v106 = vunpack.c.h.b16 %v28
  %v107 = vunpack.c.l.b16 %v29
  %v108 = vunpack.c.h.b16 %v29
  %v109 = vunpack.c.l.b16 %v30
  %v110 = vunpack.c.h.b16 %v30
  %v111 = vpack.c.b16 %v81, %v79
  %v112 = vpack.c.b16 %v82, %v80
  %v113 = vpack.c.b16 %v85, %v83
  %v114 = vpack.c.b16 %v86, %v84
  %v115 = vpack.c.b16 %v89, %v87
  %v116 = vpack.c.b16 %v90, %v88
  %v117 = vpack.c.b16 %v93, %v91
  %v118 = vpack.c.b16 %v94, %v92
  %v119 = vpack.c.b16 %v97, %v95
  %v120 = vpack.c.b16 %v98, %v96
  %v121 = vpack.c.b16 %v101, %v99
  %v122 = vpack.c.b16 %v102, %v100
  %v123 = vpack.c.b16 %v105, %v103
  %v124 = vpack.c.b16 %v106, %v104
  %v125 = vpack.c.b16 %v109, %v107
  %v126 = vpack.c.b16 %v110, %v108
  %v175 = vunpack.c.l.b16 %v31
  %v176 = vunpack.c.l.b16 %v32
  %v177 = vunpack.c.l.b16 %v33
  %v178 = vunpack.c.l.b16 %v34
  %v179 = vunpack.c.l.b16 %v35
  %v180 = vunpack.c.l.b16 %v36
  %v181 = vunpack.c.l.b16 %v37
  %v182 = vunpack.c.l.b16 %v38
  %v183 = vunpack.c.l.b16 %v39
  %v184 = vunpack.c.l.b16 %v40
  %v185 = vunpack.c.l.b16 %v41
  %v186 = vunpack.c.l.b16 %v42
  %v187 = vunpack.c.l.b16 %v43
  %v188 = vunpack.c.l.b16 %v44
  %v189 = vunpack.c.l.b16 %v45
  %v190 = vunpack.c.l.b16 %v46
  %v191 = vunpack.c.l.b16 %v47
  %v192 = vunpack.c.l.b16 %v48
  %v193 = vunpack.c.l.b16 %v49
  %v194 = vunpack.c.l.b16 %v50
  %v195 = vunpack.c.l.b16 %v51
  %v196 = vunpack.c.l.b16 %v52
  %v197 = vunpack.c.l.b16 %v53
  %v198 = vunpack.c.l.b16 %v54
  %v199 = vunpack.c.l.b16 %v55
  %v200 = vunpack.c.l.b16 %v56
  %v201 = vunpack.c.l.b16 %v57
  %v202 = vunpack.c.l.b16 %v58
  %v203 = vunpack.c.l.b16 %v59
  %v204 = vunpack.c.l.b16 %v60
  %v205 = vunpack.c.l.b16 %v61
  %v206 = vunpack.c.l.b16 %v62
  %v207 = vpack.c.b16 %v176, %v175
  %v208 = vpack.c.b16 %v178, %v177
  %v209 = vpack.c.b16 %v180, %v179
  %v210 = vpack.c.b16 %v182, %v181
  %v211 = vpack.c.b16 %v184, %v183
  %v212 = vpack.c.b16 %v186, %v185
  %v213 = vpack.c.b16 %v188, %v187
  %v214 = vpack.c.b16 %v190, %v189
  %v215 = vpack.c.b16 %v192, %v191
  %v216 = vpack.c.b16 %v194, %v193
  %v217 = vpack.c.b16 %v196, %v195
  %v218 = vpack.c.b16 %v198, %v197
  %v219 = vpack.c.b16 %v200, %v199
  %v220 = vpack.c.b16 %v202, %v201
  %v221 = vpack.c.b16 %v204, %v203
  %v222 = vpack.c.b16 %v206, %v205
  %239 = vmatprep.subr.bf16.mxu0 0
  %240 = vmatpush1.bf16.msra.mxu0 %v214
  %241 = vmatprep.subr.bf16.mxu0 0
  %242 = vmatpush1.bf16.msra.mxu0 %v213
  %243 = vmatprep.subr.bf16.mxu0 0
  %244 = vmatpush1.bf16.msra.mxu0 %v212
  %245 = vmatprep.subr.bf16.mxu0 0
  %246 = vmatpush1.bf16.msra.mxu0 %v211
  %247 = vmatprep.subr.bf16.mxu0 0
  %248 = vmatpush1.bf16.msra.mxu0 %v210
  %249 = vmatprep.subr.bf16.mxu0 0
  %250 = vmatpush1.bf16.msra.mxu0 %v209
  %251 = vmatprep.subr.bf16.mxu0 0
  %252 = vmatpush1.bf16.msra.mxu0 %v208
  %253 = vmatprep.subr.bf16.mxu0 0
  %254 = vmatpush1.bf16.msra.mxu0 %v207
  %255 = vmatprep.subr.bf16.mxu0 0
  %256 = vmatpush2.bf16.msra.mxu0 %v222
  %257 = vmatprep.subr.bf16.mxu0 0
  %258 = vmatpush2.bf16.msra.mxu0 %v221
  %259 = vmatprep.subr.bf16.mxu0 0
  %260 = vmatpush2.bf16.msra.mxu0 %v220
  %261 = vmatprep.subr.bf16.mxu0 0
  %262 = vmatpush2.bf16.msra.mxu0 %v219
  %263 = vmatprep.subr.bf16.mxu0 0
  %264 = vmatpush2.bf16.msra.mxu0 %v218
  %265 = vmatprep.subr.bf16.mxu0 0
  %266 = vmatpush2.bf16.msra.mxu0 %v217
  %267 = vmatprep.subr.bf16.mxu0 0
  %268 = vmatpush2.bf16.msra.mxu0 %v216
  %269 = vmatprep.subr.bf16.mxu0 0
  %270 = vmatpush2.bf16.msra.mxu0 %v215
  %271 = vmatprep.mubr.bf16.mxu0 %v112
  %272 = vmatmul.mubr.bf16.gmra.mxu0 %v111
  %v273 = vpop.f32.mrf.mxu0
  %v274 = vadd.f32 0.0, %v273
  %v275 = vpop.f32.mrf.mxu0
  %v276 = vpop.f32.mrf.mxu0
  %v277 = vadd.f32 0.0, %v276
  %v278 = vpop.f32.mrf.mxu0
  %279 = vmatprep.mubr.bf16.mxu0 %v114
  %280 = vmatmul.mubr.bf16.gmra.mxu0 %v113
  %v281 = vpop.f32.mrf.mxu0
  %v282 = vadd.f32 0.0, %v281
  %v283 = vpop.f32.mrf.mxu0
  %v284 = vpop.f32.mrf.mxu0
  %v285 = vadd.f32 0.0, %v284
  %v286 = vpop.f32.mrf.mxu0
  %287 = vmatprep.mubr.bf16.mxu0 %v116
  %288 = vmatmul.mubr.bf16.gmra.mxu0 %v115
  %v289 = vpop.f32.mrf.mxu0
  %v290 = vadd.f32 0.0, %v289
  %v291 = vpop.f32.mrf.mxu0
  %v292 = vpop.f32.mrf.mxu0
  %v293 = vadd.f32 0.0, %v292
  %v294 = vpop.f32.mrf.mxu0
  %295 = vmatprep.mubr.bf16.mxu0 %v118
  %296 = vmatmul.mubr.bf16.gmra.mxu0 %v117
  %v297 = vpop.f32.mrf.mxu0
  %v298 = vadd.f32 0.0, %v297
  %v299 = vpop.f32.mrf.mxu0
  %v300 = vpop.f32.mrf.mxu0
  %v301 = vadd.f32 0.0, %v300
  %v302 = vpop.f32.mrf.mxu0
  %303 = vmatprep.mubr.bf16.mxu0 %v120
  %304 = vmatmul.mubr.bf16.gmra.mxu0 %v119
  %v305 = vpop.f32.mrf.mxu0
  %v306 = vadd.f32 0.0, %v305
  %v307 = vpop.f32.mrf.mxu0
  %v308 = vpop.f32.mrf.mxu0
  %v309 = vadd.f32 0.0, %v308
  %v310 = vpop.f32.mrf.mxu0
  %311 = vmatprep.mubr.bf16.mxu0 %v122
  %312 = vmatmul.mubr.bf16.gmra.mxu0 %v121
  %v313 = vpop.f32.mrf.mxu0
  %v314 = vadd.f32 0.0, %v313
  %v315 = vpop.f32.mrf.mxu0
  %v316 = vpop.f32.mrf.mxu0
  %v317 = vadd.f32 0.0, %v316
  %v318 = vpop.f32.mrf.mxu0
  %319 = vmatprep.mubr.bf16.mxu0 %v124
  %320 = vmatmul.mubr.bf16.gmra.mxu0 %v123
  %v321 = vpop.f32.mrf.mxu0
  %v322 = vadd.f32 0.0, %v321
  %v323 = vpop.f32.mrf.mxu0
  %v324 = vpop.f32.mrf.mxu0
  %v325 = vadd.f32 0.0, %v324
  %v326 = vpop.f32.mrf.mxu0
  %327 = vmatprep.mubr.bf16.mxu0 %v126
  %328 = vmatmul.mubr.bf16.gmra.mxu0 %v125
  %v329 = vpop.f32.mrf.mxu0
  %v330 = vadd.f32 0.0, %v329
  %v331 = vpop.f32.mrf.mxu0
  %v332 = vpop.f32.mrf.mxu0
  %v333 = vadd.f32 0.0, %v332
  %v334 = vpop.f32.mrf.mxu0
  %335 = vdwg.mxu0
  %v336 = vadd.f32 %v274, %v277
  %v337 = vadd.f32 %v336, %v282
  %v338 = vadd.f32 %v337, %v285
  %v339 = vadd.f32 %v338, %v290
  %v340 = vadd.f32 %v339, %v293
  %v341 = vadd.f32 %v340, %v298
  %v342 = vadd.f32 %v341, %v301
  %v343 = vadd.f32 %v342, %v306
  %v344 = vadd.f32 %v343, %v309
  %v345 = vadd.f32 %v344, %v314
  %v346 = vadd.f32 %v345, %v317
  %v347 = vadd.f32 %v346, %v322
  %v348 = vadd.f32 %v347, %v325
  %v349 = vadd.f32 %v348, %v330
  %v350 = vadd.f32 %v349, %v333
  %351 = vst [vmem:[%s3] sm:$0xff] %v350
  %v352 = vmul.f32 %v274, %v274
  %v353 = vmul.f32 %v277, %v277
  %v354 = vmul.f32 %v282, %v282
  %v355 = vmul.f32 %v285, %v285
  %v356 = vmul.f32 %v290, %v290
  %v357 = vmul.f32 %v293, %v293
  %v358 = vmul.f32 %v298, %v298
  %v359 = vmul.f32 %v301, %v301
  %v360 = vmul.f32 %v306, %v306
  %v361 = vmul.f32 %v309, %v309
  %v362 = vmul.f32 %v314, %v314
  %v363 = vmul.f32 %v317, %v317
  %v364 = vmul.f32 %v322, %v322
  %v365 = vmul.f32 %v325, %v325
  %v366 = vmul.f32 %v330, %v330
  %v367 = vmul.f32 %v333, %v333
  %v368 = vadd.f32 %v352, %v353
  %v369 = vadd.f32 %v368, %v354
  %v370 = vadd.f32 %v369, %v355
  %v371 = vadd.f32 %v370, %v356
  %v372 = vadd.f32 %v371, %v357
  %v373 = vadd.f32 %v372, %v358
  %v374 = vadd.f32 %v373, %v359
  %v375 = vadd.f32 %v374, %v360
  %v376 = vadd.f32 %v375, %v361
  %v377 = vadd.f32 %v376, %v362
  %v378 = vadd.f32 %v377, %v363
  %v379 = vadd.f32 %v378, %v364
  %v380 = vadd.f32 %v379, %v365
  %v381 = vadd.f32 %v380, %v366
  %v382 = vadd.f32 %v381, %v367
  %383 = vst [vmem:[%s4] sm:$0xff] %v382
  %384 = vst [vmem:[%s2] sm:$0xff] %v274
  %385 = vst [vmem:[%s2 + $0x8] sm:$0xff] %v277
  %386 = vst [vmem:[%s2 + $0x10] sm:$0xff] %v282
  %387 = vst [vmem:[%s2 + $0x18] sm:$0xff] %v285
  %388 = vst [vmem:[%s2 + $0x20] sm:$0xff] %v290
  %389 = vst [vmem:[%s2 + $0x28] sm:$0xff] %v293
  %390 = vst [vmem:[%s2 + $0x30] sm:$0xff] %v298
  %391 = vst [vmem:[%s2 + $0x38] sm:$0xff] %v301
  %392 = vst [vmem:[%s2 + $0x40] sm:$0xff] %v306
  %393 = vst [vmem:[%s2 + $0x48] sm:$0xff] %v309
  %394 = vst [vmem:[%s2 + $0x50] sm:$0xff] %v314
  %395 = vst [vmem:[%s2 + $0x58] sm:$0xff] %v317
  %396 = vst [vmem:[%s2 + $0x60] sm:$0xff] %v322
  %397 = vst [vmem:[%s2 + $0x68] sm:$0xff] %v325
  %398 = vst [vmem:[%s2 + $0x70] sm:$0xff] %v330
  %399 = vst [vmem:[%s2 + $0x78] sm:$0xff] %v333
  // Predicated region
  $region10: #{discriminator_forward.11} parent=0 // pred_check
    _
  $region11: #{discriminator_forward.11} parent=0 // pred_check_branch
    %401 = sbr.rel (0) target = $region13
  $region12: #{discriminator_forward.11} parent=0 // pred_region
    _
  $region13: #{discriminator_forward.11} parent=0 // pred_fallthru
    _
  // Predicated region
  $region14: #{discriminator_forward.11} parent=0 // pred_check
    _
  $region15: #{discriminator_forward.11} parent=0 // pred_check_branch
    %403 = sbr.rel (0) target = $region17
  $region16: #{discriminator_forward.11} parent=0 // pred_region
    _
  $region17: #{discriminator_forward.11} parent=0 // pred_fallthru
    _
  // Predicated region
  $region18: #{discriminator_forward.11} parent=0 // pred_check
    _
  $region19: #{discriminator_forward.11} parent=0 // pred_check_branch
    %405 = sbr.rel (0) target = $region21
  $region20: #{discriminator_forward.11} parent=0 // pred_region
    _
  $region21: #{discriminator_forward.11} parent=0 // pred_fallthru
    _
  // Predicated region
  $region22: #{discriminator_forward.11} parent=0 // pred_check
    _
  $region23: #{discriminator_forward.11} parent=0 // pred_check_branch
    %407 = sbr.rel (0) target = $region25
  $region24: #{discriminator_forward.11} parent=0 // pred_region
    _
  $region25: #{discriminator_forward.11} parent=0 // pred_fallthru
    _
  // Predicated region
  $region26: #{discriminator_forward.11} parent=0 // pred_check
    _
  $region27: #{discriminator_forward.11} parent=0 // pred_check_branch
    %409 = sbr.rel (0) target = $region29
  $region28: #{discriminator_forward.11} parent=0 // pred_region
    _
  $region29: #{discriminator_forward.11} parent=0 // pred_fallthru
    _
  // Predicated region
  $region30: #{discriminator_forward.11} parent=0 // pred_check
    _
  $region31: #{discriminator_forward.11} parent=0 // pred_check_branch
    %411 = sbr.rel (0) target = $region33
  $region32: #{discriminator_forward.11} parent=0 // pred_region
    _
  $region33: #{discriminator_forward.11} parent=0 // pred_fallthru
    _

// kernel: discriminator_forward.12
$region0: #{discriminator_forward.12}
  #allocation0 [shape = 'u32[]', space=smem, size = 0x4, offset = 0x4, fixed_abs, tag = 'smem constant byte address 0x4 - core index']
  #allocation1 [shape = 'u32[144,128]{1,0:T(1,128)}', space=vmem, size = 0x12000, scoped, tag = 'internal scratch']
  %s0 = inlined_call_operand.vmem [shape: f32[128,128], index: 0, kind: input, shape index: {}]
  %s1 = inlined_call_operand.vmem [shape: f32[1,128], index: 1, kind: input, shape index: {}]
  %s2 = inlined_call_operand.vmem [shape: f32[1,128], index: 2, kind: input, shape index: {}]
  %s3 = inlined_call_operand.vmem [shape: bf16[128,128], index: 3, kind: output, shape index: {}]
  %s4 = sld [smem:[#allocation0]]
  $region22: #{discriminator_forward.12} parent=0
    _
  %s6 = ssub.s32 1, %s4
  %s7 = scalar_select 0, %s6, %s4
  // Predicated region
  $region2: #{discriminator_forward.12} parent=0 // pred_check
    _
  $region3: #{discriminator_forward.12} parent=0 // pred_check_branch
    %9 = sbr.rel (0) target = $region5
  $region4: #{discriminator_forward.12} parent=0 // pred_region
    _
  $region5: #{discriminator_forward.12} parent=0 // pred_fallthru
    _
  // Predicated region
  $region6: #{discriminator_forward.12} parent=0 // pred_check
    _
  $region7: #{discriminator_forward.12} parent=0 // pred_check_branch
    %11 = sbr.rel (0) target = $region9
  $region8: #{discriminator_forward.12} parent=0 // pred_region
    _
  $region9: #{discriminator_forward.12} parent=0 // pred_fallthru
    _
  // Predicated region
  $region10: #{discriminator_forward.12} parent=0 // pred_check
    _
  $region11: #{discriminator_forward.12} parent=0 // pred_check_branch
    %13 = sbr.rel (0) target = $region13
  $region12: #{discriminator_forward.12} parent=0 // pred_region
    _
  $region13: #{discriminator_forward.12} parent=0 // pred_fallthru
    _
  %v14 = vld [vmem:[%s0] sm:$0xff]
  %v15 = vld [vmem:[%s0 + $0x8] sm:$0xff]
  %v16 = vld [vmem:[%s0 + $0x10] sm:$0xff]
  %v17 = vld [vmem:[%s0 + $0x18] sm:$0xff]
  %v18 = vld [vmem:[%s0 + $0x20] sm:$0xff]
  %v19 = vld [vmem:[%s0 + $0x28] sm:$0xff]
  %v20 = vld [vmem:[%s0 + $0x30] sm:$0xff]
  %v21 = vld [vmem:[%s0 + $0x38] sm:$0xff]
  %v22 = vld [vmem:[%s0 + $0x40] sm:$0xff]
  %v23 = vld [vmem:[%s0 + $0x48] sm:$0xff]
  %v24 = vld [vmem:[%s0 + $0x50] sm:$0xff]
  %v25 = vld [vmem:[%s0 + $0x58] sm:$0xff]
  %v26 = vld [vmem:[%s0 + $0x60] sm:$0xff]
  %v27 = vld [vmem:[%s0 + $0x68] sm:$0xff]
  %v28 = vld [vmem:[%s0 + $0x70] sm:$0xff]
  %v29 = vld [vmem:[%s0 + $0x78] sm:$0xff]
  %v30 = vld [vmem:[%s1] sm:$0x1]
  %v32 = vlaneseq
  %v33 = vshrl.u32 %v32, 7
  %v34 = vsub.s32 0, %v33
  %v35 = vrot.slane %v30, %v34
  %v37 = vmul.f32 %v14, %v35
  %v38 = vmul.f32 %v15, %v35
  %v39 = vmul.f32 %v16, %v35
  %v40 = vmul.f32 %v17, %v35
  %v41 = vmul.f32 %v18, %v35
  %v42 = vmul.f32 %v19, %v35
  %v43 = vmul.f32 %v20, %v35
  %v44 = vmul.f32 %v21, %v35
  %v45 = vmul.f32 %v22, %v35
  %v46 = vmul.f32 %v23, %v35
  %v47 = vmul.f32 %v24, %v35
  %v48 = vmul.f32 %v25, %v35
  %v49 = vmul.f32 %v26, %v35
  %v50 = vmul.f32 %v27, %v35
  %v51 = vmul.f32 %v28, %v35
  %v52 = vmul.f32 %v29, %v35
  %v53 = vld [vmem:[%s2] sm:$0x1]
  %v55 = vlaneseq
  %v56 = vshrl.u32 %v55, 7
  %v57 = vsub.s32 0, %v56
  %v58 = vrot.slane %v53, %v57
  %v60 = vadd.f32 %v37, %v58
  %v61 = vadd.f32 %v38, %v58
  %v62 = vadd.f32 %v39, %v58
  %v63 = vadd.f32 %v40, %v58
  %v64 = vadd.f32 %v41, %v58
  %v65 = vadd.f32 %v42, %v58
  %v66 = vadd.f32 %v43, %v58
  %v67 = vadd.f32 %v44, %v58
  %v68 = vadd.f32 %v45, %v58
  %v69 = vadd.f32 %v46, %v58
  %v70 = vadd.f32 %v47, %v58
  %v71 = vadd.f32 %v48, %v58
  %v72 = vadd.f32 %v49, %v58
  %v73 = vadd.f32 %v50, %v58
  %v74 = vadd.f32 %v51, %v58
  %v75 = vadd.f32 %v52, %v58
  %vm76 = vcmp.gt.f32.partialorder %v60, 0.0
  %vm77 = vcmp.gt.f32.partialorder %v61, 0.0
  %vm78 = vcmp.gt.f32.partialorder %v62, 0.0
  %vm79 = vcmp.gt.f32.partialorder %v63, 0.0
  %vm80 = vcmp.gt.f32.partialorder %v64, 0.0
  %vm81 = vcmp.gt.f32.partialorder %v65, 0.0
  %vm82 = vcmp.gt.f32.partialorder %v66, 0.0
  %vm83 = vcmp.gt.f32.partialorder %v67, 0.0
  %vm84 = vcmp.gt.f32.partialorder %v68, 0.0
  %vm85 = vcmp.gt.f32.partialorder %v69, 0.0
  %vm86 = vcmp.gt.f32.partialorder %v70, 0.0
  %vm87 = vcmp.gt.f32.partialorder %v71, 0.0
  %vm88 = vcmp.gt.f32.partialorder %v72, 0.0
  %vm89 = vcmp.gt.f32.partialorder %v73, 0.0
  %vm90 = vcmp.gt.f32.partialorder %v74, 0.0
  %vm91 = vcmp.gt.f32.partialorder %v75, 0.0
  %v92 = vmul.f32 %v60, 0.2
  %v93 = vmul.f32 %v61, 0.2
  %v94 = vmul.f32 %v62, 0.2
  %v95 = vmul.f32 %v63, 0.2
  %v96 = vmul.f32 %v64, 0.2
  %v97 = vmul.f32 %v65, 0.2
  %v98 = vmul.f32 %v66, 0.2
  %v99 = vmul.f32 %v67, 0.2
  %v100 = vmul.f32 %v68, 0.2
  %v101 = vmul.f32 %v69, 0.2
  %v102 = vmul.f32 %v70, 0.2
  %v103 = vmul.f32 %v71, 0.2
  %v104 = vmul.f32 %v72, 0.2
  %v105 = vmul.f32 %v73, 0.2
  %v106 = vmul.f32 %v74, 0.2
  %v107 = vmul.f32 %v75, 0.2
  %v108 = vsel %vm76, %v60, %v92
  %v109 = vsel %vm77, %v61, %v93
  %v110 = vsel %vm78, %v62, %v94
  %v111 = vsel %vm79, %v63, %v95
  %v112 = vsel %vm80, %v64, %v96
  %v113 = vsel %vm81, %v65, %v97
  %v114 = vsel %vm82, %v66, %v98
  %v115 = vsel %vm83, %v67, %v99
  %v116 = vsel %vm84, %v68, %v100
  %v117 = vsel %vm85, %v69, %v101
  %v118 = vsel %vm86, %v70, %v102
  %v119 = vsel %vm87, %v71, %v103
  %v120 = vsel %vm88, %v72, %v104
  %v121 = vsel %vm89, %v73, %v105
  %v122 = vsel %vm90, %v74, %v106
  %v123 = vsel %vm91, %v75, %v107
  %v124 = vpack.c.bf16 %v109, %v108
  %v125 = vpack.c.bf16 %v111, %v110
  %v126 = vpack.c.bf16 %v113, %v112
  %v127 = vpack.c.bf16 %v115, %v114
  %v128 = vpack.c.bf16 %v117, %v116
  %v129 = vpack.c.bf16 %v119, %v118
  %v130 = vpack.c.bf16 %v121, %v120
  %v131 = vpack.c.bf16 %v123, %v122
  %v140 = vunpack.c.l.b16 %v124
  %v141 = vunpack.c.h.b16 %v124
  %v142 = vunpack.c.l.b16 %v125
  %v143 = vunpack.c.h.b16 %v125
  %v144 = vunpack.c.l.b16 %v126
  %v145 = vunpack.c.h.b16 %v126
  %v146 = vunpack.c.l.b16 %v127
  %v147 = vunpack.c.h.b16 %v127
  %v148 = vunpack.c.l.b16 %v128
  %v149 = vunpack.c.h.b16 %v128
  %v150 = vunpack.c.l.b16 %v129
  %v151 = vunpack.c.h.b16 %v129
  %v152 = vunpack.c.l.b16 %v130
  %v153 = vunpack.c.h.b16 %v130
  %v154 = vunpack.c.l.b16 %v131
  %v155 = vunpack.c.h.b16 %v131
  %v156 = vpack.c.b16 %v140, %v140
  %v157 = vpack.c.b16 %v141, %v141
  %v158 = vpack.c.b16 %v142, %v142
  %v159 = vpack.c.b16 %v143, %v143
  %v160 = vpack.c.b16 %v144, %v144
  %v161 = vpack.c.b16 %v145, %v145
  %v162 = vpack.c.b16 %v146, %v146
  %v163 = vpack.c.b16 %v147, %v147
  %v164 = vpack.c.b16 %v148, %v148
  %v165 = vpack.c.b16 %v149, %v149
  %v166 = vpack.c.b16 %v150, %v150
  %v167 = vpack.c.b16 %v151, %v151
  %v168 = vpack.c.b16 %v152, %v152
  %v169 = vpack.c.b16 %v153, %v153
  %v170 = vpack.c.b16 %v154, %v154
  %v171 = vpack.c.b16 %v155, %v155
  %188 = vst [vmem:[%s3] sm:$0xf] %v156
  %189 = vst [vmem:[%s3 + $0x4] sm:$0xf] %v157
  %190 = vst [vmem:[%s3 + $0x8] sm:$0xf] %v158
  %191 = vst [vmem:[%s3 + $0xc] sm:$0xf] %v159
  %192 = vst [vmem:[%s3 + $0x10] sm:$0xf] %v160
  %193 = vst [vmem:[%s3 + $0x14] sm:$0xf] %v161
  %194 = vst [vmem:[%s3 + $0x18] sm:$0xf] %v162
  %195 = vst [vmem:[%s3 + $0x1c] sm:$0xf] %v163
  %196 = vst [vmem:[%s3 + $0x20] sm:$0xf] %v164
  %197 = vst [vmem:[%s3 + $0x24] sm:$0xf] %v165
  %198 = vst [vmem:[%s3 + $0x28] sm:$0xf] %v166
  %199 = vst [vmem:[%s3 + $0x2c] sm:$0xf] %v167
  %200 = vst [vmem:[%s3 + $0x30] sm:$0xf] %v168
  %201 = vst [vmem:[%s3 + $0x34] sm:$0xf] %v169
  %202 = vst [vmem:[%s3 + $0x38] sm:$0xf] %v170
  %203 = vst [vmem:[%s3 + $0x3c] sm:$0xf] %v171
  // Predicated region
  $region14: #{discriminator_forward.12} parent=0 // pred_check
    _
  $region15: #{discriminator_forward.12} parent=0 // pred_check_branch
    %205 = sbr.rel (0) target = $region17
  $region16: #{discriminator_forward.12} parent=0 // pred_region
    _
  $region17: #{discriminator_forward.12} parent=0 // pred_fallthru
    _
  // Predicated region
  $region18: #{discriminator_forward.12} parent=0 // pred_check
    _
  $region19: #{discriminator_forward.12} parent=0 // pred_check_branch
    %207 = sbr.rel (0) target = $region21
  $region20: #{discriminator_forward.12} parent=0 // pred_region
    _
  $region21: #{discriminator_forward.12} parent=0 // pred_fallthru
    _

// kernel: discriminator_forward.14
$region0: #{discriminator_forward.14}
  #allocation0 [shape = 'u32[]', space=smem, size = 0x4, offset = 0x4, fixed_abs, tag = 'smem constant byte address 0x4 - core index']
  #allocation1 [shape = 'u32[144,128]{1,0:T(1,128)}', space=vmem, size = 0x12000, scoped, tag = 'internal scratch']
  %s0 = inlined_call_operand.vmem [shape: f32[32,128], index: 0, kind: input, shape index: {}]
  %s1 = inlined_call_operand.vmem [shape: f32[1,128], index: 1, kind: input, shape index: {}]
  %s2 = inlined_call_operand.vmem [shape: f32[1,128], index: 2, kind: input, shape index: {}]
  %s3 = inlined_call_operand.vmem [shape: bf16[32,128], index: 3, kind: output, shape index: {}]
  %s4 = sld [smem:[#allocation0]]
  $region22: #{discriminator_forward.14} parent=0
    _
  %s6 = ssub.s32 1, %s4
  %s7 = scalar_select 0, %s6, %s4
  // Predicated region
  $region2: #{discriminator_forward.14} parent=0 // pred_check
    _
  $region3: #{discriminator_forward.14} parent=0 // pred_check_branch
    %9 = sbr.rel (0) target = $region5
  $region4: #{discriminator_forward.14} parent=0 // pred_region
    _
  $region5: #{discriminator_forward.14} parent=0 // pred_fallthru
    _
  // Predicated region
  $region6: #{discriminator_forward.14} parent=0 // pred_check
    _
  $region7: #{discriminator_forward.14} parent=0 // pred_check_branch
    %11 = sbr.rel (0) target = $region9
  $region8: #{discriminator_forward.14} parent=0 // pred_region
    _
  $region9: #{discriminator_forward.14} parent=0 // pred_fallthru
    _
  // Predicated region
  $region10: #{discriminator_forward.14} parent=0 // pred_check
    _
  $region11: #{discriminator_forward.14} parent=0 // pred_check_branch
    %13 = sbr.rel (0) target = $region13
  $region12: #{discriminator_forward.14} parent=0 // pred_region
    _
  $region13: #{discriminator_forward.14} parent=0 // pred_fallthru
    _
  %v14 = vld [vmem:[%s0] sm:$0xff]
  %v15 = vld [vmem:[%s0 + $0x8] sm:$0xff]
  %v16 = vld [vmem:[%s0 + $0x10] sm:$0xff]
  %v17 = vld [vmem:[%s0 + $0x18] sm:$0xff]
  %v18 = vld [vmem:[%s1] sm:$0x1]
  %v20 = vlaneseq
  %v21 = vshrl.u32 %v20, 7
  %v22 = vsub.s32 0, %v21
  %v23 = vrot.slane %v18, %v22
  %v25 = vmul.f32 %v14, %v23
  %v26 = vmul.f32 %v15, %v23
  %v27 = vmul.f32 %v16, %v23
  %v28 = vmul.f32 %v17, %v23
  %v29 = vld [vmem:[%s2] sm:$0x1]
  %v31 = vlaneseq
  %v32 = vshrl.u32 %v31, 7
  %v33 = vsub.s32 0, %v32
  %v34 = vrot.slane %v29, %v33
  %v36 = vadd.f32 %v25, %v34
  %v37 = vadd.f32 %v26, %v34
  %v38 = vadd.f32 %v27, %v34
  %v39 = vadd.f32 %v28, %v34
  %vm40 = vcmp.gt.f32.partialorder %v36, 0.0
  %vm41 = vcmp.gt.f32.partialorder %v37, 0.0
  %vm42 = vcmp.gt.f32.partialorder %v38, 0.0
  %vm43 = vcmp.gt.f32.partialorder %v39, 0.0
  %v44 = vmul.f32 %v36, 0.2
  %v45 = vmul.f32 %v37, 0.2
  %v46 = vmul.f32 %v38, 0.2
  %v47 = vmul.f32 %v39, 0.2
  %v48 = vsel %vm40, %v36, %v44
  %v49 = vsel %vm41, %v37, %v45
  %v50 = vsel %vm42, %v38, %v46
  %v51 = vsel %vm43, %v39, %v47
  %v52 = vpack.c.bf16 %v49, %v48
  %v53 = vpack.c.bf16 %v51, %v50
  %v56 = vunpack.c.l.b16 %v52
  %v57 = vunpack.c.h.b16 %v52
  %v58 = vunpack.c.l.b16 %v53
  %v59 = vunpack.c.h.b16 %v53
  %v60 = vpack.c.b16 %v56, %v56
  %v61 = vpack.c.b16 %v57, %v57
  %v62 = vpack.c.b16 %v58, %v58
  %v63 = vpack.c.b16 %v59, %v59
  %68 = vst [vmem:[%s3] sm:$0xf] %v60
  %69 = vst [vmem:[%s3 + $0x4] sm:$0xf] %v61
  %70 = vst [vmem:[%s3 + $0x8] sm:$0xf] %v62
  %71 = vst [vmem:[%s3 + $0xc] sm:$0xf] %v63
  // Predicated region
  $region14: #{discriminator_forward.14} parent=0 // pred_check
    _
  $region15: #{discriminator_forward.14} parent=0 // pred_check_branch
    %73 = sbr.rel (0) target = $region17
  $region16: #{discriminator_forward.14} parent=0 // pred_region
    _
  $region17: #{discriminator_forward.14} parent=0 // pred_fallthru
    _
  // Predicated region
  $region18: #{discriminator_forward.14} parent=0 // pred_check
    _
  $region19: #{discriminator_forward.14} parent=0 // pred_check_branch
    %75 = sbr.rel (0) target = $region21
  $region20: #{discriminator_forward.14} parent=0 // pred_region
    _
  $region21: #{discriminator_forward.14} parent=0 // pred_fallthru
    _

// kernel: discriminator_forward.13
$region0: #{discriminator_forward.13}
  #allocation0 [shape = 'u32[]', space=smem, size = 0x4, offset = 0x4, fixed_abs, tag = 'smem constant byte address 0x4 - core index']
  #allocation1 [shape = 'u32[144,128]{1,0:T(1,128)}', space=vmem, size = 0x12000, scoped, tag = 'internal scratch']
  %s0 = inlined_call_operand.vmem [shape: bf16[32,512], index: 0, kind: input, shape index: {}]
  %s1 = inlined_call_operand.vmem [shape: bf16[512,128], index: 1, kind: input, shape index: {}]
  %s2 = inlined_call_operand.vmem [shape: f32[32,128], index: 2, kind: output, shape index: {0}]
  %s3 = inlined_call_operand.vmem [shape: f32[1,8,128], index: 3, kind: output, shape index: {1}]
  %s4 = inlined_call_operand.vmem [shape: f32[1,8,128], index: 4, kind: output, shape index: {2}]
  %5 = xla_tuple %s2, %s3, %s4
  %s6 = sld [smem:[#allocation0]]
  $region34: #{discriminator_forward.13} parent=0
    _
  %s8 = ssub.s32 1, %s6
  %s9 = scalar_select 0, %s8, %s6
  // Predicated region
  $region2: #{discriminator_forward.13} parent=0 // pred_check
    _
  $region3: #{discriminator_forward.13} parent=0 // pred_check_branch
    %11 = sbr.rel (0) target = $region5
  $region4: #{discriminator_forward.13} parent=0 // pred_region
    _
  $region5: #{discriminator_forward.13} parent=0 // pred_fallthru
    _
  // Predicated region
  $region6: #{discriminator_forward.13} parent=0 // pred_check
    _
  $region7: #{discriminator_forward.13} parent=0 // pred_check_branch
    %13 = sbr.rel (0) target = $region9
  $region8: #{discriminator_forward.13} parent=0 // pred_region
    _
  $region9: #{discriminator_forward.13} parent=0 // pred_fallthru
    _
  %v15 = vld [vmem:[%s0] sm:$0xff]
  %v16 = vld [vmem:[%s0 + $0x8] sm:$0xff]
  %v17 = vld [vmem:[%s0 + $0x10] sm:$0xff]
  %v18 = vld [vmem:[%s0 + $0x18] sm:$0xff]
  %v19 = vld [vmem:[%s0 + $0x20] sm:$0xff]
  %v20 = vld [vmem:[%s0 + $0x28] sm:$0xff]
  %v21 = vld [vmem:[%s0 + $0x30] sm:$0xff]
  %v22 = vld [vmem:[%s0 + $0x38] sm:$0xff]
  %v23 = vld [vmem:[%s1] sm:$0xf]
  %v24 = vld [vmem:[%s1 + $0x4] sm:$0xf]
  %v25 = vld [vmem:[%s1 + $0x8] sm:$0xf]
  %v26 = vld [vmem:[%s1 + $0xc] sm:$0xf]
  %v27 = vld [vmem:[%s1 + $0x10] sm:$0xf]
  %v28 = vld [vmem:[%s1 + $0x14] sm:$0xf]
  %v29 = vld [vmem:[%s1 + $0x18] sm:$0xf]
  %v30 = vld [vmem:[%s1 + $0x1c] sm:$0xf]
  %v31 = vld [vmem:[%s1 + $0x20] sm:$0xf]
  %v32 = vld [vmem:[%s1 + $0x24] sm:$0xf]
  %v33 = vld [vmem:[%s1 + $0x28] sm:$0xf]
  %v34 = vld [vmem:[%s1 + $0x2c] sm:$0xf]
  %v35 = vld [vmem:[%s1 + $0x30] sm:$0xf]
  %v36 = vld [vmem:[%s1 + $0x34] sm:$0xf]
  %v37 = vld [vmem:[%s1 + $0x38] sm:$0xf]
  %v38 = vld [vmem:[%s1 + $0x3c] sm:$0xf]
  %v39 = vld [vmem:[%s1 + $0x40] sm:$0xf]
  %v40 = vld [vmem:[%s1 + $0x44] sm:$0xf]
  %v41 = vld [vmem:[%s1 + $0x48] sm:$0xf]
  %v42 = vld [vmem:[%s1 + $0x4c] sm:$0xf]
  %v43 = vld [vmem:[%s1 + $0x50] sm:$0xf]
  %v44 = vld [vmem:[%s1 + $0x54] sm:$0xf]
  %v45 = vld [vmem:[%s1 + $0x58] sm:$0xf]
  %v46 = vld [vmem:[%s1 + $0x5c] sm:$0xf]
  %v47 = vld [vmem:[%s1 + $0x60] sm:$0xf]
  %v48 = vld [vmem:[%s1 + $0x64] sm:$0xf]
  %v49 = vld [vmem:[%s1 + $0x68] sm:$0xf]
  %v50 = vld [vmem:[%s1 + $0x6c] sm:$0xf]
  %v51 = vld [vmem:[%s1 + $0x70] sm:$0xf]
  %v52 = vld [vmem:[%s1 + $0x74] sm:$0xf]
  %v53 = vld [vmem:[%s1 + $0x78] sm:$0xf]
  %v54 = vld [vmem:[%s1 + $0x7c] sm:$0xf]
  %v55 = vld [vmem:[%s1 + $0x80] sm:$0xf]
  %v56 = vld [vmem:[%s1 + $0x84] sm:$0xf]
  %v57 = vld [vmem:[%s1 + $0x88] sm:$0xf]
  %v58 = vld [vmem:[%s1 + $0x8c] sm:$0xf]
  %v59 = vld [vmem:[%s1 + $0x90] sm:$0xf]
  %v60 = vld [vmem:[%s1 + $0x94] sm:$0xf]
  %v61 = vld [vmem:[%s1 + $0x98] sm:$0xf]
  %v62 = vld [vmem:[%s1 + $0x9c] sm:$0xf]
  %v63 = vld [vmem:[%s1 + $0xa0] sm:$0xf]
  %v64 = vld [vmem:[%s1 + $0xa4] sm:$0xf]
  %v65 = vld [vmem:[%s1 + $0xa8] sm:$0xf]
  %v66 = vld [vmem:[%s1 + $0xac] sm:$0xf]
  %v67 = vld [vmem:[%s1 + $0xb0] sm:$0xf]
  %v68 = vld [vmem:[%s1 + $0xb4] sm:$0xf]
  %v69 = vld [vmem:[%s1 + $0xb8] sm:$0xf]
  %v70 = vld [vmem:[%s1 + $0xbc] sm:$0xf]
  %v71 = vld [vmem:[%s1 + $0xc0] sm:$0xf]
  %v72 = vld [vmem:[%s1 + $0xc4] sm:$0xf]
  %v73 = vld [vmem:[%s1 + $0xc8] sm:$0xf]
  %v74 = vld [vmem:[%s1 + $0xcc] sm:$0xf]
  %v75 = vld [vmem:[%s1 + $0xd0] sm:$0xf]
  %v76 = vld [vmem:[%s1 + $0xd4] sm:$0xf]
  %v77 = vld [vmem:[%s1 + $0xd8] sm:$0xf]
  %v78 = vld [vmem:[%s1 + $0xdc] sm:$0xf]
  %v79 = vld [vmem:[%s1 + $0xe0] sm:$0xf]
  %v80 = vld [vmem:[%s1 + $0xe4] sm:$0xf]
  %v81 = vld [vmem:[%s1 + $0xe8] sm:$0xf]
  %v82 = vld [vmem:[%s1 + $0xec] sm:$0xf]
  %v83 = vld [vmem:[%s1 + $0xf0] sm:$0xf]
  %v84 = vld [vmem:[%s1 + $0xf4] sm:$0xf]
  %v85 = vld [vmem:[%s1 + $0xf8] sm:$0xf]
  %v86 = vld [vmem:[%s1 + $0xfc] sm:$0xf]
  %v95 = vunpack.c.l.b16 %v15
  %v96 = vunpack.c.h.b16 %v15
  %v97 = vunpack.c.l.b16 %v16
  %v98 = vunpack.c.h.b16 %v16
  %v99 = vunpack.c.l.b16 %v17
  %v100 = vunpack.c.h.b16 %v17
  %v101 = vunpack.c.l.b16 %v18
  %v102 = vunpack.c.h.b16 %v18
  %v103 = vunpack.c.l.b16 %v19
  %v104 = vunpack.c.h.b16 %v19
  %v105 = vunpack.c.l.b16 %v20
  %v106 = vunpack.c.h.b16 %v20
  %v107 = vunpack.c.l.b16 %v21
  %v108 = vunpack.c.h.b16 %v21
  %v109 = vunpack.c.l.b16 %v22
  %v110 = vunpack.c.h.b16 %v22
  %v111 = vpack.c.b16 %v99, %v95
  %v112 = vpack.c.b16 %v100, %v96
  %v113 = vpack.c.b16 %v101, %v97
  %v114 = vpack.c.b16 %v102, %v98
  %v115 = vpack.c.b16 %v107, %v103
  %v116 = vpack.c.b16 %v108, %v104
  %v117 = vpack.c.b16 %v109, %v105
  %v118 = vpack.c.b16 %v110, %v106
  %v191 = vunpack.c.l.b16 %v23
  %v192 = vunpack.c.l.b16 %v24
  %v193 = vunpack.c.l.b16 %v25
  %v194 = vunpack.c.l.b16 %v26
  %v195 = vunpack.c.l.b16 %v27
  %v196 = vunpack.c.l.b16 %v28
  %v197 = vunpack.c.l.b16 %v29
  %v198 = vunpack.c.l.b16 %v30
  %v199 = vunpack.c.l.b16 %v31
  %v200 = vunpack.c.l.b16 %v32
  %v201 = vunpack.c.l.b16 %v33
  %v202 = vunpack.c.l.b16 %v34
  %v203 = vunpack.c.l.b16 %v35
  %v204 = vunpack.c.l.b16 %v36
  %v205 = vunpack.c.l.b16 %v37
  %v206 = vunpack.c.l.b16 %v38
  %v207 = vunpack.c.l.b16 %v39
  %v208 = vunpack.c.l.b16 %v40
  %v209 = vunpack.c.l.b16 %v41
  %v210 = vunpack.c.l.b16 %v42
  %v211 = vunpack.c.l.b16 %v43
  %v212 = vunpack.c.l.b16 %v44
  %v213 = vunpack.c.l.b16 %v45
  %v214 = vunpack.c.l.b16 %v46
  %v215 = vunpack.c.l.b16 %v47
  %v216 = vunpack.c.l.b16 %v48
  %v217 = vunpack.c.l.b16 %v49
  %v218 = vunpack.c.l.b16 %v50
  %v219 = vunpack.c.l.b16 %v51
  %v220 = vunpack.c.l.b16 %v52
  %v221 = vunpack.c.l.b16 %v53
  %v222 = vunpack.c.l.b16 %v54
  %v223 = vunpack.c.l.b16 %v55
  %v224 = vunpack.c.l.b16 %v56
  %v225 = vunpack.c.l.b16 %v57
  %v226 = vunpack.c.l.b16 %v58
  %v227 = vunpack.c.l.b16 %v59
  %v228 = vunpack.c.l.b16 %v60
  %v229 = vunpack.c.l.b16 %v61
  %v230 = vunpack.c.l.b16 %v62
  %v231 = vunpack.c.l.b16 %v63
  %v232 = vunpack.c.l.b16 %v64
  %v233 = vunpack.c.l.b16 %v65
  %v234 = vunpack.c.l.b16 %v66
  %v235 = vunpack.c.l.b16 %v67
  %v236 = vunpack.c.l.b16 %v68
  %v237 = vunpack.c.l.b16 %v69
  %v238 = vunpack.c.l.b16 %v70
  %v239 = vunpack.c.l.b16 %v71
  %v240 = vunpack.c.l.b16 %v72
  %v241 = vunpack.c.l.b16 %v73
  %v242 = vunpack.c.l.b16 %v74
  %v243 = vunpack.c.l.b16 %v75
  %v244 = vunpack.c.l.b16 %v76
  %v245 = vunpack.c.l.b16 %v77
  %v246 = vunpack.c.l.b16 %v78
  %v247 = vunpack.c.l.b16 %v79
  %v248 = vunpack.c.l.b16 %v80
  %v249 = vunpack.c.l.b16 %v81
  %v250 = vunpack.c.l.b16 %v82
  %v251 = vunpack.c.l.b16 %v83
  %v252 = vunpack.c.l.b16 %v84
  %v253 = vunpack.c.l.b16 %v85
  %v254 = vunpack.c.l.b16 %v86
  %v255 = vpack.c.b16 %v192, %v191
  %v256 = vpack.c.b16 %v194, %v193
  %v257 = vpack.c.b16 %v196, %v195
  %v258 = vpack.c.b16 %v198, %v197
  %v259 = vpack.c.b16 %v200, %v199
  %v260 = vpack.c.b16 %v202, %v201
  %v261 = vpack.c.b16 %v204, %v203
  %v262 = vpack.c.b16 %v206, %v205
  %v263 = vpack.c.b16 %v208, %v207
  %v264 = vpack.c.b16 %v210, %v209
  %v265 = vpack.c.b16 %v212, %v211
  %v266 = vpack.c.b16 %v214, %v213
  %v267 = vpack.c.b16 %v216, %v215
  %v268 = vpack.c.b16 %v218, %v217
  %v269 = vpack.c.b16 %v220, %v219
  %v270 = vpack.c.b16 %v222, %v221
  %v271 = vpack.c.b16 %v224, %v223
  %v272 = vpack.c.b16 %v226, %v225
  %v273 = vpack.c.b16 %v228, %v227
  %v274 = vpack.c.b16 %v230, %v229
  %v275 = vpack.c.b16 %v232, %v231
  %v276 = vpack.c.b16 %v234, %v233
  %v277 = vpack.c.b16 %v236, %v235
  %v278 = vpack.c.b16 %v238, %v237
  %v279 = vpack.c.b16 %v240, %v239
  %v280 = vpack.c.b16 %v242, %v241
  %v281 = vpack.c.b16 %v244, %v243
  %v282 = vpack.c.b16 %v246, %v245
  %v283 = vpack.c.b16 %v248, %v247
  %v284 = vpack.c.b16 %v250, %v249
  %v285 = vpack.c.b16 %v252, %v251
  %v286 = vpack.c.b16 %v254, %v253
  %319 = vmatprep.subr.bf16.mxu0 0
  %320 = vmatpush1.bf16.msra.mxu0 %v262
  %321 = vmatprep.subr.bf16.mxu0 0
  %322 = vmatpush1.bf16.msra.mxu0 %v261
  %323 = vmatprep.subr.bf16.mxu0 0
  %324 = vmatpush1.bf16.msra.mxu0 %v260
  %325 = vmatprep.subr.bf16.mxu0 0
  %326 = vmatpush1.bf16.msra.mxu0 %v259
  %327 = vmatprep.subr.bf16.mxu0 0
  %328 = vmatpush1.bf16.msra.mxu0 %v258
  %329 = vmatprep.subr.bf16.mxu0 0
  %330 = vmatpush1.bf16.msra.mxu0 %v257
  %331 = vmatprep.subr.bf16.mxu0 0
  %332 = vmatpush1.bf16.msra.mxu0 %v256
  %333 = vmatprep.subr.bf16.mxu0 0
  %334 = vmatpush1.bf16.msra.mxu0 %v255
  %335 = vmatprep.subr.bf16.mxu0 0
  %336 = vmatpush2.bf16.msra.mxu0 %v270
  %337 = vmatprep.subr.bf16.mxu0 0
  %338 = vmatpush2.bf16.msra.mxu0 %v269
  %339 = vmatprep.subr.bf16.mxu0 0
  %340 = vmatpush2.bf16.msra.mxu0 %v268
  %341 = vmatprep.subr.bf16.mxu0 0
  %342 = vmatpush2.bf16.msra.mxu0 %v267
  %343 = vmatprep.subr.bf16.mxu0 0
  %344 = vmatpush2.bf16.msra.mxu0 %v266
  %345 = vmatprep.subr.bf16.mxu0 0
  %346 = vmatpush2.bf16.msra.mxu0 %v265
  %347 = vmatprep.subr.bf16.mxu0 0
  %348 = vmatpush2.bf16.msra.mxu0 %v264
  %349 = vmatprep.subr.bf16.mxu0 0
  %350 = vmatpush2.bf16.msra.mxu0 %v263
  %351 = vmatprep.mubr.bf16.mxu0 %v112
  %352 = vmatmul.mubr.bf16.gmra.mxu0 %v111
  %v353 = vpop.f32.mrf.mxu0
  %v354 = vadd.f32 0.0, %v353
  %v355 = vpop.f32.mrf.mxu0
  %v356 = vpop.f32.mrf.mxu0
  %v357 = vadd.f32 0.0, %v356
  %v358 = vpop.f32.mrf.mxu0
  %359 = vmatprep.mubr.bf16.mxu0 %v116
  %360 = vmatmul.mubr.bf16.gmra.mxu0 %v115
  %v361 = vpop.f32.mrf.mxu0
  %v362 = vadd.f32 0.0, %v361
  %v363 = vpop.f32.mrf.mxu0
  %v364 = vpop.f32.mrf.mxu0
  %v365 = vadd.f32 0.0, %v364
  %v366 = vpop.f32.mrf.mxu0
  %367 = vdwg.mxu0
  %368 = vmatprep.subr.bf16.mxu0 0
  %369 = vmatpush1.bf16.msra.mxu0 %v278
  %370 = vmatprep.subr.bf16.mxu0 0
  %371 = vmatpush1.bf16.msra.mxu0 %v277
  %372 = vmatprep.subr.bf16.mxu0 0
  %373 = vmatpush1.bf16.msra.mxu0 %v276
  %374 = vmatprep.subr.bf16.mxu0 0
  %375 = vmatpush1.bf16.msra.mxu0 %v275
  %376 = vmatprep.subr.bf16.mxu0 0
  %377 = vmatpush1.bf16.msra.mxu0 %v274
  %378 = vmatprep.subr.bf16.mxu0 0
  %379 = vmatpush1.bf16.msra.mxu0 %v273
  %380 = vmatprep.subr.bf16.mxu0 0
  %381 = vmatpush1.bf16.msra.mxu0 %v272
  %382 = vmatprep.subr.bf16.mxu0 0
  %383 = vmatpush1.bf16.msra.mxu0 %v271
  %384 = vmatprep.subr.bf16.mxu0 0
  %385 = vmatpush2.bf16.msra.mxu0 %v286
  %386 = vmatprep.subr.bf16.mxu0 0
  %387 = vmatpush2.bf16.msra.mxu0 %v285
  %388 = vmatprep.subr.bf16.mxu0 0
  %389 = vmatpush2.bf16.msra.mxu0 %v284
  %390 = vmatprep.subr.bf16.mxu0 0
  %391 = vmatpush2.bf16.msra.mxu0 %v283
  %392 = vmatprep.subr.bf16.mxu0 0
  %393 = vmatpush2.bf16.msra.mxu0 %v282
  %394 = vmatprep.subr.bf16.mxu0 0
  %395 = vmatpush2.bf16.msra.mxu0 %v281
  %396 = vmatprep.subr.bf16.mxu0 0
  %397 = vmatpush2.bf16.msra.mxu0 %v280
  %398 = vmatprep.subr.bf16.mxu0 0
  %399 = vmatpush2.bf16.msra.mxu0 %v279
  %400 = vmatprep.mubr.bf16.mxu0 %v114
  %401 = vmatmul.mubr.bf16.gmra.mxu0 %v113
  %v402 = vpop.f32.mrf.mxu0
  %v403 = vadd.f32 %v354, %v402
  %v404 = vpop.f32.mrf.mxu0
  %v405 = vpop.f32.mrf.mxu0
  %v406 = vadd.f32 %v357, %v405
  %v407 = vpop.f32.mrf.mxu0
  %408 = vmatprep.mubr.bf16.mxu0 %v118
  %409 = vmatmul.mubr.bf16.gmra.mxu0 %v117
  %v410 = vpop.f32.mrf.mxu0
  %v411 = vadd.f32 %v362, %v410
  %v412 = vpop.f32.mrf.mxu0
  %v413 = vpop.f32.mrf.mxu0
  %v414 = vadd.f32 %v365, %v413
  %v415 = vpop.f32.mrf.mxu0
  %416 = vdwg.mxu0
  %v417 = vadd.f32 %v403, %v406
  %v418 = vadd.f32 %v417, %v411
  %v419 = vadd.f32 %v418, %v414
  %420 = vst [vmem:[%s3] sm:$0xff] %v419
  %v421 = vmul.f32 %v403, %v403
  %v422 = vmul.f32 %v406, %v406
  %v423 = vmul.f32 %v411, %v411
  %v424 = vmul.f32 %v414, %v414
  %v425 = vadd.f32 %v421, %v422
  %v426 = vadd.f32 %v425, %v423
  %v427 = vadd.f32 %v426, %v424
  %428 = vst [vmem:[%s4] sm:$0xff] %v427
  %429 = vst [vmem:[%s2] sm:$0xff] %v403
  %430 = vst [vmem:[%s2 + $0x8] sm:$0xff] %v406
  %431 = vst [vmem:[%s2 + $0x10] sm:$0xff] %v411
  %432 = vst [vmem:[%s2 + $0x18] sm:$0xff] %v414
  // Predicated region
  $region10: #{discriminator_forward.13} parent=0 // pred_check
    _
  $region11: #{discriminator_forward.13} parent=0 // pred_check_branch
    %434 = sbr.rel (0) target = $region13
  $region12: #{discriminator_forward.13} parent=0 // pred_region
    _
  $region13: #{discriminator_forward.13} parent=0 // pred_fallthru
    _
  // Predicated region
  $region14: #{discriminator_forward.13} parent=0 // pred_check
    _
  $region15: #{discriminator_forward.13} parent=0 // pred_check_branch
    %436 = sbr.rel (0) target = $region17
  $region16: #{discriminator_forward.13} parent=0 // pred_region
    _
  $region17: #{discriminator_forward.13} parent=0 // pred_fallthru
    _
  // Predicated region
  $region18: #{discriminator_forward.13} parent=0 // pred_check
    _
  $region19: #{discriminator_forward.13} parent=0 // pred_check_branch
    %438 = sbr.rel (0) target = $region21
  $region20: #{discriminator_forward.13} parent=0 // pred_region
    _
  $region21: #{discriminator_forward.13} parent=0 // pred_fallthru
    _
  // Predicated region
  $region22: #{discriminator_forward.13} parent=0 // pred_check
    _
  $region23: #{discriminator_forward.13} parent=0 // pred_check_branch
    %440 = sbr.rel (0) target = $region25
  $region24: #{discriminator_forward.13} parent=0 // pred_region
    _
  $region25: #{discriminator_forward.13} parent=0 // pred_fallthru
    _
  // Predicated region
  $region26: #{discriminator_forward.13} parent=0 // pred_check
    _
  $region27: #{discriminator_forward.13} parent=0 // pred_check_branch
    %442 = sbr.rel (0) target = $region29
  $region28: #{discriminator_forward.13} parent=0 // pred_region
    _
  $region29: #{discriminator_forward.13} parent=0 // pred_fallthru
    _
  // Predicated region
  $region30: #{discriminator_forward.13} parent=0 // pred_check
    _
  $region31: #{discriminator_forward.13} parent=0 // pred_check_branch
    %444 = sbr.rel (0) target = $region33
  $region32: #{discriminator_forward.13} parent=0 // pred_region
    _
  $region33: #{discriminator_forward.13} parent=0 // pred_fallthru
    _

// kernel: discriminator_forward.15
$region0: #{discriminator_forward.15}
  #allocation0 [shape = 'u32[]', space=smem, size = 0x4, offset = 0x4, fixed_abs, tag = 'smem constant byte address 0x4 - core index']
  #allocation1 [shape = 'u32[144,128]{1,0:T(1,128)}', space=vmem, size = 0x12000, scoped, tag = 'internal scratch']
  %s0 = inlined_call_operand.vmem [shape: bf16[8,1024], index: 0, kind: input, shape index: {}]
  %s1 = inlined_call_operand.vmem [shape: bf16[1024,128], index: 1, kind: input, shape index: {}]
  %s2 = inlined_call_operand.vmem [shape: f32[8,128], index: 2, kind: output, shape index: {}]
  %s3 = sld [smem:[#allocation0]]
  $region18: #{discriminator_forward.15} parent=0
    _
  %s5 = ssub.s32 1, %s3
  %s6 = scalar_select 0, %s5, %s3
  // Predicated region
  $region2: #{discriminator_forward.15} parent=0 // pred_check
    _
  $region3: #{discriminator_forward.15} parent=0 // pred_check_branch
    %8 = sbr.rel (0) target = $region5
  $region4: #{discriminator_forward.15} parent=0 // pred_region
    _
  $region5: #{discriminator_forward.15} parent=0 // pred_fallthru
    _
  // Predicated region
  $region6: #{discriminator_forward.15} parent=0 // pred_check
    _
  $region7: #{discriminator_forward.15} parent=0 // pred_check_branch
    %10 = sbr.rel (0) target = $region9
  $region8: #{discriminator_forward.15} parent=0 // pred_region
    _
  $region9: #{discriminator_forward.15} parent=0 // pred_fallthru
    _
  %v12 = vld [vmem:[%s0] sm:$0xff]
  %v13 = vld [vmem:[%s0 + $0x8] sm:$0xff]
  %v14 = vld [vmem:[%s0 + $0x10] sm:$0xff]
  %v15 = vld [vmem:[%s0 + $0x18] sm:$0xff]
  %v16 = vld [vmem:[%s1] sm:$0xf]
  %v17 = vld [vmem:[%s1 + $0x4] sm:$0xf]
  %v18 = vld [vmem:[%s1 + $0x8] sm:$0xf]
  %v19 = vld [vmem:[%s1 + $0xc] sm:$0xf]
  %v20 = vld [vmem:[%s1 + $0x10] sm:$0xf]
  %v21 = vld [vmem:[%s1 + $0x14] sm:$0xf]
  %v22 = vld [vmem:[%s1 + $0x18] sm:$0xf]
  %v23 = vld [vmem:[%s1 + $0x1c] sm:$0xf]
  %v24 = vld [vmem:[%s1 + $0x20] sm:$0xf]
  %v25 = vld [vmem:[%s1 + $0x24] sm:$0xf]
  %v26 = vld [vmem:[%s1 + $0x28] sm:$0xf]
  %v27 = vld [vmem:[%s1 + $0x2c] sm:$0xf]
  %v28 = vld [vmem:[%s1 + $0x30] sm:$0xf]
  %v29 = vld [vmem:[%s1 + $0x34] sm:$0xf]
  %v30 = vld [vmem:[%s1 + $0x38] sm:$0xf]
  %v31 = vld [vmem:[%s1 + $0x3c] sm:$0xf]
  %v32 = vld [vmem:[%s1 + $0x40] sm:$0xf]
  %v33 = vld [vmem:[%s1 + $0x44] sm:$0xf]
  %v34 = vld [vmem:[%s1 + $0x48] sm:$0xf]
  %v35 = vld [vmem:[%s1 + $0x4c] sm:$0xf]
  %v36 = vld [vmem:[%s1 + $0x50] sm:$0xf]
  %v37 = vld [vmem:[%s1 + $0x54] sm:$0xf]
  %v38 = vld [vmem:[%s1 + $0x58] sm:$0xf]
  %v39 = vld [vmem:[%s1 + $0x5c] sm:$0xf]
  %v40 = vld [vmem:[%s1 + $0x60] sm:$0xf]
  %v41 = vld [vmem:[%s1 + $0x64] sm:$0xf]
  %v42 = vld [vmem:[%s1 + $0x68] sm:$0xf]
  %v43 = vld [vmem:[%s1 + $0x6c] sm:$0xf]
  %v44 = vld [vmem:[%s1 + $0x70] sm:$0xf]
  %v45 = vld [vmem:[%s1 + $0x74] sm:$0xf]
  %v46 = vld [vmem:[%s1 + $0x78] sm:$0xf]
  %v47 = vld [vmem:[%s1 + $0x7c] sm:$0xf]
  %v48 = vld [vmem:[%s1 + $0x80] sm:$0xf]
  %v49 = vld [vmem:[%s1 + $0x84] sm:$0xf]
  %v50 = vld [vmem:[%s1 + $0x88] sm:$0xf]
  %v51 = vld [vmem:[%s1 + $0x8c] sm:$0xf]
  %v52 = vld [vmem:[%s1 + $0x90] sm:$0xf]
  %v53 = vld [vmem:[%s1 + $0x94] sm:$0xf]
  %v54 = vld [vmem:[%s1 + $0x98] sm:$0xf]
  %v55 = vld [vmem:[%s1 + $0x9c] sm:$0xf]
  %v56 = vld [vmem:[%s1 + $0xa0] sm:$0xf]
  %v57 = vld [vmem:[%s1 + $0xa4] sm:$0xf]
  %v58 = vld [vmem:[%s1 + $0xa8] sm:$0xf]
  %v59 = vld [vmem:[%s1 + $0xac] sm:$0xf]
  %v60 = vld [vmem:[%s1 + $0xb0] sm:$0xf]
  %v61 = vld [vmem:[%s1 + $0xb4] sm:$0xf]
  %v62 = vld [vmem:[%s1 + $0xb8] sm:$0xf]
  %v63 = vld [vmem:[%s1 + $0xbc] sm:$0xf]
  %v64 = vld [vmem:[%s1 + $0xc0] sm:$0xf]
  %v65 = vld [vmem:[%s1 + $0xc4] sm:$0xf]
  %v66 = vld [vmem:[%s1 + $0xc8] sm:$0xf]
  %v67 = vld [vmem:[%s1 + $0xcc] sm:$0xf]
  %v68 = vld [vmem:[%s1 + $0xd0] sm:$0xf]
  %v69 = vld [vmem:[%s1 + $0xd4] sm:$0xf]
  %v70 = vld [vmem:[%s1 + $0xd8] sm:$0xf]
  %v71 = vld [vmem:[%s1 + $0xdc] sm:$0xf]
  %v72 = vld [vmem:[%s1 + $0xe0] sm:$0xf]
  %v73 = vld [vmem:[%s1 + $0xe4] sm:$0xf]
  %v74 = vld [vmem:[%s1 + $0xe8] sm:$0xf]
  %v75 = vld [vmem:[%s1 + $0xec] sm:$0xf]
  %v76 = vld [vmem:[%s1 + $0xf0] sm:$0xf]
  %v77 = vld [vmem:[%s1 + $0xf4] sm:$0xf]
  %v78 = vld [vmem:[%s1 + $0xf8] sm:$0xf]
  %v79 = vld [vmem:[%s1 + $0xfc] sm:$0xf]
  %v80 = vld [vmem:[%s1 + $0x100] sm:$0xf]
  %v81 = vld [vmem:[%s1 + $0x104] sm:$0xf]
  %v82 = vld [vmem:[%s1 + $0x108] sm:$0xf]
  %v83 = vld [vmem:[%s1 + $0x10c] sm:$0xf]
  %v84 = vld [vmem:[%s1 + $0x110] sm:$0xf]
  %v85 = vld [vmem:[%s1 + $0x114] sm:$0xf]
  %v86 = vld [vmem:[%s1 + $0x118] sm:$0xf]
  %v87 = vld [vmem:[%s1 + $0x11c] sm:$0xf]
  %v88 = vld [vmem:[%s1 + $0x120] sm:$0xf]
  %v89 = vld [vmem:[%s1 + $0x124] sm:$0xf]
  %v90 = vld [vmem:[%s1 + $0x128] sm:$0xf]
  %v91 = vld [vmem:[%s1 + $0x12c] sm:$0xf]
  %v92 = vld [vmem:[%s1 + $0x130] sm:$0xf]
  %v93 = vld [vmem:[%s1 + $0x134] sm:$0xf]
  %v94 = vld [vmem:[%s1 + $0x138] sm:$0xf]
  %v95 = vld [vmem:[%s1 + $0x13c] sm:$0xf]
  %v96 = vld [vmem:[%s1 + $0x140] sm:$0xf]
  %v97 = vld [vmem:[%s1 + $0x144] sm:$0xf]
  %v98 = vld [vmem:[%s1 + $0x148] sm:$0xf]
  %v99 = vld [vmem:[%s1 + $0x14c] sm:$0xf]
  %v100 = vld [vmem:[%s1 + $0x150] sm:$0xf]
  %v101 = vld [vmem:[%s1 + $0x154] sm:$0xf]
  %v102 = vld [vmem:[%s1 + $0x158] sm:$0xf]
  %v103 = vld [vmem:[%s1 + $0x15c] sm:$0xf]
  %v104 = vld [vmem:[%s1 + $0x160] sm:$0xf]
  %v105 = vld [vmem:[%s1 + $0x164] sm:$0xf]
  %v106 = vld [vmem:[%s1 + $0x168] sm:$0xf]
  %v107 = vld [vmem:[%s1 + $0x16c] sm:$0xf]
  %v108 = vld [vmem:[%s1 + $0x170] sm:$0xf]
  %v109 = vld [vmem:[%s1 + $0x174] sm:$0xf]
  %v110 = vld [vmem:[%s1 + $0x178] sm:$0xf]
  %v111 = vld [vmem:[%s1 + $0x17c] sm:$0xf]
  %v112 = vld [vmem:[%s1 + $0x180] sm:$0xf]
  %v113 = vld [vmem:[%s1 + $0x184] sm:$0xf]
  %v114 = vld [vmem:[%s1 + $0x188] sm:$0xf]
  %v115 = vld [vmem:[%s1 + $0x18c] sm:$0xf]
  %v116 = vld [vmem:[%s1 + $0x190] sm:$0xf]
  %v117 = vld [vmem:[%s1 + $0x194] sm:$0xf]
  %v118 = vld [vmem:[%s1 + $0x198] sm:$0xf]
  %v119 = vld [vmem:[%s1 + $0x19c] sm:$0xf]
  %v120 = vld [vmem:[%s1 + $0x1a0] sm:$0xf]
  %v121 = vld [vmem:[%s1 + $0x1a4] sm:$0xf]
  %v122 = vld [vmem:[%s1 + $0x1a8] sm:$0xf]
  %v123 = vld [vmem:[%s1 + $0x1ac] sm:$0xf]
  %v124 = vld [vmem:[%s1 + $0x1b0] sm:$0xf]
  %v125 = vld [vmem:[%s1 + $0x1b4] sm:$0xf]
  %v126 = vld [vmem:[%s1 + $0x1b8] sm:$0xf]
  %v127 = vld [vmem:[%s1 + $0x1bc] sm:$0xf]
  %v128 = vld [vmem:[%s1 + $0x1c0] sm:$0xf]
  %v129 = vld [vmem:[%s1 + $0x1c4] sm:$0xf]
  %v130 = vld [vmem:[%s1 + $0x1c8] sm:$0xf]
  %v131 = vld [vmem:[%s1 + $0x1cc] sm:$0xf]
  %v132 = vld [vmem:[%s1 + $0x1d0] sm:$0xf]
  %v133 = vld [vmem:[%s1 + $0x1d4] sm:$0xf]
  %v134 = vld [vmem:[%s1 + $0x1d8] sm:$0xf]
  %v135 = vld [vmem:[%s1 + $0x1dc] sm:$0xf]
  %v136 = vld [vmem:[%s1 + $0x1e0] sm:$0xf]
  %v137 = vld [vmem:[%s1 + $0x1e4] sm:$0xf]
  %v138 = vld [vmem:[%s1 + $0x1e8] sm:$0xf]
  %v139 = vld [vmem:[%s1 + $0x1ec] sm:$0xf]
  %v140 = vld [vmem:[%s1 + $0x1f0] sm:$0xf]
  %v141 = vld [vmem:[%s1 + $0x1f4] sm:$0xf]
  %v142 = vld [vmem:[%s1 + $0x1f8] sm:$0xf]
  %v143 = vld [vmem:[%s1 + $0x1fc] sm:$0xf]
  %v148 = vunpack.c.l.b16 %v12
  %v149 = vunpack.c.h.b16 %v12
  %v150 = vunpack.c.l.b16 %v13
  %v151 = vunpack.c.h.b16 %v13
  %v152 = vunpack.c.l.b16 %v14
  %v153 = vunpack.c.h.b16 %v14
  %v154 = vunpack.c.l.b16 %v15
  %v155 = vunpack.c.h.b16 %v15
  %v156 = vpack.c.b16 %v148, %v148
  %v157 = vpack.c.b16 %v149, %v149
  %v158 = vpack.c.b16 %v150, %v150
  %v159 = vpack.c.b16 %v151, %v151
  %v160 = vpack.c.b16 %v152, %v152
  %v161 = vpack.c.b16 %v153, %v153
  %v162 = vpack.c.b16 %v154, %v154
  %v163 = vpack.c.b16 %v155, %v155
  %v300 = vunpack.c.l.b16 %v16
  %v301 = vunpack.c.l.b16 %v17
  %v302 = vunpack.c.l.b16 %v18
  %v303 = vunpack.c.l.b16 %v19
  %v304 = vunpack.c.l.b16 %v20
  %v305 = vunpack.c.l.b16 %v21
  %v306 = vunpack.c.l.b16 %v22
  %v307 = vunpack.c.l.b16 %v23
  %v308 = vunpack.c.l.b16 %v24
  %v309 = vunpack.c.l.b16 %v25
  %v310 = vunpack.c.l.b16 %v26
  %v311 = vunpack.c.l.b16 %v27
  %v312 = vunpack.c.l.b16 %v28
  %v313 = vunpack.c.l.b16 %v29
  %v314 = vunpack.c.l.b16 %v30
  %v315 = vunpack.c.l.b16 %v31
  %v316 = vunpack.c.l.b16 %v32
  %v317 = vunpack.c.l.b16 %v33
  %v318 = vunpack.c.l.b16 %v34
  %v319 = vunpack.c.l.b16 %v35
  %v320 = vunpack.c.l.b16 %v36
  %v321 = vunpack.c.l.b16 %v37
  %v322 = vunpack.c.l.b16 %v38
  %v323 = vunpack.c.l.b16 %v39
  %v324 = vunpack.c.l.b16 %v40
  %v325 = vunpack.c.l.b16 %v41
  %v326 = vunpack.c.l.b16 %v42
  %v327 = vunpack.c.l.b16 %v43
  %v328 = vunpack.c.l.b16 %v44
  %v329 = vunpack.c.l.b16 %v45
  %v330 = vunpack.c.l.b16 %v46
  %v331 = vunpack.c.l.b16 %v47
  %v332 = vunpack.c.l.b16 %v48
  %v333 = vunpack.c.l.b16 %v49
  %v334 = vunpack.c.l.b16 %v50
  %v335 = vunpack.c.l.b16 %v51
  %v336 = vunpack.c.l.b16 %v52
  %v337 = vunpack.c.l.b16 %v53
  %v338 = vunpack.c.l.b16 %v54
  %v339 = vunpack.c.l.b16 %v55
  %v340 = vunpack.c.l.b16 %v56
  %v341 = vunpack.c.l.b16 %v57
  %v342 = vunpack.c.l.b16 %v58
  %v343 = vunpack.c.l.b16 %v59
  %v344 = vunpack.c.l.b16 %v60
  %v345 = vunpack.c.l.b16 %v61
  %v346 = vunpack.c.l.b16 %v62
  %v347 = vunpack.c.l.b16 %v63
  %v348 = vunpack.c.l.b16 %v64
  %v349 = vunpack.c.l.b16 %v65
  %v350 = vunpack.c.l.b16 %v66
  %v351 = vunpack.c.l.b16 %v67
  %v352 = vunpack.c.l.b16 %v68
  %v353 = vunpack.c.l.b16 %v69
  %v354 = vunpack.c.l.b16 %v70
  %v355 = vunpack.c.l.b16 %v71
  %v356 = vunpack.c.l.b16 %v72
  %v357 = vunpack.c.l.b16 %v73
  %v358 = vunpack.c.l.b16 %v74
  %v359 = vunpack.c.l.b16 %v75
  %v360 = vunpack.c.l.b16 %v76
  %v361 = vunpack.c.l.b16 %v77
  %v362 = vunpack.c.l.b16 %v78
  %v363 = vunpack.c.l.b16 %v79
  %v364 = vunpack.c.l.b16 %v80
  %v365 = vunpack.c.l.b16 %v81
  %v366 = vunpack.c.l.b16 %v82
  %v367 = vunpack.c.l.b16 %v83
  %v368 = vunpack.c.l.b16 %v84
  %v369 = vunpack.c.l.b16 %v85
  %v370 = vunpack.c.l.b16 %v86
  %v371 = vunpack.c.l.b16 %v87
  %v372 = vunpack.c.l.b16 %v88
  %v373 = vunpack.c.l.b16 %v89
  %v374 = vunpack.c.l.b16 %v90
  %v375 = vunpack.c.l.b16 %v91
  %v376 = vunpack.c.l.b16 %v92
  %v377 = vunpack.c.l.b16 %v93
  %v378 = vunpack.c.l.b16 %v94
  %v379 = vunpack.c.l.b16 %v95
  %v380 = vunpack.c.l.b16 %v96
  %v381 = vunpack.c.l.b16 %v97
  %v382 = vunpack.c.l.b16 %v98
  %v383 = vunpack.c.l.b16 %v99
  %v384 = vunpack.c.l.b16 %v100
  %v385 = vunpack.c.l.b16 %v101
  %v386 = vunpack.c.l.b16 %v102
  %v387 = vunpack.c.l.b16 %v103
  %v388 = vunpack.c.l.b16 %v104
  %v389 = vunpack.c.l.b16 %v105
  %v390 = vunpack.c.l.b16 %v106
  %v391 = vunpack.c.l.b16 %v107
  %v392 = vunpack.c.l.b16 %v108
  %v393 = vunpack.c.l.b16 %v109
  %v394 = vunpack.c.l.b16 %v110
  %v395 = vunpack.c.l.b16 %v111
  %v396 = vunpack.c.l.b16 %v112
  %v397 = vunpack.c.l.b16 %v113
  %v398 = vunpack.c.l.b16 %v114
  %v399 = vunpack.c.l.b16 %v115
  %v400 = vunpack.c.l.b16 %v116
  %v401 = vunpack.c.l.b16 %v117
  %v402 = vunpack.c.l.b16 %v118
  %v403 = vunpack.c.l.b16 %v119
  %v404 = vunpack.c.l.b16 %v120
  %v405 = vunpack.c.l.b16 %v121
  %v406 = vunpack.c.l.b16 %v122
  %v407 = vunpack.c.l.b16 %v123
  %v408 = vunpack.c.l.b16 %v124
  %v409 = vunpack.c.l.b16 %v125
  %v410 = vunpack.c.l.b16 %v126
  %v411 = vunpack.c.l.b16 %v127
  %v412 = vunpack.c.l.b16 %v128
  %v413 = vunpack.c.l.b16 %v129
  %v414 = vunpack.c.l.b16 %v130
  %v415 = vunpack.c.l.b16 %v131
  %v416 = vunpack.c.l.b16 %v132
  %v417 = vunpack.c.l.b16 %v133
  %v418 = vunpack.c.l.b16 %v134
  %v419 = vunpack.c.l.b16 %v135
  %v420 = vunpack.c.l.b16 %v136
  %v421 = vunpack.c.l.b16 %v137
  %v422 = vunpack.c.l.b16 %v138
  %v423 = vunpack.c.l.b16 %v139
  %v424 = vunpack.c.l.b16 %v140
  %v425 = vunpack.c.l.b16 %v141
  %v426 = vunpack.c.l.b16 %v142
  %v427 = vunpack.c.l.b16 %v143
  %v428 = vpack.c.b16 %v301, %v300
  %v429 = vpack.c.b16 %v303, %v302
  %v430 = vpack.c.b16 %v305, %v304
  %v431 = vpack.c.b16 %v307, %v306
  %v432 = vpack.c.b16 %v309, %v308
  %v433 = vpack.c.b16 %v311, %v310
  %v434 = vpack.c.b16 %v313, %v312
  %v435 = vpack.c.b16 %v315, %v314
  %v436 = vpack.c.b16 %v317, %v316
  %v437 = vpack.c.b16 %v319, %v318
  %v438 = vpack.c.b16 %v321, %v320
  %v439 = vpack.c.b16 %v323, %v322
  %v440 = vpack.c.b16 %v325, %v324
  %v441 = vpack.c.b16 %v327, %v326
  %v442 = vpack.c.b16 %v329, %v328
  %v443 = vpack.c.b16 %v331, %v330
  %v444 = vpack.c.b16 %v333, %v332
  %v445 = vpack.c.b16 %v335, %v334
  %v446 = vpack.c.b16 %v337, %v336
  %v447 = vpack.c.b16 %v339, %v338
  %v448 = vpack.c.b16 %v341, %v340
  %v449 = vpack.c.b16 %v343, %v342
  %v450 = vpack.c.b16 %v345, %v344
  %v451 = vpack.c.b16 %v347, %v346
  %v452 = vpack.c.b16 %v349, %v348
  %v453 = vpack.c.b16 %v351, %v350
  %v454 = vpack.c.b16 %v353, %v352
  %v455 = vpack.c.b16 %v355, %v354
  %v456 = vpack.c.b16 %v357, %v356
  %v457 = vpack.c.b16 %v359, %v358
  %v458 = vpack.c.b16 %v361, %v360
  %v459 = vpack.c.b16 %v363, %v362
  %v460 = vpack.c.b16 %v365, %v364
  %v461 = vpack.c.b16 %v367, %v366
  %v462 = vpack.c.b16 %v369, %v368
  %v463 = vpack.c.b16 %v371, %v370
  %v464 = vpack.c.b16 %v373, %v372
  %v465 = vpack.c.b16 %v375, %v374
  %v466 = vpack.c.b16 %v377, %v376
  %v467 = vpack.c.b16 %v379, %v378
  %v468 = vpack.c.b16 %v381, %v380
  %v469 = vpack.c.b16 %v383, %v382
  %v470 = vpack.c.b16 %v385, %v384
  %v471 = vpack.c.b16 %v387, %v386
  %v472 = vpack.c.b16 %v389, %v388
  %v473 = vpack.c.b16 %v391, %v390
  %v474 = vpack.c.b16 %v393, %v392
  %v475 = vpack.c.b16 %v395, %v394
  %v476 = vpack.c.b16 %v397, %v396
  %v477 = vpack.c.b16 %v399, %v398
  %v478 = vpack.c.b16 %v401, %v400
  %v479 = vpack.c.b16 %v403, %v402
  %v480 = vpack.c.b16 %v405, %v404
  %v481 = vpack.c.b16 %v407, %v406
  %v482 = vpack.c.b16 %v409, %v408
  %v483 = vpack.c.b16 %v411, %v410
  %v484 = vpack.c.b16 %v413, %v412
  %v485 = vpack.c.b16 %v415, %v414
  %v486 = vpack.c.b16 %v417, %v416
  %v487 = vpack.c.b16 %v419, %v418
  %v488 = vpack.c.b16 %v421, %v420
  %v489 = vpack.c.b16 %v423, %v422
  %v490 = vpack.c.b16 %v425, %v424
  %v491 = vpack.c.b16 %v427, %v426
  %556 = vmatprep.subr.bf16.mxu0 0
  %557 = vmatpush1.bf16.msra.mxu0 %v435
  %558 = vmatprep.subr.bf16.mxu0 0
  %559 = vmatpush1.bf16.msra.mxu0 %v434
  %560 = vmatprep.subr.bf16.mxu0 0
  %561 = vmatpush1.bf16.msra.mxu0 %v433
  %562 = vmatprep.subr.bf16.mxu0 0
  %563 = vmatpush1.bf16.msra.mxu0 %v432
  %564 = vmatprep.subr.bf16.mxu0 0
  %565 = vmatpush1.bf16.msra.mxu0 %v431
  %566 = vmatprep.subr.bf16.mxu0 0
  %567 = vmatpush1.bf16.msra.mxu0 %v430
  %568 = vmatprep.subr.bf16.mxu0 0
  %569 = vmatpush1.bf16.msra.mxu0 %v429
  %570 = vmatprep.subr.bf16.mxu0 0
  %571 = vmatpush1.bf16.msra.mxu0 %v428
  %572 = vmatprep.subr.bf16.mxu0 0
  %573 = vmatpush2.bf16.msra.mxu0 %v443
  %574 = vmatprep.subr.bf16.mxu0 0
  %575 = vmatpush2.bf16.msra.mxu0 %v442
  %576 = vmatprep.subr.bf16.mxu0 0
  %577 = vmatpush2.bf16.msra.mxu0 %v441
  %578 = vmatprep.subr.bf16.mxu0 0
  %579 = vmatpush2.bf16.msra.mxu0 %v440
  %580 = vmatprep.subr.bf16.mxu0 0
  %581 = vmatpush2.bf16.msra.mxu0 %v439
  %582 = vmatprep.subr.bf16.mxu0 0
  %583 = vmatpush2.bf16.msra.mxu0 %v438
  %584 = vmatprep.subr.bf16.mxu0 0
  %585 = vmatpush2.bf16.msra.mxu0 %v437
  %586 = vmatprep.subr.bf16.mxu0 0
  %587 = vmatpush2.bf16.msra.mxu0 %v436
  %588 = vmatprep.mubr.bf16.mxu0 %v157
  %589 = vmatmul.mubr.bf16.gmra.mxu0 %v156
  %v590 = vpop.f32.mrf.mxu0
  %v591 = vadd.f32 0.0, %v590
  %v592 = vpop.f32.mrf.mxu0
  %v593 = vpop.f32.mrf.mxu0
  %v594 = vpop.f32.mrf.mxu0
  %595 = vdwg.mxu0
  %596 = vmatprep.subr.bf16.mxu0 0
  %597 = vmatpush1.bf16.msra.mxu0 %v451
  %598 = vmatprep.subr.bf16.mxu0 0
  %599 = vmatpush1.bf16.msra.mxu0 %v450
  %600 = vmatprep.subr.bf16.mxu0 0
  %601 = vmatpush1.bf16.msra.mxu0 %v449
  %602 = vmatprep.subr.bf16.mxu0 0
  %603 = vmatpush1.bf16.msra.mxu0 %v448
  %604 = vmatprep.subr.bf16.mxu0 0
  %605 = vmatpush1.bf16.msra.mxu0 %v447
  %606 = vmatprep.subr.bf16.mxu0 0
  %607 = vmatpush1.bf16.msra.mxu0 %v446
  %608 = vmatprep.subr.bf16.mxu0 0
  %609 = vmatpush1.bf16.msra.mxu0 %v445
  %610 = vmatprep.subr.bf16.mxu0 0
  %611 = vmatpush1.bf16.msra.mxu0 %v444
  %612 = vmatprep.subr.bf16.mxu0 0
  %613 = vmatpush2.bf16.msra.mxu0 %v459
  %614 = vmatprep.subr.bf16.mxu0 0
  %615 = vmatpush2.bf16.msra.mxu0 %v458
  %616 = vmatprep.subr.bf16.mxu0 0
  %617 = vmatpush2.bf16.msra.mxu0 %v457
  %618 = vmatprep.subr.bf16.mxu0 0
  %619 = vmatpush2.bf16.msra.mxu0 %v456
  %620 = vmatprep.subr.bf16.mxu0 0
  %621 = vmatpush2.bf16.msra.mxu0 %v455
  %622 = vmatprep.subr.bf16.mxu0 0
  %623 = vmatpush2.bf16.msra.mxu0 %v454
  %624 = vmatprep.subr.bf16.mxu0 0
  %625 = vmatpush2.bf16.msra.mxu0 %v453
  %626 = vmatprep.subr.bf16.mxu0 0
  %627 = vmatpush2.bf16.msra.mxu0 %v452
  %628 = vmatprep.mubr.bf16.mxu0 %v159
  %629 = vmatmul.mubr.bf16.gmra.mxu0 %v158
  %v630 = vpop.f32.mrf.mxu0
  %v631 = vadd.f32 %v591, %v630
  %v632 = vpop.f32.mrf.mxu0
  %v633 = vpop.f32.mrf.mxu0
  %v634 = vpop.f32.mrf.mxu0
  %635 = vdwg.mxu0
  %636 = vmatprep.subr.bf16.mxu0 0
  %637 = vmatpush1.bf16.msra.mxu0 %v467
  %638 = vmatprep.subr.bf16.mxu0 0
  %639 = vmatpush1.bf16.msra.mxu0 %v466
  %640 = vmatprep.subr.bf16.mxu0 0
  %641 = vmatpush1.bf16.msra.mxu0 %v465
  %642 = vmatprep.subr.bf16.mxu0 0
  %643 = vmatpush1.bf16.msra.mxu0 %v464
  %644 = vmatprep.subr.bf16.mxu0 0
  %645 = vmatpush1.bf16.msra.mxu0 %v463
  %646 = vmatprep.subr.bf16.mxu0 0
  %647 = vmatpush1.bf16.msra.mxu0 %v462
  %648 = vmatprep.subr.bf16.mxu0 0
  %649 = vmatpush1.bf16.msra.mxu0 %v461
  %650 = vmatprep.subr.bf16.mxu0 0
  %651 = vmatpush1.bf16.msra.mxu0 %v460
  %652 = vmatprep.subr.bf16.mxu0 0
  %653 = vmatpush2.bf16.msra.mxu0 %v475
  %654 = vmatprep.subr.bf16.mxu0 0
  %655 = vmatpush2.bf16.msra.mxu0 %v474
  %656 = vmatprep.subr.bf16.mxu0 0
  %657 = vmatpush2.bf16.msra.mxu0 %v473
  %658 = vmatprep.subr.bf16.mxu0 0
  %659 = vmatpush2.bf16.msra.mxu0 %v472
  %660 = vmatprep.subr.bf16.mxu0 0
  %661 = vmatpush2.bf16.msra.mxu0 %v471
  %662 = vmatprep.subr.bf16.mxu0 0
  %663 = vmatpush2.bf16.msra.mxu0 %v470
  %664 = vmatprep.subr.bf16.mxu0 0
  %665 = vmatpush2.bf16.msra.mxu0 %v469
  %666 = vmatprep.subr.bf16.mxu0 0
  %667 = vmatpush2.bf16.msra.mxu0 %v468
  %668 = vmatprep.mubr.bf16.mxu0 %v161
  %669 = vmatmul.mubr.bf16.gmra.mxu0 %v160
  %v670 = vpop.f32.mrf.mxu0
  %v671 = vadd.f32 %v631, %v670
  %v672 = vpop.f32.mrf.mxu0
  %v673 = vpop.f32.mrf.mxu0
  %v674 = vpop.f32.mrf.mxu0
  %675 = vdwg.mxu0
  %676 = vmatprep.subr.bf16.mxu0 0
  %677 = vmatpush1.bf16.msra.mxu0 %v483
  %678 = vmatprep.subr.bf16.mxu0 0
  %679 = vmatpush1.bf16.msra.mxu0 %v482
  %680 = vmatprep.subr.bf16.mxu0 0
  %681 = vmatpush1.bf16.msra.mxu0 %v481
  %682 = vmatprep.subr.bf16.mxu0 0
  %683 = vmatpush1.bf16.msra.mxu0 %v480
  %684 = vmatprep.subr.bf16.mxu0 0
  %685 = vmatpush1.bf16.msra.mxu0 %v479
  %686 = vmatprep.subr.bf16.mxu0 0
  %687 = vmatpush1.bf16.msra.mxu0 %v478
  %688 = vmatprep.subr.bf16.mxu0 0
  %689 = vmatpush1.bf16.msra.mxu0 %v477
  %690 = vmatprep.subr.bf16.mxu0 0
  %691 = vmatpush1.bf16.msra.mxu0 %v476
  %692 = vmatprep.subr.bf16.mxu0 0
  %693 = vmatpush2.bf16.msra.mxu0 %v491
  %694 = vmatprep.subr.bf16.mxu0 0
  %695 = vmatpush2.bf16.msra.mxu0 %v490
  %696 = vmatprep.subr.bf16.mxu0 0
  %697 = vmatpush2.bf16.msra.mxu0 %v489
  %698 = vmatprep.subr.bf16.mxu0 0
  %699 = vmatpush2.bf16.msra.mxu0 %v488
  %700 = vmatprep.subr.bf16.mxu0 0
  %701 = vmatpush2.bf16.msra.mxu0 %v487
  %702 = vmatprep.subr.bf16.mxu0 0
  %703 = vmatpush2.bf16.msra.mxu0 %v486
  %704 = vmatprep.subr.bf16.mxu0 0
  %705 = vmatpush2.bf16.msra.mxu0 %v485
  %706 = vmatprep.subr.bf16.mxu0 0
  %707 = vmatpush2.bf16.msra.mxu0 %v484
  %708 = vmatprep.mubr.bf16.mxu0 %v163
  %709 = vmatmul.mubr.bf16.gmra.mxu0 %v162
  %v710 = vpop.f32.mrf.mxu0
  %v711 = vadd.f32 %v671, %v710
  %v712 = vpop.f32.mrf.mxu0
  %v713 = vpop.f32.mrf.mxu0
  %v714 = vpop.f32.mrf.mxu0
  %715 = vdwg.mxu0
  %v716 = vand.u32 2147483647, %v711
  %v717 = vsub.f32 0.0, %v716
  %v718 = vmul.f32 %v717, 1.442695
  %v719 = vpow.pop %v718
  %vm720 = vcmp.ge.f32.partialorder %v711, 0.0
  %v721 = vadd.f32 %v719, 1.0
  %v722 = vrcp.pop %v721
  %v723 = vmul.f32 1.0, %v722
  %v724 = vmul.f32 %v719, %v722
  %v725 = vsel %vm720, %v723, %v724
  %726 = vst [vmem:[%s2] sm:$0xff] %v725
  // Predicated region
  $region10: #{discriminator_forward.15} parent=0 // pred_check
    _
  $region11: #{discriminator_forward.15} parent=0 // pred_check_branch
    %728 = sbr.rel (0) target = $region13
  $region12: #{discriminator_forward.15} parent=0 // pred_region
    _
  $region13: #{discriminator_forward.15} parent=0 // pred_fallthru
    _
  // Predicated region
  $region14: #{discriminator_forward.15} parent=0 // pred_check
    _
  $region15: #{discriminator_forward.15} parent=0 // pred_check_branch
    %730 = sbr.rel (0) target = $region17
  $region16: #{discriminator_forward.15} parent=0 // pred_region
    _
  $region17: #{discriminator_forward.15} parent=0 // pred_fallthru
    _

</llo_original>
